<compile_context>
chip_gen: v6e
topology: v6e:2x2x1
jax: 0.10.0
libtpu: 0.0.40
codegen_flags: <defaults>
</compile_context>

<pallas_src>
import functools

import jax
import jax.numpy as jnp
from jax import lax
from jax.experimental import pallas as pl
from jax.experimental.pallas import tpu as pltpu

LANE = 128   # vreg lane width
GR = 8       # rows per taps-innermost accumulation group


def _round_up(x, m):
    return (x + m - 1) // m * m


# ----------------------------------------------------------------------------
# Fused kernel: one (lane-block, H-tile) step
# ----------------------------------------------------------------------------
def _asdw_kernel(xm_ref, xt_ref, xb_ref, ww_ref, bw_ref, wh_ref, bh_ref,
                 wc_ref, bc_ref, o_ref, y1_ref, y2_ref, *,
                 H, W, TH, hh, kh, kw, d, pw_l, ph_t):
    """
    xm_ref : (TH, Wp, L)      input rows [h*TH, h*TH+TH), W pre-padded 'same'
    xt_ref : (1, hh, Wp, L)   rows [h*TH-hh, h*TH)       (clamped at borders)
    xb_ref : (1, hh, Wp, L)   rows [h*TH+TH, h*TH+TH+hh) (clamped at borders)
    ww_ref : (kw, L)  wh_ref : (kh, L)  wc_ref : (3, 3, L)   depthwise taps
    b*_ref : (1, L)
    o_ref  : (TH, W, L)
    y1_ref : (TH + 2*hh, W, L)        scratch, fully rewritten every step
    y2_ref : (TH + 2*d, W + 2*d, L)   scratch, interior rewritten every step
    """
    L = o_ref.shape[-1]
    row0 = pl.program_id(1) * TH          # global row of first output row

    # Hoisted weight / bias loads (tiny, once per step).
    ww = ww_ref[...]
    wh = wh_ref[...]
    wc = wc_ref[...]
    bw = bw_ref[...].reshape(1, 1, L)
    bh = bh_ref[...].reshape(1, 1, L)
    bc = bc_ref[...].reshape(1, 1, L)

    def row_valid(first_global_row, nrows):
        g = first_global_row + lax.broadcasted_iota(jnp.int32, (nrows, 1, L), 0)
        return ((g >= 0) & (g < H)).astype(jnp.float32)

    # ---- stage 1: mixer_w (1 x kw, dilation d) -> y1_ref --------------------
    def mixer_w_rows(x_rows, i0, nrows):
        acc = x_rows[:, 0:W, :] * ww[0].reshape(1, 1, L)
        for k in range(1, kw):
            acc = acc + x_rows[:, k * d:k * d + W, :] * ww[k].reshape(1, 1, L)
        valid = row_valid(row0 - hh + i0, nrows)
        y1_ref[i0:i0 + nrows, :, :] = (acc + bw) * valid

    mixer_w_rows(xt_ref[0], 0, hh)                     # top halo rows
    r = 0
    while r < TH:                                      # main rows, GR at a time
        n = min(GR, TH - r)
        mixer_w_rows(xm_ref[r:r + n], hh + r, n)
        r += n
    mixer_w_rows(xb_ref[0], hh + TH, hh)               # bottom halo rows

    # ---- stage 2: mixer_h (kh x 1, dilation d) -> y2_ref interior -----------
    off = hh - d - ph_t                                # >= 0 by construction
    n2 = TH + 2 * d
    r = 0
    while r < n2:
        n = min(GR, n2 - r)
        acc = y1_ref[r + off:r + off + n, :, :] * wh[0].reshape(1, 1, L)
        for k in range(1, kh):
            s = r + off + k * d
            acc = acc + y1_ref[s:s + n, :, :] * wh[k].reshape(1, 1, L)
        valid = row_valid(row0 - d + r, n)
        y2_ref[r:r + n, d:d + W, :] = (acc + bh) * valid
        r += n

    # W-halo ring of y2 = zero ('same' padding of the 3x3 conv); the interior
    # writes never touch it, so only these 2*d columns are (re)zeroed.
    y2_ref[:, 0:d, :] = jnp.zeros((n2, d, L), jnp.float32)
    y2_ref[:, d + W:2 * d + W, :] = jnp.zeros((n2, d, L), jnp.float32)

    # ---- stage 3: 3x3 depthwise conv + bias + residual -> o_ref -------------
    r = 0
    while r < TH:
        n = min(GR, TH - r)
        acc = None
        for a in range(3):
            for b in range(3):
                t = (y2_ref[r + a * d:r + a * d + n, b * d:b * d + W, :]
                     * wc[a, b].reshape(1, 1, L))
                acc = t if acc is None else acc + t
        skip = xm_ref[r:r + n, pw_l:pw_l + W, :]
        o_ref[r:r + n, :, :] = (acc + bc + skip).astype(o_ref.dtype)
        r += n


# ----------------------------------------------------------------------------
# Wrapper
# ----------------------------------------------------------------------------
@functools.partial(jax.jit, static_argnames=("kh", "kw", "dilation", "row_tile"))
def axial_spatial_dw(x, w_w, b_w, w_h, b_h, w_c, b_c, *, kh, kw, dilation,
                     row_tile=8):
    """Forward pass of Axial_Spatial_DW.

    x   : (B, C, H, W) float32  (NCHW, PyTorch layout)
    w_w : (C, kw)    mixer_w depthwise weights (PyTorch (C,1,1,kw) squeezed)
    w_h : (C, kh)    mixer_h depthwise weights (PyTorch (C,1,kh,1) squeezed)
    w_c : (C, 3, 3)  3x3 depthwise weights     (PyTorch (C,1,3,3) squeezed)
    b_* : (C,)       biases
    """
    B, C, H, W = x.shape
    d = int(dilation)

    # 'same' padding amounts (PyTorch: extra pad goes on the right / bottom)
    tot_w = d * (kw - 1)
    pw_l = tot_w // 2
    pw_r = tot_w - pw_l
    ph_t = d * (kh - 1) // 2
    ph_b = d * (kh - 1) - ph_t

    # H-halo per side = mixer_h 'same' halo + 3x3 'same' halo
    hh = d + max(ph_t, ph_b)
    TH = hh * max(1, _round_up(row_tile, hh) // hh)    # row tile, multiple of hh
    Hr = _round_up(H, TH)
    nH = Hr // TH
    nchunks = Hr // hh
    m = TH // hh
    Wp = W + tot_w

    # Lane axis = B*C (batch folded into channels).
    BC = B * C
    if BC % LANE == 0 or BC < LANE:
        Lb, BCp = min(BC, LANE), BC
    else:
        BCp, Lb = _round_up(BC, LANE), LANE
    nC = BCp // Lb

    f32 = jnp.float32
    # (B,C,H,W) -> (H,W,B*C); one pad: bottom round-up rows, 'same' W halo,
    # lane padding (only when B*C > 128 and not a multiple of 128).
    xl = jnp.transpose(x, (2, 3, 0, 1)).reshape(H, W, BC).astype(f32)
    xp = jnp.pad(xl, ((0, Hr - H), (pw_l, pw_r), (0, BCp - BC)))
    x_chunks = xp.reshape(nchunks, hh, Wp, BCp)

    def pack_w(w):                                  # (C, ...) -> (..., B*C pad)
        wt = jnp.moveaxis(w, 0, -1)
        wt = jnp.tile(wt, (1,) * (wt.ndim - 1) + (B,))
        pad = [(0, 0)] * (wt.ndim - 1) + [(0, BCp - BC)]
        return jnp.pad(wt, pad).astype(f32)

    def pack_b(b):
        return jnp.pad(jnp.tile(b, (B,)), (0, BCp - BC)).reshape(1, BCp).astype(f32)

    ww = pack_w(w_w)            # (kw, BCp)
    wh = pack_w(w_h)            # (kh, BCp)
    wc = pack_w(w_c)            # (3, 3, BCp)
    bw, bh, bc = pack_b(b_w), pack_b(b_h), pack_b(b_c)

    kern = functools.partial(_asdw_kernel, H=H, W=W, TH=TH, hh=hh, kh=kh, kw=kw,
                             d=d, pw_l=pw_l, ph_t=ph_t)

    out = pl.pallas_call(
        kern,
        out_shape=jax.ShapeDtypeStruct((Hr, W, BCp), f32),
        grid=(nC, nH),
        in_specs=[
            # main rows of the tile
            pl.BlockSpec((TH, Wp, Lb), lambda c, h: (h, 0, c)),
            # top / bottom halo chunks (clamped at the borders; garbage rows
            # are zeroed in-kernel by the row-validity mask)
            pl.BlockSpec((1, hh, Wp, Lb),
                         lambda c, h: (jnp.maximum(h * m - 1, 0), 0, 0, c)),
            pl.BlockSpec((1, hh, Wp, Lb),
                         lambda c, h: (jnp.minimum((h + 1) * m, nchunks - 1),
                                       0, 0, c)),
            pl.BlockSpec((kw, Lb), lambda c, h: (0, c)),
            pl.BlockSpec((1, Lb), lambda c, h: (0, c)),
            pl.BlockSpec((kh, Lb), lambda c, h: (0, c)),
            pl.BlockSpec((1, Lb), lambda c, h: (0, c)),
            pl.BlockSpec((3, 3, Lb), lambda c, h: (0, 0, c)),
            pl.BlockSpec((1, Lb), lambda c, h: (0, c)),
        ],
        out_specs=pl.BlockSpec((TH, W, Lb), lambda c, h: (h, 0, c)),
        scratch_shapes=[
            pltpu.VMEM((TH + 2 * hh, W, Lb), f32),
            pltpu.VMEM((TH + 2 * d, W + 2 * d, Lb), f32),
        ],
        compiler_params=pltpu.CompilerParams(
            dimension_semantics=("parallel", "parallel")),
    )(xp, x_chunks, x_chunks, ww, bw, wh, bh, wc, bc)

    out = out[:H, :, :BC].reshape(H, W, B, C)
    return jnp.transpose(out, (2, 3, 0, 1))


# ----------------------------------------------------------------------------
# Pure-JAX (f32) reference for correctness checking
# ----------------------------------------------------------------------------
def _ref_dw_same(x, w, b, d):
    # x: (B,C,H,W); w: (C,kh,kw); b: (C,)
    C, kh_, kw_ = w.shape
    th, tw = d * (kh_ - 1), d * (kw_ - 1)
    pt, pleft = th // 2, tw // 2
    xp = jnp.pad(x, ((0, 0), (0, 0), (pt, th - pt), (pleft, tw - pleft)))
    B, _, H, W = x.shape
    out = jnp.zeros_like(x)
    for i in range(kh_):
        for j in range(kw_):
            out = out + (xp[:, :, i * d:i * d + H, j * d:j * d + W]
                         * w[:, i, j][None, :, None, None])
    return out + b[None, :, None, None]


def _ref_axial_spatial_dw(x, w_w, b_w, w_h, b_h, w_c, b_c, kh, kw, d):
    skip = x
    y = _ref_dw_same(x, w_w.reshape(-1, 1, kw), b_w, d)     # mixer_w (1, w)
    y = _ref_dw_same(y, w_h.reshape(-1, kh, 1), b_h, d)     # mixer_h (h, 1)
    y = _ref_dw_same(y, w_c, b_c, d)                        # conv 3x3
    return y + skip


# ----------------------------------------------------------------------------
if __name__ == "__main__":
    key = jax.random.PRNGKey(0)

    def check(B, C, H, W, kh, kw, dilation, k):
        ks = jax.random.split(k, 7)
        x = jax.random.normal(ks[0], (B, C, H, W), jnp.float32)
        w_w = 0.2 * jax.random.normal(ks[1], (C, kw), jnp.float32)
        b_w = 0.1 * jax.random.normal(ks[2], (C,), jnp.float32)
        w_h = 0.2 * jax.random.normal(ks[3], (C, kh), jnp.float32)
        b_h = 0.1 * jax.random.normal(ks[4], (C,), jnp.float32)
        w_c = 0.2 * jax.random.normal(ks[5], (C, 3, 3), jnp.float32)
        b_c = 0.1 * jax.random.normal(ks[6], (C,), jnp.float32)
        out = axial_spatial_dw(x, w_w, b_w, w_h, b_h, w_c, b_c,
                               kh=kh, kw=kw, dilation=dilation)
        out = jax.block_until_ready(out)
        assert out.shape == (B, C, H, W)
        assert bool(jnp.all(jnp.isfinite(out)))
        ref = _ref_axial_spatial_dw(x, w_w, b_w, w_h, b_h, w_c, b_c,
                                    kh, kw, dilation)
        err = float(jnp.max(jnp.abs(out - ref)))
        assert bool(jnp.allclose(out, ref, rtol=1e-4, atol=1e-4)), err

    k0, k1, k2 = jax.random.split(key, 3)
    check(2, 16, 16, 16, 7, 7, 1, k0)   # module default mixer_kernel=(7,7)
    check(2, 16, 16, 16, 7, 7, 2, k1)   # dilated instance used inside CSMB
    check(2, 24, 20, 16, 7, 7, 2, k2)   # non-lane-aligned C, non-tile-aligned H
    print("KERNEL_OK")
</pallas_src>

<mosaic_0001>
module attributes {stable_mosaic.version = 11 : i64} {
  func.func @_asdw_kernel(%arg0: i32, %arg1: i32, %arg2: memref<8x22x32xf32, #tpu.memory_space<vmem>>, %arg3: memref<1x4x22x32xf32, #tpu.memory_space<vmem>>, %arg4: memref<1x4x22x32xf32, #tpu.memory_space<vmem>>, %arg5: memref<7x32xf32, #tpu.memory_space<vmem>>, %arg6: memref<1x32xf32, #tpu.memory_space<vmem>>, %arg7: memref<7x32xf32, #tpu.memory_space<vmem>>, %arg8: memref<1x32xf32, #tpu.memory_space<vmem>>, %arg9: memref<3x3x32xf32, #tpu.memory_space<vmem>>, %arg10: memref<1x32xf32, #tpu.memory_space<vmem>>, %arg11: memref<8x16x32xf32, #tpu.memory_space<vmem>>, %arg12: memref<16x16x32xf32, #tpu.memory_space<vmem>>, %arg13: memref<10x18x32xf32, #tpu.memory_space<vmem>>) attributes {dimension_semantics = [#tpu.dimension_semantics<parallel>, #tpu.dimension_semantics<parallel>], iteration_bounds = array<i64: 1, 2>, scalar_prefetch = 0 : i64, scratch_operands = 2 : i64, tpu.core_type = #tpu.core_type<tc>, window_params = [{transform_indices = @transform_0, window_bounds = array<i64: 8, 22, 32>}, {transform_indices = @transform_1, window_bounds = array<i64: 1, 4, 22, 32>}, {transform_indices = @transform_2, window_bounds = array<i64: 1, 4, 22, 32>}, {transform_indices = @transform_3, window_bounds = array<i64: 7, 32>}, {transform_indices = @transform_4, window_bounds = array<i64: 1, 32>}, {transform_indices = @transform_5, window_bounds = array<i64: 7, 32>}, {transform_indices = @transform_6, window_bounds = array<i64: 1, 32>}, {transform_indices = @transform_7, window_bounds = array<i64: 3, 3, 32>}, {transform_indices = @transform_8, window_bounds = array<i64: 1, 32>}, {transform_indices = @transform_9, window_bounds = array<i64: 8, 16, 32>}]} {
    %c8_i32 = arith.constant 8 : i32
    %0 = arith.muli %arg1, %c8_i32 : i32
    %c0 = arith.constant 0 : index
    %c0_0 = arith.constant 0 : index
    %1 = vector.load %arg5[%c0, %c0_0] : memref<7x32xf32, #tpu.memory_space<vmem>>, vector<7x32xf32>
    %c0_1 = arith.constant 0 : index
    %c0_2 = arith.constant 0 : index
    %2 = vector.load %arg7[%c0_1, %c0_2] : memref<7x32xf32, #tpu.memory_space<vmem>>, vector<7x32xf32>
    %c0_3 = arith.constant 0 : index
    %c0_4 = arith.constant 0 : index
    %c0_5 = arith.constant 0 : index
    %3 = vector.load %arg9[%c0_3, %c0_4, %c0_5] : memref<3x3x32xf32, #tpu.memory_space<vmem>>, vector<3x3x32xf32>
    %c0_6 = arith.constant 0 : index
    %c0_7 = arith.constant 0 : index
    %4 = vector.load %arg6[%c0_6, %c0_7] : memref<1x32xf32, #tpu.memory_space<vmem>>, vector<1x32xf32>
    %5 = vector.shape_cast %4 : vector<1x32xf32> to vector<1x1x32xf32>
    %c0_8 = arith.constant 0 : index
    %c0_9 = arith.constant 0 : index
    %6 = vector.load %arg8[%c0_8, %c0_9] : memref<1x32xf32, #tpu.memory_space<vmem>>, vector<1x32xf32>
    %7 = vector.shape_cast %6 : vector<1x32xf32> to vector<1x1x32xf32>
    %c0_10 = arith.constant 0 : index
    %c0_11 = arith.constant 0 : index
    %8 = vector.load %arg10[%c0_10, %c0_11] : memref<1x32xf32, #tpu.memory_space<vmem>>, vector<1x32xf32>
    %9 = vector.shape_cast %8 : vector<1x32xf32> to vector<1x1x32xf32>
    %c0_12 = arith.constant 0 : index
    %c0_13 = arith.constant 0 : index
    %c0_14 = arith.constant 0 : index
    %c0_15 = arith.constant 0 : index
    %10 = vector.load %arg3[%c0_12, %c0_13, %c0_14, %c0_15] : memref<1x4x22x32xf32, #tpu.memory_space<vmem>>, vector<1x4x22x32xf32>
    %11 = vector.shape_cast %10 : vector<1x4x22x32xf32> to vector<4x22x32xf32>
    %12 = vector.extract_strided_slice %11 {offsets = [0, 0, 0], sizes = [4, 16, 32], strides = [1, 1, 1]} : vector<4x22x32xf32> to vector<4x16x32xf32>
    %13 = vector.extract_strided_slice %1 {offsets = [0, 0], sizes = [1, 32], strides = [1, 1]} : vector<7x32xf32> to vector<1x32xf32>
    %14 = vector.shape_cast %13 : vector<1x32xf32> to vector<32xf32>
    %15 = vector.shape_cast %14 : vector<32xf32> to vector<1x1x32xf32>
    %16 = vector.broadcast %15 : vector<1x1x32xf32> to vector<4x16x32xf32>
    %17 = arith.mulf %12, %16 : vector<4x16x32xf32>
    %18 = vector.extract_strided_slice %11 {offsets = [0, 1, 0], sizes = [4, 16, 32], strides = [1, 1, 1]} : vector<4x22x32xf32> to vector<4x16x32xf32>
    %19 = vector.extract_strided_slice %1 {offsets = [1, 0], sizes = [1, 32], strides = [1, 1]} : vector<7x32xf32> to vector<1x32xf32>
    %20 = vector.shape_cast %19 : vector<1x32xf32> to vector<32xf32>
    %21 = vector.shape_cast %20 : vector<32xf32> to vector<1x1x32xf32>
    %22 = vector.broadcast %21 : vector<1x1x32xf32> to vector<4x16x32xf32>
    %23 = arith.mulf %18, %22 : vector<4x16x32xf32>
    %24 = arith.addf %17, %23 : vector<4x16x32xf32>
    %25 = vector.extract_strided_slice %11 {offsets = [0, 2, 0], sizes = [4, 16, 32], strides = [1, 1, 1]} : vector<4x22x32xf32> to vector<4x16x32xf32>
    %26 = vector.extract_strided_slice %1 {offsets = [2, 0], sizes = [1, 32], strides = [1, 1]} : vector<7x32xf32> to vector<1x32xf32>
    %27 = vector.shape_cast %26 : vector<1x32xf32> to vector<32xf32>
    %28 = vector.shape_cast %27 : vector<32xf32> to vector<1x1x32xf32>
    %29 = vector.broadcast %28 : vector<1x1x32xf32> to vector<4x16x32xf32>
    %30 = arith.mulf %25, %29 : vector<4x16x32xf32>
    %31 = arith.addf %24, %30 : vector<4x16x32xf32>
    %32 = vector.extract_strided_slice %11 {offsets = [0, 3, 0], sizes = [4, 16, 32], strides = [1, 1, 1]} : vector<4x22x32xf32> to vector<4x16x32xf32>
    %33 = vector.extract_strided_slice %1 {offsets = [3, 0], sizes = [1, 32], strides = [1, 1]} : vector<7x32xf32> to vector<1x32xf32>
    %34 = vector.shape_cast %33 : vector<1x32xf32> to vector<32xf32>
    %35 = vector.shape_cast %34 : vector<32xf32> to vector<1x1x32xf32>
    %36 = vector.broadcast %35 : vector<1x1x32xf32> to vector<4x16x32xf32>
    %37 = arith.mulf %32, %36 : vector<4x16x32xf32>
    %38 = arith.addf %31, %37 : vector<4x16x32xf32>
    %39 = vector.extract_strided_slice %11 {offsets = [0, 4, 0], sizes = [4, 16, 32], strides = [1, 1, 1]} : vector<4x22x32xf32> to vector<4x16x32xf32>
    %40 = vector.extract_strided_slice %1 {offsets = [4, 0], sizes = [1, 32], strides = [1, 1]} : vector<7x32xf32> to vector<1x32xf32>
    %41 = vector.shape_cast %40 : vector<1x32xf32> to vector<32xf32>
    %42 = vector.shape_cast %41 : vector<32xf32> to vector<1x1x32xf32>
    %43 = vector.broadcast %42 : vector<1x1x32xf32> to vector<4x16x32xf32>
    %44 = arith.mulf %39, %43 : vector<4x16x32xf32>
    %45 = arith.addf %38, %44 : vector<4x16x32xf32>
    %46 = vector.extract_strided_slice %11 {offsets = [0, 5, 0], sizes = [4, 16, 32], strides = [1, 1, 1]} : vector<4x22x32xf32> to vector<4x16x32xf32>
    %47 = vector.extract_strided_slice %1 {offsets = [5, 0], sizes = [1, 32], strides = [1, 1]} : vector<7x32xf32> to vector<1x32xf32>
    %48 = vector.shape_cast %47 : vector<1x32xf32> to vector<32xf32>
    %49 = vector.shape_cast %48 : vector<32xf32> to vector<1x1x32xf32>
    %50 = vector.broadcast %49 : vector<1x1x32xf32> to vector<4x16x32xf32>
    %51 = arith.mulf %46, %50 : vector<4x16x32xf32>
    %52 = arith.addf %45, %51 : vector<4x16x32xf32>
    %53 = vector.extract_strided_slice %11 {offsets = [0, 6, 0], sizes = [4, 16, 32], strides = [1, 1, 1]} : vector<4x22x32xf32> to vector<4x16x32xf32>
    %54 = vector.extract_strided_slice %1 {offsets = [6, 0], sizes = [1, 32], strides = [1, 1]} : vector<7x32xf32> to vector<1x32xf32>
    %55 = vector.shape_cast %54 : vector<1x32xf32> to vector<32xf32>
    %56 = vector.shape_cast %55 : vector<32xf32> to vector<1x1x32xf32>
    %57 = vector.broadcast %56 : vector<1x1x32xf32> to vector<4x16x32xf32>
    %58 = arith.mulf %53, %57 : vector<4x16x32xf32>
    %59 = arith.addf %52, %58 : vector<4x16x32xf32>
    %c4_i32 = arith.constant 4 : i32
    %60 = arith.subi %0, %c4_i32 : i32
    %c0_i32 = arith.constant 0 : i32
    %61 = arith.addi %60, %c0_i32 : i32
    %62 = tpu.iota {dimensions = array<i32: 0>} : vector<4x1x32xi32>
    %63 = vector.broadcast %61 : i32 to vector<4x1x32xi32>
    %64 = arith.addi %63, %62 : vector<4x1x32xi32>
    %c0_i32_16 = arith.constant 0 : i32
    %65 = vector.broadcast %c0_i32_16 : i32 to vector<4x1x32xi32>
    %66 = arith.cmpi sge, %64, %65 : vector<4x1x32xi32>
    %c16_i32 = arith.constant 16 : i32
    %67 = vector.broadcast %c16_i32 : i32 to vector<4x1x32xi32>
    %68 = arith.cmpi slt, %64, %67 : vector<4x1x32xi32>
    %69 = arith.andi %66, %68 : vector<4x1x32xi1>
    %70 = arith.extui %69 : vector<4x1x32xi1> to vector<4x1x32xi32>
    %71 = arith.sitofp %70 : vector<4x1x32xi32> to vector<4x1x32xf32>
    %72 = vector.broadcast %5 : vector<1x1x32xf32> to vector<4x16x32xf32>
    %73 = arith.addf %59, %72 : vector<4x16x32xf32>
    %74 = vector.broadcast %71 : vector<4x1x32xf32> to vector<4x16x32xf32>
    %75 = arith.mulf %73, %74 : vector<4x16x32xf32>
    %c0_17 = arith.constant 0 : index
    %c0_18 = arith.constant 0 : index
    %c0_19 = arith.constant 0 : index
    %76 = vector.load %arg12[%c0_17, %c0_18, %c0_19] : memref<16x16x32xf32, #tpu.memory_space<vmem>>, vector<4x16x32xf32>
    tpu.vector_store %arg12[%c0_17, %c0_18, %c0_19], %75 {strides = array<i32>} : memref<16x16x32xf32, #tpu.memory_space<vmem>>, vector<4x16x32xf32>,
    %c0_20 = arith.constant 0 : index
    %c0_21 = arith.constant 0 : index
    %c0_22 = arith.constant 0 : index
    %77 = vector.load %arg2[%c0_20, %c0_21, %c0_22] : memref<8x22x32xf32, #tpu.memory_space<vmem>>, vector<8x22x32xf32>
    %78 = vector.extract_strided_slice %77 {offsets = [0, 0, 0], sizes = [8, 16, 32], strides = [1, 1, 1]} : vector<8x22x32xf32> to vector<8x16x32xf32>
    %79 = vector.extract_strided_slice %1 {offsets = [0, 0], sizes = [1, 32], strides = [1, 1]} : vector<7x32xf32> to vector<1x32xf32>
    %80 = vector.shape_cast %79 : vector<1x32xf32> to vector<32xf32>
    %81 = vector.shape_cast %80 : vector<32xf32> to vector<1x1x32xf32>
    %82 = vector.broadcast %81 : vector<1x1x32xf32> to vector<8x16x32xf32>
    %83 = arith.mulf %78, %82 : vector<8x16x32xf32>
    %84 = vector.extract_strided_slice %77 {offsets = [0, 1, 0], sizes = [8, 16, 32], strides = [1, 1, 1]} : vector<8x22x32xf32> to vector<8x16x32xf32>
    %85 = vector.extract_strided_slice %1 {offsets = [1, 0], sizes = [1, 32], strides = [1, 1]} : vector<7x32xf32> to vector<1x32xf32>
    %86 = vector.shape_cast %85 : vector<1x32xf32> to vector<32xf32>
    %87 = vector.shape_cast %86 : vector<32xf32> to vector<1x1x32xf32>
    %88 = vector.broadcast %87 : vector<1x1x32xf32> to vector<8x16x32xf32>
    %89 = arith.mulf %84, %88 : vector<8x16x32xf32>
    %90 = arith.addf %83, %89 : vector<8x16x32xf32>
    %91 = vector.extract_strided_slice %77 {offsets = [0, 2, 0], sizes = [8, 16, 32], strides = [1, 1, 1]} : vector<8x22x32xf32> to vector<8x16x32xf32>
    %92 = vector.extract_strided_slice %1 {offsets = [2, 0], sizes = [1, 32], strides = [1, 1]} : vector<7x32xf32> to vector<1x32xf32>
    %93 = vector.shape_cast %92 : vector<1x32xf32> to vector<32xf32>
    %94 = vector.shape_cast %93 : vector<32xf32> to vector<1x1x32xf32>
    %95 = vector.broadcast %94 : vector<1x1x32xf32> to vector<8x16x32xf32>
    %96 = arith.mulf %91, %95 : vector<8x16x32xf32>
    %97 = arith.addf %90, %96 : vector<8x16x32xf32>
    %98 = vector.extract_strided_slice %77 {offsets = [0, 3, 0], sizes = [8, 16, 32], strides = [1, 1, 1]} : vector<8x22x32xf32> to vector<8x16x32xf32>
    %99 = vector.extract_strided_slice %1 {offsets = [3, 0], sizes = [1, 32], strides = [1, 1]} : vector<7x32xf32> to vector<1x32xf32>
    %100 = vector.shape_cast %99 : vector<1x32xf32> to vector<32xf32>
    %101 = vector.shape_cast %100 : vector<32xf32> to vector<1x1x32xf32>
    %102 = vector.broadcast %101 : vector<1x1x32xf32> to vector<8x16x32xf32>
    %103 = arith.mulf %98, %102 : vector<8x16x32xf32>
    %104 = arith.addf %97, %103 : vector<8x16x32xf32>
    %105 = vector.extract_strided_slice %77 {offsets = [0, 4, 0], sizes = [8, 16, 32], strides = [1, 1, 1]} : vector<8x22x32xf32> to vector<8x16x32xf32>
    %106 = vector.extract_strided_slice %1 {offsets = [4, 0], sizes = [1, 32], strides = [1, 1]} : vector<7x32xf32> to vector<1x32xf32>
    %107 = vector.shape_cast %106 : vector<1x32xf32> to vector<32xf32>
    %108 = vector.shape_cast %107 : vector<32xf32> to vector<1x1x32xf32>
    %109 = vector.broadcast %108 : vector<1x1x32xf32> to vector<8x16x32xf32>
    %110 = arith.mulf %105, %109 : vector<8x16x32xf32>
    %111 = arith.addf %104, %110 : vector<8x16x32xf32>
    %112 = vector.extract_strided_slice %77 {offsets = [0, 5, 0], sizes = [8, 16, 32], strides = [1, 1, 1]} : vector<8x22x32xf32> to vector<8x16x32xf32>
    %113 = vector.extract_strided_slice %1 {offsets = [5, 0], sizes = [1, 32], strides = [1, 1]} : vector<7x32xf32> to vector<1x32xf32>
    %114 = vector.shape_cast %113 : vector<1x32xf32> to vector<32xf32>
    %115 = vector.shape_cast %114 : vector<32xf32> to vector<1x1x32xf32>
    %116 = vector.broadcast %115 : vector<1x1x32xf32> to vector<8x16x32xf32>
    %117 = arith.mulf %112, %116 : vector<8x16x32xf32>
    %118 = arith.addf %111, %117 : vector<8x16x32xf32>
    %119 = vector.extract_strided_slice %77 {offsets = [0, 6, 0], sizes = [8, 16, 32], strides = [1, 1, 1]} : vector<8x22x32xf32> to vector<8x16x32xf32>
    %120 = vector.extract_strided_slice %1 {offsets = [6, 0], sizes = [1, 32], strides = [1, 1]} : vector<7x32xf32> to vector<1x32xf32>
    %121 = vector.shape_cast %120 : vector<1x32xf32> to vector<32xf32>
    %122 = vector.shape_cast %121 : vector<32xf32> to vector<1x1x32xf32>
    %123 = vector.broadcast %122 : vector<1x1x32xf32> to vector<8x16x32xf32>
    %124 = arith.mulf %119, %123 : vector<8x16x32xf32>
    %125 = arith.addf %118, %124 : vector<8x16x32xf32>
    %c4_i32_23 = arith.constant 4 : i32
    %126 = arith.subi %0, %c4_i32_23 : i32
    %c4_i32_24 = arith.constant 4 : i32
    %127 = arith.addi %126, %c4_i32_24 : i32
    %128 = tpu.iota {dimensions = array<i32: 0>} : vector<8x1x32xi32>
    %129 = vector.broadcast %127 : i32 to vector<8x1x32xi32>
    %130 = arith.addi %129, %128 : vector<8x1x32xi32>
    %c0_i32_25 = arith.constant 0 : i32
    %131 = vector.broadcast %c0_i32_25 : i32 to vector<8x1x32xi32>
    %132 = arith.cmpi sge, %130, %131 : vector<8x1x32xi32>
    %c16_i32_26 = arith.constant 16 : i32
    %133 = vector.broadcast %c16_i32_26 : i32 to vector<8x1x32xi32>
    %134 = arith.cmpi slt, %130, %133 : vector<8x1x32xi32>
    %135 = arith.andi %132, %134 : vector<8x1x32xi1>
    %136 = arith.extui %135 : vector<8x1x32xi1> to vector<8x1x32xi32>
    %137 = arith.sitofp %136 : vector<8x1x32xi32> to vector<8x1x32xf32>
    %138 = vector.broadcast %5 : vector<1x1x32xf32> to vector<8x16x32xf32>
    %139 = arith.addf %125, %138 : vector<8x16x32xf32>
    %140 = vector.broadcast %137 : vector<8x1x32xf32> to vector<8x16x32xf32>
    %141 = arith.mulf %139, %140 : vector<8x16x32xf32>
    %c4 = arith.constant 4 : index
    %c0_27 = arith.constant 0 : index
    %c0_28 = arith.constant 0 : index
    %142 = vector.load %arg12[%c4, %c0_27, %c0_28] : memref<16x16x32xf32, #tpu.memory_space<vmem>>, vector<8x16x32xf32>
    tpu.vector_store %arg12[%c4, %c0_27, %c0_28], %141 {strides = array<i32>} : memref<16x16x32xf32, #tpu.memory_space<vmem>>, vector<8x16x32xf32>,
    %c0_29 = arith.constant 0 : index
    %c0_30 = arith.constant 0 : index
    %c0_31 = arith.constant 0 : index
    %c0_32 = arith.constant 0 : index
    %143 = vector.load %arg4[%c0_29, %c0_30, %c0_31, %c0_32] : memref<1x4x22x32xf32, #tpu.memory_space<vmem>>, vector<1x4x22x32xf32>
    %144 = vector.shape_cast %143 : vector<1x4x22x32xf32> to vector<4x22x32xf32>
    %145 = vector.extract_strided_slice %144 {offsets = [0, 0, 0], sizes = [4, 16, 32], strides = [1, 1, 1]} : vector<4x22x32xf32> to vector<4x16x32xf32>
    %146 = vector.extract_strided_slice %1 {offsets = [0, 0], sizes = [1, 32], strides = [1, 1]} : vector<7x32xf32> to vector<1x32xf32>
    %147 = vector.shape_cast %146 : vector<1x32xf32> to vector<32xf32>
    %148 = vector.shape_cast %147 : vector<32xf32> to vector<1x1x32xf32>
    %149 = vector.broadcast %148 : vector<1x1x32xf32> to vector<4x16x32xf32>
    %150 = arith.mulf %145, %149 : vector<4x16x32xf32>
    %151 = vector.extract_strided_slice %144 {offsets = [0, 1, 0], sizes = [4, 16, 32], strides = [1, 1, 1]} : vector<4x22x32xf32> to vector<4x16x32xf32>
    %152 = vector.extract_strided_slice %1 {offsets = [1, 0], sizes = [1, 32], strides = [1, 1]} : vector<7x32xf32> to vector<1x32xf32>
    %153 = vector.shape_cast %152 : vector<1x32xf32> to vector<32xf32>
    %154 = vector.shape_cast %153 : vector<32xf32> to vector<1x1x32xf32>
    %155 = vector.broadcast %154 : vector<1x1x32xf32> to vector<4x16x32xf32>
    %156 = arith.mulf %151, %155 : vector<4x16x32xf32>
    %157 = arith.addf %150, %156 : vector<4x16x32xf32>
    %158 = vector.extract_strided_slice %144 {offsets = [0, 2, 0], sizes = [4, 16, 32], strides = [1, 1, 1]} : vector<4x22x32xf32> to vector<4x16x32xf32>
    %159 = vector.extract_strided_slice %1 {offsets = [2, 0], sizes = [1, 32], strides = [1, 1]} : vector<7x32xf32> to vector<1x32xf32>
    %160 = vector.shape_cast %159 : vector<1x32xf32> to vector<32xf32>
    %161 = vector.shape_cast %160 : vector<32xf32> to vector<1x1x32xf32>
    %162 = vector.broadcast %161 : vector<1x1x32xf32> to vector<4x16x32xf32>
    %163 = arith.mulf %158, %162 : vector<4x16x32xf32>
    %164 = arith.addf %157, %163 : vector<4x16x32xf32>
    %165 = vector.extract_strided_slice %144 {offsets = [0, 3, 0], sizes = [4, 16, 32], strides = [1, 1, 1]} : vector<4x22x32xf32> to vector<4x16x32xf32>
    %166 = vector.extract_strided_slice %1 {offsets = [3, 0], sizes = [1, 32], strides = [1, 1]} : vector<7x32xf32> to vector<1x32xf32>
    %167 = vector.shape_cast %166 : vector<1x32xf32> to vector<32xf32>
    %168 = vector.shape_cast %167 : vector<32xf32> to vector<1x1x32xf32>
    %169 = vector.broadcast %168 : vector<1x1x32xf32> to vector<4x16x32xf32>
    %170 = arith.mulf %165, %169 : vector<4x16x32xf32>
    %171 = arith.addf %164, %170 : vector<4x16x32xf32>
    %172 = vector.extract_strided_slice %144 {offsets = [0, 4, 0], sizes = [4, 16, 32], strides = [1, 1, 1]} : vector<4x22x32xf32> to vector<4x16x32xf32>
    %173 = vector.extract_strided_slice %1 {offsets = [4, 0], sizes = [1, 32], strides = [1, 1]} : vector<7x32xf32> to vector<1x32xf32>
    %174 = vector.shape_cast %173 : vector<1x32xf32> to vector<32xf32>
    %175 = vector.shape_cast %174 : vector<32xf32> to vector<1x1x32xf32>
    %176 = vector.broadcast %175 : vector<1x1x32xf32> to vector<4x16x32xf32>
    %177 = arith.mulf %172, %176 : vector<4x16x32xf32>
    %178 = arith.addf %171, %177 : vector<4x16x32xf32>
    %179 = vector.extract_strided_slice %144 {offsets = [0, 5, 0], sizes = [4, 16, 32], strides = [1, 1, 1]} : vector<4x22x32xf32> to vector<4x16x32xf32>
    %180 = vector.extract_strided_slice %1 {offsets = [5, 0], sizes = [1, 32], strides = [1, 1]} : vector<7x32xf32> to vector<1x32xf32>
    %181 = vector.shape_cast %180 : vector<1x32xf32> to vector<32xf32>
    %182 = vector.shape_cast %181 : vector<32xf32> to vector<1x1x32xf32>
    %183 = vector.broadcast %182 : vector<1x1x32xf32> to vector<4x16x32xf32>
    %184 = arith.mulf %179, %183 : vector<4x16x32xf32>
    %185 = arith.addf %178, %184 : vector<4x16x32xf32>
    %186 = vector.extract_strided_slice %144 {offsets = [0, 6, 0], sizes = [4, 16, 32], strides = [1, 1, 1]} : vector<4x22x32xf32> to vector<4x16x32xf32>
    %187 = vector.extract_strided_slice %1 {offsets = [6, 0], sizes = [1, 32], strides = [1, 1]} : vector<7x32xf32> to vector<1x32xf32>
    %188 = vector.shape_cast %187 : vector<1x32xf32> to vector<32xf32>
    %189 = vector.shape_cast %188 : vector<32xf32> to vector<1x1x32xf32>
    %190 = vector.broadcast %189 : vector<1x1x32xf32> to vector<4x16x32xf32>
    %191 = arith.mulf %186, %190 : vector<4x16x32xf32>
    %192 = arith.addf %185, %191 : vector<4x16x32xf32>
    %c4_i32_33 = arith.constant 4 : i32
    %193 = arith.subi %0, %c4_i32_33 : i32
    %c12_i32 = arith.constant 12 : i32
    %194 = arith.addi %193, %c12_i32 : i32
    %195 = tpu.iota {dimensions = array<i32: 0>} : vector<4x1x32xi32>
    %196 = vector.broadcast %194 : i32 to vector<4x1x32xi32>
    %197 = arith.addi %196, %195 : vector<4x1x32xi32>
    %c0_i32_34 = arith.constant 0 : i32
    %198 = vector.broadcast %c0_i32_34 : i32 to vector<4x1x32xi32>
    %199 = arith.cmpi sge, %197, %198 : vector<4x1x32xi32>
    %c16_i32_35 = arith.constant 16 : i32
    %200 = vector.broadcast %c16_i32_35 : i32 to vector<4x1x32xi32>
    %201 = arith.cmpi slt, %197, %200 : vector<4x1x32xi32>
    %202 = arith.andi %199, %201 : vector<4x1x32xi1>
    %203 = arith.extui %202 : vector<4x1x32xi1> to vector<4x1x32xi32>
    %204 = arith.sitofp %203 : vector<4x1x32xi32> to vector<4x1x32xf32>
    %205 = vector.broadcast %5 : vector<1x1x32xf32> to vector<4x16x32xf32>
    %206 = arith.addf %192, %205 : vector<4x16x32xf32>
    %207 = vector.broadcast %204 : vector<4x1x32xf32> to vector<4x16x32xf32>
    %208 = arith.mulf %206, %207 : vector<4x16x32xf32>
    %c12 = arith.constant 12 : index
    %c0_36 = arith.constant 0 : index
    %c0_37 = arith.constant 0 : index
    %209 = vector.load %arg12[%c12, %c0_36, %c0_37] : memref<16x16x32xf32, #tpu.memory_space<vmem>>, vector<4x16x32xf32>
    tpu.vector_store %arg12[%c12, %c0_36, %c0_37], %208 {strides = array<i32>} : memref<16x16x32xf32, #tpu.memory_space<vmem>>, vector<4x16x32xf32>,
    %c0_38 = arith.constant 0 : index
    %c0_39 = arith.constant 0 : index
    %c0_40 = arith.constant 0 : index
    %210 = vector.load %arg12[%c0_38, %c0_39, %c0_40] : memref<16x16x32xf32, #tpu.memory_space<vmem>>, vector<8x16x32xf32>
    %211 = vector.extract_strided_slice %2 {offsets = [0, 0], sizes = [1, 32], strides = [1, 1]} : vector<7x32xf32> to vector<1x32xf32>
    %212 = vector.shape_cast %211 : vector<1x32xf32> to vector<32xf32>
    %213 = vector.shape_cast %212 : vector<32xf32> to vector<1x1x32xf32>
    %214 = vector.broadcast %213 : vector<1x1x32xf32> to vector<8x16x32xf32>
    %215 = arith.mulf %210, %214 : vector<8x16x32xf32>
    %c1 = arith.constant 1 : index
    %c0_41 = arith.constant 0 : index
    %c0_42 = arith.constant 0 : index
    %216 = vector.load %arg12[%c1, %c0_41, %c0_42] : memref<16x16x32xf32, #tpu.memory_space<vmem>>, vector<8x16x32xf32>
    %217 = vector.extract_strided_slice %2 {offsets = [1, 0], sizes = [1, 32], strides = [1, 1]} : vector<7x32xf32> to vector<1x32xf32>
    %218 = vector.shape_cast %217 : vector<1x32xf32> to vector<32xf32>
    %219 = vector.shape_cast %218 : vector<32xf32> to vector<1x1x32xf32>
    %220 = vector.broadcast %219 : vector<1x1x32xf32> to vector<8x16x32xf32>
    %221 = arith.mulf %216, %220 : vector<8x16x32xf32>
    %222 = arith.addf %215, %221 : vector<8x16x32xf32>
    %c2 = arith.constant 2 : index
    %c0_43 = arith.constant 0 : index
    %c0_44 = arith.constant 0 : index
    %223 = vector.load %arg12[%c2, %c0_43, %c0_44] : memref<16x16x32xf32, #tpu.memory_space<vmem>>, vector<8x16x32xf32>
    %224 = vector.extract_strided_slice %2 {offsets = [2, 0], sizes = [1, 32], strides = [1, 1]} : vector<7x32xf32> to vector<1x32xf32>
    %225 = vector.shape_cast %224 : vector<1x32xf32> to vector<32xf32>
    %226 = vector.shape_cast %225 : vector<32xf32> to vector<1x1x32xf32>
    %227 = vector.broadcast %226 : vector<1x1x32xf32> to vector<8x16x32xf32>
    %228 = arith.mulf %223, %227 : vector<8x16x32xf32>
    %229 = arith.addf %222, %228 : vector<8x16x32xf32>
    %c3 = arith.constant 3 : index
    %c0_45 = arith.constant 0 : index
    %c0_46 = arith.constant 0 : index
    %230 = vector.load %arg12[%c3, %c0_45, %c0_46] : memref<16x16x32xf32, #tpu.memory_space<vmem>>, vector<8x16x32xf32>
    %231 = vector.extract_strided_slice %2 {offsets = [3, 0], sizes = [1, 32], strides = [1, 1]} : vector<7x32xf32> to vector<1x32xf32>
    %232 = vector.shape_cast %231 : vector<1x32xf32> to vector<32xf32>
    %233 = vector.shape_cast %232 : vector<32xf32> to vector<1x1x32xf32>
    %234 = vector.broadcast %233 : vector<1x1x32xf32> to vector<8x16x32xf32>
    %235 = arith.mulf %230, %234 : vector<8x16x32xf32>
    %236 = arith.addf %229, %235 : vector<8x16x32xf32>
    %c4_47 = arith.constant 4 : index
    %c0_48 = arith.constant 0 : index
    %c0_49 = arith.constant 0 : index
    %237 = vector.load %arg12[%c4_47, %c0_48, %c0_49] : memref<16x16x32xf32, #tpu.memory_space<vmem>>, vector<8x16x32xf32>
    %238 = vector.extract_strided_slice %2 {offsets = [4, 0], sizes = [1, 32], strides = [1, 1]} : vector<7x32xf32> to vector<1x32xf32>
    %239 = vector.shape_cast %238 : vector<1x32xf32> to vector<32xf32>
    %240 = vector.shape_cast %239 : vector<32xf32> to vector<1x1x32xf32>
    %241 = vector.broadcast %240 : vector<1x1x32xf32> to vector<8x16x32xf32>
    %242 = arith.mulf %237, %241 : vector<8x16x32xf32>
    %243 = arith.addf %236, %242 : vector<8x16x32xf32>
    %c5 = arith.constant 5 : index
    %c0_50 = arith.constant 0 : index
    %c0_51 = arith.constant 0 : index
    %244 = vector.load %arg12[%c5, %c0_50, %c0_51] : memref<16x16x32xf32, #tpu.memory_space<vmem>>, vector<8x16x32xf32>
    %245 = vector.extract_strided_slice %2 {offsets = [5, 0], sizes = [1, 32], strides = [1, 1]} : vector<7x32xf32> to vector<1x32xf32>
    %246 = vector.shape_cast %245 : vector<1x32xf32> to vector<32xf32>
    %247 = vector.shape_cast %246 : vector<32xf32> to vector<1x1x32xf32>
    %248 = vector.broadcast %247 : vector<1x1x32xf32> to vector<8x16x32xf32>
    %249 = arith.mulf %244, %248 : vector<8x16x32xf32>
    %250 = arith.addf %243, %249 : vector<8x16x32xf32>
    %c6 = arith.constant 6 : index
    %c0_52 = arith.constant 0 : index
    %c0_53 = arith.constant 0 : index
    %251 = vector.load %arg12[%c6, %c0_52, %c0_53] : memref<16x16x32xf32, #tpu.memory_space<vmem>>, vector<8x16x32xf32>
    %252 = vector.extract_strided_slice %2 {offsets = [6, 0], sizes = [1, 32], strides = [1, 1]} : vector<7x32xf32> to vector<1x32xf32>
    %253 = vector.shape_cast %252 : vector<1x32xf32> to vector<32xf32>
    %254 = vector.shape_cast %253 : vector<32xf32> to vector<1x1x32xf32>
    %255 = vector.broadcast %254 : vector<1x1x32xf32> to vector<8x16x32xf32>
    %256 = arith.mulf %251, %255 : vector<8x16x32xf32>
    %257 = arith.addf %250, %256 : vector<8x16x32xf32>
    %c1_i32 = arith.constant 1 : i32
    %258 = arith.subi %0, %c1_i32 : i32
    %c0_i32_54 = arith.constant 0 : i32
    %259 = arith.addi %258, %c0_i32_54 : i32
    %260 = tpu.iota {dimensions = array<i32: 0>} : vector<8x1x32xi32>
    %261 = vector.broadcast %259 : i32 to vector<8x1x32xi32>
    %262 = arith.addi %261, %260 : vector<8x1x32xi32>
    %c0_i32_55 = arith.constant 0 : i32
    %263 = vector.broadcast %c0_i32_55 : i32 to vector<8x1x32xi32>
    %264 = arith.cmpi sge, %262, %263 : vector<8x1x32xi32>
    %c16_i32_56 = arith.constant 16 : i32
    %265 = vector.broadcast %c16_i32_56 : i32 to vector<8x1x32xi32>
    %266 = arith.cmpi slt, %262, %265 : vector<8x1x32xi32>
    %267 = arith.andi %264, %266 : vector<8x1x32xi1>
    %268 = arith.extui %267 : vector<8x1x32xi1> to vector<8x1x32xi32>
    %269 = arith.sitofp %268 : vector<8x1x32xi32> to vector<8x1x32xf32>
    %270 = vector.broadcast %7 : vector<1x1x32xf32> to vector<8x16x32xf32>
    %271 = arith.addf %257, %270 : vector<8x16x32xf32>
    %272 = vector.broadcast %269 : vector<8x1x32xf32> to vector<8x16x32xf32>
    %273 = arith.mulf %271, %272 : vector<8x16x32xf32>
    %c0_57 = arith.constant 0 : index
    %c1_58 = arith.constant 1 : index
    %c0_59 = arith.constant 0 : index
    %274 = vector.load %arg13[%c0_57, %c1_58, %c0_59] : memref<10x18x32xf32, #tpu.memory_space<vmem>>, vector<8x16x32xf32>
    tpu.vector_store %arg13[%c0_57, %c1_58, %c0_59], %273 {strides = array<i32>} : memref<10x18x32xf32, #tpu.memory_space<vmem>>, vector<8x16x32xf32>,
    %c8 = arith.constant 8 : index
    %c0_60 = arith.constant 0 : index
    %c0_61 = arith.constant 0 : index
    %275 = vector.load %arg12[%c8, %c0_60, %c0_61] : memref<16x16x32xf32, #tpu.memory_space<vmem>>, vector<2x16x32xf32>
    %276 = vector.extract_strided_slice %2 {offsets = [0, 0], sizes = [1, 32], strides = [1, 1]} : vector<7x32xf32> to vector<1x32xf32>
    %277 = vector.shape_cast %276 : vector<1x32xf32> to vector<32xf32>
    %278 = vector.shape_cast %277 : vector<32xf32> to vector<1x1x32xf32>
    %279 = vector.broadcast %278 : vector<1x1x32xf32> to vector<2x16x32xf32>
    %280 = arith.mulf %275, %279 : vector<2x16x32xf32>
    %c9 = arith.constant 9 : index
    %c0_62 = arith.constant 0 : index
    %c0_63 = arith.constant 0 : index
    %281 = vector.load %arg12[%c9, %c0_62, %c0_63] : memref<16x16x32xf32, #tpu.memory_space<vmem>>, vector<2x16x32xf32>
    %282 = vector.extract_strided_slice %2 {offsets = [1, 0], sizes = [1, 32], strides = [1, 1]} : vector<7x32xf32> to vector<1x32xf32>
    %283 = vector.shape_cast %282 : vector<1x32xf32> to vector<32xf32>
    %284 = vector.shape_cast %283 : vector<32xf32> to vector<1x1x32xf32>
    %285 = vector.broadcast %284 : vector<1x1x32xf32> to vector<2x16x32xf32>
    %286 = arith.mulf %281, %285 : vector<2x16x32xf32>
    %287 = arith.addf %280, %286 : vector<2x16x32xf32>
    %c10 = arith.constant 10 : index
    %c0_64 = arith.constant 0 : index
    %c0_65 = arith.constant 0 : index
    %288 = vector.load %arg12[%c10, %c0_64, %c0_65] : memref<16x16x32xf32, #tpu.memory_space<vmem>>, vector<2x16x32xf32>
    %289 = vector.extract_strided_slice %2 {offsets = [2, 0], sizes = [1, 32], strides = [1, 1]} : vector<7x32xf32> to vector<1x32xf32>
    %290 = vector.shape_cast %289 : vector<1x32xf32> to vector<32xf32>
    %291 = vector.shape_cast %290 : vector<32xf32> to vector<1x1x32xf32>
    %292 = vector.broadcast %291 : vector<1x1x32xf32> to vector<2x16x32xf32>
    %293 = arith.mulf %288, %292 : vector<2x16x32xf32>
    %294 = arith.addf %287, %293 : vector<2x16x32xf32>
    %c11 = arith.constant 11 : index
    %c0_66 = arith.constant 0 : index
    %c0_67 = arith.constant 0 : index
    %295 = vector.load %arg12[%c11, %c0_66, %c0_67] : memref<16x16x32xf32, #tpu.memory_space<vmem>>, vector<2x16x32xf32>
    %296 = vector.extract_strided_slice %2 {offsets = [3, 0], sizes = [1, 32], strides = [1, 1]} : vector<7x32xf32> to vector<1x32xf32>
    %297 = vector.shape_cast %296 : vector<1x32xf32> to vector<32xf32>
    %298 = vector.shape_cast %297 : vector<32xf32> to vector<1x1x32xf32>
    %299 = vector.broadcast %298 : vector<1x1x32xf32> to vector<2x16x32xf32>
    %300 = arith.mulf %295, %299 : vector<2x16x32xf32>
    %301 = arith.addf %294, %300 : vector<2x16x32xf32>
    %c12_68 = arith.constant 12 : index
    %c0_69 = arith.constant 0 : index
    %c0_70 = arith.constant 0 : index
    %302 = vector.load %arg12[%c12_68, %c0_69, %c0_70] : memref<16x16x32xf32, #tpu.memory_space<vmem>>, vector<2x16x32xf32>
    %303 = vector.extract_strided_slice %2 {offsets = [4, 0], sizes = [1, 32], strides = [1, 1]} : vector<7x32xf32> to vector<1x32xf32>
    %304 = vector.shape_cast %303 : vector<1x32xf32> to vector<32xf32>
    %305 = vector.shape_cast %304 : vector<32xf32> to vector<1x1x32xf32>
    %306 = vector.broadcast %305 : vector<1x1x32xf32> to vector<2x16x32xf32>
    %307 = arith.mulf %302, %306 : vector<2x16x32xf32>
    %308 = arith.addf %301, %307 : vector<2x16x32xf32>
    %c13 = arith.constant 13 : index
    %c0_71 = arith.constant 0 : index
    %c0_72 = arith.constant 0 : index
    %309 = vector.load %arg12[%c13, %c0_71, %c0_72] : memref<16x16x32xf32, #tpu.memory_space<vmem>>, vector<2x16x32xf32>
    %310 = vector.extract_strided_slice %2 {offsets = [5, 0], sizes = [1, 32], strides = [1, 1]} : vector<7x32xf32> to vector<1x32xf32>
    %311 = vector.shape_cast %310 : vector<1x32xf32> to vector<32xf32>
    %312 = vector.shape_cast %311 : vector<32xf32> to vector<1x1x32xf32>
    %313 = vector.broadcast %312 : vector<1x1x32xf32> to vector<2x16x32xf32>
    %314 = arith.mulf %309, %313 : vector<2x16x32xf32>
    %315 = arith.addf %308, %314 : vector<2x16x32xf32>
    %c14 = arith.constant 14 : index
    %c0_73 = arith.constant 0 : index
    %c0_74 = arith.constant 0 : index
    %316 = vector.load %arg12[%c14, %c0_73, %c0_74] : memref<16x16x32xf32, #tpu.memory_space<vmem>>, vector<2x16x32xf32>
    %317 = vector.extract_strided_slice %2 {offsets = [6, 0], sizes = [1, 32], strides = [1, 1]} : vector<7x32xf32> to vector<1x32xf32>
    %318 = vector.shape_cast %317 : vector<1x32xf32> to vector<32xf32>
    %319 = vector.shape_cast %318 : vector<32xf32> to vector<1x1x32xf32>
    %320 = vector.broadcast %319 : vector<1x1x32xf32> to vector<2x16x32xf32>
    %321 = arith.mulf %316, %320 : vector<2x16x32xf32>
    %322 = arith.addf %315, %321 : vector<2x16x32xf32>
    %c1_i32_75 = arith.constant 1 : i32
    %323 = arith.subi %0, %c1_i32_75 : i32
    %c8_i32_76 = arith.constant 8 : i32
    %324 = arith.addi %323, %c8_i32_76 : i32
    %325 = tpu.iota {dimensions = array<i32: 0>} : vector<2x1x32xi32>
    %326 = vector.broadcast %324 : i32 to vector<2x1x32xi32>
    %327 = arith.addi %326, %325 : vector<2x1x32xi32>
    %c0_i32_77 = arith.constant 0 : i32
    %328 = vector.broadcast %c0_i32_77 : i32 to vector<2x1x32xi32>
    %329 = arith.cmpi sge, %327, %328 : vector<2x1x32xi32>
    %c16_i32_78 = arith.constant 16 : i32
    %330 = vector.broadcast %c16_i32_78 : i32 to vector<2x1x32xi32>
    %331 = arith.cmpi slt, %327, %330 : vector<2x1x32xi32>
    %332 = arith.andi %329, %331 : vector<2x1x32xi1>
    %333 = arith.extui %332 : vector<2x1x32xi1> to vector<2x1x32xi32>
    %334 = arith.sitofp %333 : vector<2x1x32xi32> to vector<2x1x32xf32>
    %335 = vector.broadcast %7 : vector<1x1x32xf32> to vector<2x16x32xf32>
    %336 = arith.addf %322, %335 : vector<2x16x32xf32>
    %337 = vector.broadcast %334 : vector<2x1x32xf32> to vector<2x16x32xf32>
    %338 = arith.mulf %336, %337 : vector<2x16x32xf32>
    %c8_79 = arith.constant 8 : index
    %c1_80 = arith.constant 1 : index
    %c0_81 = arith.constant 0 : index
    %339 = vector.load %arg13[%c8_79, %c1_80, %c0_81] : memref<10x18x32xf32, #tpu.memory_space<vmem>>, vector<2x16x32xf32>
    tpu.vector_store %arg13[%c8_79, %c1_80, %c0_81], %338 {strides = array<i32>} : memref<10x18x32xf32, #tpu.memory_space<vmem>>, vector<2x16x32xf32>,
    %cst = arith.constant 0.000000e+00 : f32
    %340 = vector.broadcast %cst : f32 to vector<10x1x32xf32>
    %c0_82 = arith.constant 0 : index
    %c0_83 = arith.constant 0 : index
    %c0_84 = arith.constant 0 : index
    %341 = vector.load %arg13[%c0_82, %c0_83, %c0_84] : memref<10x18x32xf32, #tpu.memory_space<vmem>>, vector<10x1x32xf32>
    tpu.vector_store %arg13[%c0_82, %c0_83, %c0_84], %340 {strides = array<i32>} : memref<10x18x32xf32, #tpu.memory_space<vmem>>, vector<10x1x32xf32>,
    %cst_85 = arith.constant 0.000000e+00 : f32
    %342 = vector.broadcast %cst_85 : f32 to vector<10x1x32xf32>
    %c0_86 = arith.constant 0 : index
    %c17 = arith.constant 17 : index
    %c0_87 = arith.constant 0 : index
    %343 = vector.load %arg13[%c0_86, %c17, %c0_87] : memref<10x18x32xf32, #tpu.memory_space<vmem>>, vector<10x1x32xf32>
    tpu.vector_store %arg13[%c0_86, %c17, %c0_87], %342 {strides = array<i32>} : memref<10x18x32xf32, #tpu.memory_space<vmem>>, vector<10x1x32xf32>,
    %c0_88 = arith.constant 0 : index
    %c0_89 = arith.constant 0 : index
    %c0_90 = arith.constant 0 : index
    %344 = vector.load %arg13[%c0_88, %c0_89, %c0_90] : memref<10x18x32xf32, #tpu.memory_space<vmem>>, vector<8x16x32xf32>
    %345 = vector.extract_strided_slice %3 {offsets = [0, 0, 0], sizes = [1, 1, 32], strides = [1, 1, 1]} : vector<3x3x32xf32> to vector<1x1x32xf32>
    %346 = vector.shape_cast %345 : vector<1x1x32xf32> to vector<32xf32>
    %347 = vector.shape_cast %346 : vector<32xf32> to vector<1x1x32xf32>
    %348 = vector.broadcast %347 : vector<1x1x32xf32> to vector<8x16x32xf32>
    %349 = arith.mulf %344, %348 : vector<8x16x32xf32>
    %c0_91 = arith.constant 0 : index
    %c1_92 = arith.constant 1 : index
    %c0_93 = arith.constant 0 : index
    %350 = vector.load %arg13[%c0_91, %c1_92, %c0_93] : memref<10x18x32xf32, #tpu.memory_space<vmem>>, vector<8x16x32xf32>
    %351 = vector.extract_strided_slice %3 {offsets = [0, 1, 0], sizes = [1, 1, 32], strides = [1, 1, 1]} : vector<3x3x32xf32> to vector<1x1x32xf32>
    %352 = vector.shape_cast %351 : vector<1x1x32xf32> to vector<32xf32>
    %353 = vector.shape_cast %352 : vector<32xf32> to vector<1x1x32xf32>
    %354 = vector.broadcast %353 : vector<1x1x32xf32> to vector<8x16x32xf32>
    %355 = arith.mulf %350, %354 : vector<8x16x32xf32>
    %356 = arith.addf %349, %355 : vector<8x16x32xf32>
    %c0_94 = arith.constant 0 : index
    %c2_95 = arith.constant 2 : index
    %c0_96 = arith.constant 0 : index
    %357 = vector.load %arg13[%c0_94, %c2_95, %c0_96] : memref<10x18x32xf32, #tpu.memory_space<vmem>>, vector<8x16x32xf32>
    %358 = vector.extract_strided_slice %3 {offsets = [0, 2, 0], sizes = [1, 1, 32], strides = [1, 1, 1]} : vector<3x3x32xf32> to vector<1x1x32xf32>
    %359 = vector.shape_cast %358 : vector<1x1x32xf32> to vector<32xf32>
    %360 = vector.shape_cast %359 : vector<32xf32> to vector<1x1x32xf32>
    %361 = vector.broadcast %360 : vector<1x1x32xf32> to vector<8x16x32xf32>
    %362 = arith.mulf %357, %361 : vector<8x16x32xf32>
    %363 = arith.addf %356, %362 : vector<8x16x32xf32>
    %c1_97 = arith.constant 1 : index
    %c0_98 = arith.constant 0 : index
    %c0_99 = arith.constant 0 : index
    %364 = vector.load %arg13[%c1_97, %c0_98, %c0_99] : memref<10x18x32xf32, #tpu.memory_space<vmem>>, vector<8x16x32xf32>
    %365 = vector.extract_strided_slice %3 {offsets = [1, 0, 0], sizes = [1, 1, 32], strides = [1, 1, 1]} : vector<3x3x32xf32> to vector<1x1x32xf32>
    %366 = vector.shape_cast %365 : vector<1x1x32xf32> to vector<32xf32>
    %367 = vector.shape_cast %366 : vector<32xf32> to vector<1x1x32xf32>
    %368 = vector.broadcast %367 : vector<1x1x32xf32> to vector<8x16x32xf32>
    %369 = arith.mulf %364, %368 : vector<8x16x32xf32>
    %370 = arith.addf %363, %369 : vector<8x16x32xf32>
    %c1_100 = arith.constant 1 : index
    %c1_101 = arith.constant 1 : index
    %c0_102 = arith.constant 0 : index
    %371 = vector.load %arg13[%c1_100, %c1_101, %c0_102] : memref<10x18x32xf32, #tpu.memory_space<vmem>>, vector<8x16x32xf32>
    %372 = vector.extract_strided_slice %3 {offsets = [1, 1, 0], sizes = [1, 1, 32], strides = [1, 1, 1]} : vector<3x3x32xf32> to vector<1x1x32xf32>
    %373 = vector.shape_cast %372 : vector<1x1x32xf32> to vector<32xf32>
    %374 = vector.shape_cast %373 : vector<32xf32> to vector<1x1x32xf32>
    %375 = vector.broadcast %374 : vector<1x1x32xf32> to vector<8x16x32xf32>
    %376 = arith.mulf %371, %375 : vector<8x16x32xf32>
    %377 = arith.addf %370, %376 : vector<8x16x32xf32>
    %c1_103 = arith.constant 1 : index
    %c2_104 = arith.constant 2 : index
    %c0_105 = arith.constant 0 : index
    %378 = vector.load %arg13[%c1_103, %c2_104, %c0_105] : memref<10x18x32xf32, #tpu.memory_space<vmem>>, vector<8x16x32xf32>
    %379 = vector.extract_strided_slice %3 {offsets = [1, 2, 0], sizes = [1, 1, 32], strides = [1, 1, 1]} : vector<3x3x32xf32> to vector<1x1x32xf32>
    %380 = vector.shape_cast %379 : vector<1x1x32xf32> to vector<32xf32>
    %381 = vector.shape_cast %380 : vector<32xf32> to vector<1x1x32xf32>
    %382 = vector.broadcast %381 : vector<1x1x32xf32> to vector<8x16x32xf32>
    %383 = arith.mulf %378, %382 : vector<8x16x32xf32>
    %384 = arith.addf %377, %383 : vector<8x16x32xf32>
    %c2_106 = arith.constant 2 : index
    %c0_107 = arith.constant 0 : index
    %c0_108 = arith.constant 0 : index
    %385 = vector.load %arg13[%c2_106, %c0_107, %c0_108] : memref<10x18x32xf32, #tpu.memory_space<vmem>>, vector<8x16x32xf32>
    %386 = vector.extract_strided_slice %3 {offsets = [2, 0, 0], sizes = [1, 1, 32], strides = [1, 1, 1]} : vector<3x3x32xf32> to vector<1x1x32xf32>
    %387 = vector.shape_cast %386 : vector<1x1x32xf32> to vector<32xf32>
    %388 = vector.shape_cast %387 : vector<32xf32> to vector<1x1x32xf32>
    %389 = vector.broadcast %388 : vector<1x1x32xf32> to vector<8x16x32xf32>
    %390 = arith.mulf %385, %389 : vector<8x16x32xf32>
    %391 = arith.addf %384, %390 : vector<8x16x32xf32>
    %c2_109 = arith.constant 2 : index
    %c1_110 = arith.constant 1 : index
    %c0_111 = arith.constant 0 : index
    %392 = vector.load %arg13[%c2_109, %c1_110, %c0_111] : memref<10x18x32xf32, #tpu.memory_space<vmem>>, vector<8x16x32xf32>
    %393 = vector.extract_strided_slice %3 {offsets = [2, 1, 0], sizes = [1, 1, 32], strides = [1, 1, 1]} : vector<3x3x32xf32> to vector<1x1x32xf32>
    %394 = vector.shape_cast %393 : vector<1x1x32xf32> to vector<32xf32>
    %395 = vector.shape_cast %394 : vector<32xf32> to vector<1x1x32xf32>
    %396 = vector.broadcast %395 : vector<1x1x32xf32> to vector<8x16x32xf32>
    %397 = arith.mulf %392, %396 : vector<8x16x32xf32>
    %398 = arith.addf %391, %397 : vector<8x16x32xf32>
    %c2_112 = arith.constant 2 : index
    %c2_113 = arith.constant 2 : index
    %c0_114 = arith.constant 0 : index
    %399 = vector.load %arg13[%c2_112, %c2_113, %c0_114] : memref<10x18x32xf32, #tpu.memory_space<vmem>>, vector<8x16x32xf32>
    %400 = vector.extract_strided_slice %3 {offsets = [2, 2, 0], sizes = [1, 1, 32], strides = [1, 1, 1]} : vector<3x3x32xf32> to vector<1x1x32xf32>
    %401 = vector.shape_cast %400 : vector<1x1x32xf32> to vector<32xf32>
    %402 = vector.shape_cast %401 : vector<32xf32> to vector<1x1x32xf32>
    %403 = vector.broadcast %402 : vector<1x1x32xf32> to vector<8x16x32xf32>
    %404 = arith.mulf %399, %403 : vector<8x16x32xf32>
    %405 = arith.addf %398, %404 : vector<8x16x32xf32>
    %c0_115 = arith.constant 0 : index
    %c3_116 = arith.constant 3 : index
    %c0_117 = arith.constant 0 : index
    %406 = vector.load %arg2[%c0_115, %c3_116, %c0_117] : memref<8x22x32xf32, #tpu.memory_space<vmem>>, vector<8x16x32xf32>
    %407 = vector.broadcast %9 : vector<1x1x32xf32> to vector<8x16x32xf32>
    %408 = arith.addf %405, %407 : vector<8x16x32xf32>
    %409 = arith.addf %408, %406 : vector<8x16x32xf32>
    %c0_118 = arith.constant 0 : index
    %c0_119 = arith.constant 0 : index
    %c0_120 = arith.constant 0 : index
    %410 = vector.load %arg11[%c0_118, %c0_119, %c0_120] : memref<8x16x32xf32, #tpu.memory_space<vmem>>, vector<8x16x32xf32>
    tpu.vector_store %arg11[%c0_118, %c0_119, %c0_120], %409 {strides = array<i32>} : memref<8x16x32xf32, #tpu.memory_space<vmem>>, vector<8x16x32xf32>,
    return
  }
  func.func @transform_0(%arg0: i32, %arg1: i32) -> (i32, i32, i32) {
    %c0_i32 = arith.constant 0 : i32
    %c0_i32_0 = arith.constant 0 : i32
    return %arg1, %c0_i32, %arg0 : i32, i32, i32
  }
  func.func @transform_1(%arg0: i32, %arg1: i32) -> (i32, i32, i32, i32) {
    %c2_i32 = arith.constant 2 : i32
    %0 = arith.muli %arg1, %c2_i32 : i32
    %c1_i32 = arith.constant 1 : i32
    %1 = arith.subi %0, %c1_i32 : i32
    %c0_i32 = arith.constant 0 : i32
    %2 = arith.maxsi %1, %c0_i32 : i32
    %c0_i32_0 = arith.constant 0 : i32
    %c0_i32_1 = arith.constant 0 : i32
    %c0_i32_2 = arith.constant 0 : i32
    return %2, %c0_i32_0, %c0_i32_1, %arg0 : i32, i32, i32, i32
  }
  func.func @transform_2(%arg0: i32, %arg1: i32) -> (i32, i32, i32, i32) {
    %c1_i32 = arith.constant 1 : i32
    %0 = arith.addi %arg1, %c1_i32 : i32
    %c2_i32 = arith.constant 2 : i32
    %1 = arith.muli %0, %c2_i32 : i32
    %c3_i32 = arith.constant 3 : i32
    %2 = arith.minsi %1, %c3_i32 : i32
    %c0_i32 = arith.constant 0 : i32
    %c0_i32_0 = arith.constant 0 : i32
    %c0_i32_1 = arith.constant 0 : i32
    return %2, %c0_i32, %c0_i32_0, %arg0 : i32, i32, i32, i32
  }
  func.func @transform_3(%arg0: i32, %arg1: i32) -> (i32, i32) {
    %c0_i32 = arith.constant 0 : i32
    %c0_i32_0 = arith.constant 0 : i32
    return %c0_i32, %arg0 : i32, i32
  }
  func.func @transform_4(%arg0: i32, %arg1: i32) -> (i32, i32) {
    %c0_i32 = arith.constant 0 : i32
    %c0_i32_0 = arith.constant 0 : i32
    return %c0_i32, %arg0 : i32, i32
  }
  func.func @transform_5(%arg0: i32, %arg1: i32) -> (i32, i32) {
    %c0_i32 = arith.constant 0 : i32
    %c0_i32_0 = arith.constant 0 : i32
    return %c0_i32, %arg0 : i32, i32
  }
  func.func @transform_6(%arg0: i32, %arg1: i32) -> (i32, i32) {
    %c0_i32 = arith.constant 0 : i32
    %c0_i32_0 = arith.constant 0 : i32
    return %c0_i32, %arg0 : i32, i32
  }
  func.func @transform_7(%arg0: i32, %arg1: i32) -> (i32, i32, i32) {
    %c0_i32 = arith.constant 0 : i32
    %c0_i32_0 = arith.constant 0 : i32
    %c0_i32_1 = arith.constant 0 : i32
    return %c0_i32, %c0_i32_0, %arg0 : i32, i32, i32
  }
  func.func @transform_8(%arg0: i32, %arg1: i32) -> (i32, i32) {
    %c0_i32 = arith.constant 0 : i32
    %c0_i32_0 = arith.constant 0 : i32
    return %c0_i32, %arg0 : i32, i32
  }
  func.func @transform_9(%arg0: i32, %arg1: i32) -> (i32, i32, i32) {
    %c0_i32 = arith.constant 0 : i32
    %c0_i32_0 = arith.constant 0 : i32
    return %arg1, %c0_i32, %arg0 : i32, i32, i32
  }
}

</mosaic_0001>

<llo_original>
// kernel: tile.34
$region0: #{tile.34}
  %s0 = inlined_call_operand.vmem [shape: f32[7,2,16], index: 0, kind: input, shape index: {}]
  %s1 = inlined_call_operand.vmem [shape: f32[7,32], index: 1, kind: output, shape index: {}]
  $region1: #{tile.34} parent=0
    #allocation0 [shape = 'u8[28672]{0}', space=vmem, size = 0x7000, scoped, tag = 'scoped mem for input reshape']
    %s3 = sshll.u32 1, 2
    %s4 = ssub.s32 %s3, 1
    %s5 = smul.addr 2, 6
    %s6 = scalar_lea.vmem %s0, %s5
    %v7 = vld [vmem:[%s6] sm:%s4]
    %s8 = scalar_lea.vmem [#allocation0], 48
    %9 = vst [vmem:[%s8] sm:%s4] %v7
    %s10 = smul.addr 2, 5
    %s11 = scalar_lea.vmem %s0, %s10
    %v12 = vld [vmem:[%s11] sm:%s4]
    %s13 = scalar_lea.vmem [#allocation0], 40
    %14 = vst [vmem:[%s13] sm:%s4] %v12
    %s15 = smul.addr 2, 4
    %s16 = scalar_lea.vmem %s0, %s15
    %v17 = vld [vmem:[%s16] sm:%s4]
    %s18 = scalar_lea.vmem [#allocation0], 32
    %19 = vst [vmem:[%s18] sm:%s4] %v17
    %s20 = smul.addr 2, 3
    %s21 = scalar_lea.vmem %s0, %s20
    %v22 = vld [vmem:[%s21] sm:%s4]
    %s23 = scalar_lea.vmem [#allocation0], 24
    %24 = vst [vmem:[%s23] sm:%s4] %v22
    %s25 = smul.addr 2, 2
    %s26 = scalar_lea.vmem %s0, %s25
    %v27 = vld [vmem:[%s26] sm:%s4]
    %s28 = scalar_lea.vmem [#allocation0], 16
    %29 = vst [vmem:[%s28] sm:%s4] %v27
    %s30 = scalar_lea.vmem %s0, 2
    %v31 = vld [vmem:[%s30] sm:%s4]
    %s32 = scalar_lea.vmem [#allocation0], 8
    %33 = vst [vmem:[%s32] sm:%s4] %v31
    %v34 = vld [vmem:[%s0] sm:%s4]
    %35 = vst [vmem:[#allocation0] sm:%s4] %v34
    %v36 = vld [vmem:[#allocation0] ss:$8 sm:$0xf]
    %v37 = vld [vmem:[#allocation0] ss:$8 sm:$0x70]
    %vm38 = vcmask 1046532
    %v39 = vsel %vm38, %v37, %v36
    %vm40 = vcmask 130048
    %41 = vst.msk [vmem:[%s1] sm:$0x7f] %vm40, %v39
    %s42 = scalar_lea.vmem [#allocation0], 1
    %v43 = vld [vmem:[%s42] ss:$8 sm:$0xf]
    %s44 = scalar_lea.vmem [#allocation0], 1
    %v45 = vld [vmem:[%s44] ss:$8 sm:$0x70]
    %vm46 = vcmask 1046532
    %v47 = vsel %vm46, %v45, %v43
    %48 = vrot.lane.b32.xlu0 %v47, 16
    %v49 = vpop.permute.xlu0 %48
    %vm50 = vcmask 261248
    %51 = vst.msk [vmem:[%s1] sm:$0x7f] %vm50, %v49

// kernel: tile.48
$region0: #{tile.48}
  #allocation0 [shape = 's32[1]{0}', space=sflag, size = 0x4, scoped, tag = 'scoped memory for tile.48']
  %s0 = inlined_call_operand.vmem [shape: f32[16], index: 0, kind: input, shape index: {}]
  %s1 = inlined_call_operand.vmem [shape: f32[2,16], index: 1, kind: output, shape index: {}]
  // Predicated region
  $region2: #{tile.48} parent=0 // pred_check
    _
  $region3: #{tile.48} parent=0 // pred_check_branch
    %3 = sbr.rel (0) target = $region5
  $region4: #{tile.48} parent=0 // pred_region
    _
  $region5: #{tile.48} parent=0 // pred_fallthru
    _
  %v4 = vld [vmem:[%s0] ss:$0 sm:$0xff]
  %5 = vst [vmem:[%s1] sm:$0x3] %v4

// kernel: tile.44
$region0: #{tile.44}
  %s0 = inlined_call_operand.vmem [shape: f32[3,3,2,16], index: 0, kind: input, shape index: {}]
  %s1 = inlined_call_operand.vmem [shape: f32[3,3,32], index: 1, kind: output, shape index: {}]
  $region1: #{tile.44} parent=0
    #allocation0 [shape = 'u8[12288]{0}', space=vmem, size = 0x3000, scoped, tag = 'scoped mem for output reshape']
    #allocation1 [shape = 'u8[36864]{0}', space=vmem, size = 0x9000, scoped, tag = 'scoped mem for input reshape']
    %s3 = sshll.u32 1, 2
    %s4 = ssub.s32 %s3, 1
    %s5 = smul.addr 2, 8
    %s6 = scalar_lea.vmem %s0, %s5
    %v7 = vld [vmem:[%s6] sm:%s4]
    %s8 = scalar_lea.vmem [#allocation1], 64
    %9 = vst [vmem:[%s8] sm:%s4] %v7
    %s10 = smul.addr 2, 7
    %s11 = scalar_lea.vmem %s0, %s10
    %v12 = vld [vmem:[%s11] sm:%s4]
    %s13 = scalar_lea.vmem [#allocation1], 56
    %14 = vst [vmem:[%s13] sm:%s4] %v12
    %s15 = smul.addr 2, 6
    %s16 = scalar_lea.vmem %s0, %s15
    %v17 = vld [vmem:[%s16] sm:%s4]
    %s18 = scalar_lea.vmem [#allocation1], 48
    %19 = vst [vmem:[%s18] sm:%s4] %v17
    %s20 = smul.addr 2, 5
    %s21 = scalar_lea.vmem %s0, %s20
    %v22 = vld [vmem:[%s21] sm:%s4]
    %s23 = scalar_lea.vmem [#allocation1], 40
    %24 = vst [vmem:[%s23] sm:%s4] %v22
    %s25 = smul.addr 2, 4
    %s26 = scalar_lea.vmem %s0, %s25
    %v27 = vld [vmem:[%s26] sm:%s4]
    %s28 = scalar_lea.vmem [#allocation1], 32
    %29 = vst [vmem:[%s28] sm:%s4] %v27
    %s30 = smul.addr 2, 3
    %s31 = scalar_lea.vmem %s0, %s30
    %v32 = vld [vmem:[%s31] sm:%s4]
    %s33 = scalar_lea.vmem [#allocation1], 24
    %34 = vst [vmem:[%s33] sm:%s4] %v32
    %s35 = smul.addr 2, 2
    %s36 = scalar_lea.vmem %s0, %s35
    %v37 = vld [vmem:[%s36] sm:%s4]
    %s38 = scalar_lea.vmem [#allocation1], 16
    %39 = vst [vmem:[%s38] sm:%s4] %v37
    %s40 = scalar_lea.vmem %s0, 2
    %v41 = vld [vmem:[%s40] sm:%s4]
    %s42 = scalar_lea.vmem [#allocation1], 8
    %43 = vst [vmem:[%s42] sm:%s4] %v41
    %v44 = vld [vmem:[%s0] sm:%s4]
    %45 = vst [vmem:[#allocation1] sm:%s4] %v44
    %v46 = vld [vmem:[#allocation1] ss:$8 sm:$0xf]
    %v47 = vld [vmem:[#allocation1] ss:$8 sm:$0xf0]
    %vm48 = vcmask 1047556
    %v49 = vsel %vm48, %v47, %v46
    %vm50 = vcmask 130048
    %51 = vst.msk [vmem:[#allocation0] sm:$0x7] %vm50, %v49
    %s52 = scalar_lea.vmem [#allocation0], 5
    %53 = vst.msk [vmem:[%s52] sm:$0x38] %vm50, %v49
    %s54 = scalar_lea.vmem [#allocation0], 10
    %55 = vst.msk [vmem:[%s54] sm:$0xc0] %vm50, %v49
    %s56 = scalar_lea.vmem [#allocation1], 64
    %v57 = vld [vmem:[%s56] sm:$0x1]
    %vm58 = vcmask 130048
    %s59 = scalar_lea.vmem [#allocation0], 18
    %60 = vst.msk [vmem:[%s59] sm:$0x1] %vm58, %v57
    %s61 = scalar_lea.vmem [#allocation1], 1
    %v62 = vld [vmem:[%s61] ss:$8 sm:$0xf]
    %s63 = scalar_lea.vmem [#allocation1], 1
    %v64 = vld [vmem:[%s63] ss:$8 sm:$0xf0]
    %vm65 = vcmask 1047556
    %v66 = vsel %vm65, %v64, %v62
    %67 = vrot.lane.b32.xlu0 %v66, 16
    %v68 = vpop.permute.xlu0 %67
    %vm69 = vcmask 261248
    %70 = vst.msk [vmem:[#allocation0] sm:$0x7] %vm69, %v68
    %s71 = scalar_lea.vmem [#allocation0], 5
    %72 = vst.msk [vmem:[%s71] sm:$0x38] %vm69, %v68
    %s73 = scalar_lea.vmem [#allocation0], 10
    %74 = vst.msk [vmem:[%s73] sm:$0xc0] %vm69, %v68
    %s75 = scalar_lea.vmem [#allocation1], 65
    %v76 = vld [vmem:[%s75] sm:$0x1]
    %77 = vrot.lane.b32.xlu0 %v76, 16
    %v78 = vpop.permute.xlu0 %77
    %vm79 = vcmask 261248
    %s80 = scalar_lea.vmem [#allocation0], 18
    %81 = vst.msk [vmem:[%s80] sm:$0x1] %vm79, %v78
    %s83 = sshll.u32 1, 4
    %s84 = ssub.s32 %s83, 1
    %v86 = vld [vmem:[#allocation0] sm:%s84]
    %s87 = sshll.u32 1, 4
    %s88 = ssub.s32 %s87, 1
    %89 = vst [vmem:[%s1] sm:%s88] %v86
    %s90 = scalar_lea.vmem [#allocation0], 8
    %v91 = vld [vmem:[%s90] sm:%s84]
    %s92 = sshll.u32 1, 4
    %s93 = ssub.s32 %s92, 1
    %s94 = scalar_lea.vmem %s1, 4
    %95 = vst [vmem:[%s94] sm:%s93] %v91
    %s96 = scalar_lea.vmem [#allocation0], 16
    %v97 = vld [vmem:[%s96] sm:%s84]
    %s98 = sshll.u32 1, 4
    %s99 = ssub.s32 %s98, 1
    %s100 = smul.addr 4, 2
    %s101 = scalar_lea.vmem %s1, %s100
    %102 = vst [vmem:[%s101] sm:%s99] %v97

// kernel: axial_spatial_dw.1
$region0: #{axial_spatial_dw.1}
  #allocation0 [shape = 'u32[]', space=smem, size = 0x4, offset = 0x4, fixed_abs, tag = 'smem constant byte address 0x4 - core index']
  #allocation1 [shape = 'u32[144,128]{1,0:T(1,128)}', space=vmem, size = 0x12000, scoped, tag = 'internal scratch']
  #allocation2 [shape = 'f32[16,16,32]{2,1,0:T(8,128)}', space=vmem, size = 0x20000, scoped, tag = 'scratch operand']
  #allocation3 [shape = 'f32[10,18,32]{2,1,0:T(8,128)}', space=vmem, size = 0x1e000, scoped, tag = 'scratch operand']
  %s0 = inlined_call_operand.vmem [shape: f32[16,22,32], index: 0, kind: input, shape index: {}, may-alias: {0,1,2}]
  %s1 = inlined_call_operand.vmem [shape: f32[4,4,22,32], index: 1, kind: input, shape index: {}, may-alias: {0,1,2}]
  %s2 = inlined_call_operand.vmem [shape: f32[4,4,22,32], index: 2, kind: input, shape index: {}, may-alias: {0,1,2}]
  %s3 = inlined_call_operand.vmem [shape: f32[7,32], index: 3, kind: input, shape index: {}]
  %s4 = inlined_call_operand.vmem [shape: f32[1,32], index: 4, kind: input, shape index: {}]
  %s5 = inlined_call_operand.vmem [shape: f32[7,32], index: 5, kind: input, shape index: {}]
  %s6 = inlined_call_operand.vmem [shape: f32[1,32], index: 6, kind: input, shape index: {}]
  %s7 = inlined_call_operand.vmem [shape: f32[3,3,32], index: 7, kind: input, shape index: {}]
  %s8 = inlined_call_operand.vmem [shape: f32[1,32], index: 8, kind: input, shape index: {}]
  %s9 = inlined_call_operand.vmem [shape: f32[16,16,32], index: 9, kind: output, shape index: {}]
  %s10 = sld [smem:[#allocation0]]
  $region69: #{axial_spatial_dw.1} parent=0
    _
  %s12 = ssub.s32 1, %s10
  %s13 = scalar_select 0, %s12, %s10
  loop: start=0, step=1, limit=4
  $region2: #{axial_spatial_dw.1} parent=0 // loop_pre_header
    _
  $region3: #{axial_spatial_dw.1} parent=0 // loop_header
    %s15 = sphi 0, %s19
    %p16 = scmp.ge.s32.totalorder %s15, 4
    %s22 = sphi 0, %s34
    %s23 = sphi 0, %s30
    %s24 = sphi 0, %s22
    %s25 = sphi 0, %s23
    %s26 = sphi 0, %s24
    %s27 = sphi 0, %s25
    %s39 = sphi 0, %s41
    %s42 = sphi 0, %s39
    %s43 = sphi 0, %s42
    %s59 = sphi 0, %s43
    %s75 = sphi 0, %s77
    %s78 = sphi 0, %s75
    %s79 = sphi 0, %s78
    %s95 = sphi 0, %s79
    %s111 = sphi 0, %s113
    %s114 = sphi 0, %s111
    %s115 = sphi 0, %s114
    %s131 = sphi 0, %s115
    %s137 = sphi 0, %s139
    %s140 = sphi 0, %s137
    %s141 = sphi 0, %s140
    %s157 = sphi 0, %s141
    %s163 = sphi 0, %s165
    %s166 = sphi 0, %s163
    %s167 = sphi 0, %s166
    %s183 = sphi 0, %s167
    %s189 = sphi 0, %s191
    %s192 = sphi 0, %s189
    %s193 = sphi 0, %s192
    %s209 = sphi 0, %s193
    %s215 = sphi 0, %s217
    %s218 = sphi 0, %s215
    %s219 = sphi 0, %s218
    %s235 = sphi 0, %s219
    %s241 = sphi 0, %s243
    %s244 = sphi 0, %s241
    %s245 = sphi 0, %s244
    %s261 = sphi 0, %s245
    %s267 = sphi 0, %s269
    %s270 = sphi 0, %s267
    %s271 = sphi 0, %s270
    %s287 = sphi 0, %s271
    %s295 = sphi 0, %s297
    %s298 = sphi 0, %s295
    %s299 = sphi 0, %s298
    %s315 = sphi 0, %s299
  $region4: #{axial_spatial_dw.1} parent=0 // loop_header_branch
    %18 = sbr.rel (%p16) target = $region8
  $region5: #{axial_spatial_dw.1} parent=0 // loop_body
    %s20 = ssub.s32 %s15, 1
    %s21 = ssub.s32 %s15, 2
    %s28 = sadd.s32 1, %s23
    %p29 = scmp.ge.s32.totalorder %s28, 2
    %s30 = scalar_select %p29, 0, %s28
    %s31 = sadd.s32 1, %s22
    %s32 = scalar_select %p29, %s31, %s22
    %p33 = scmp.ge.s32.totalorder %s32, 1
    %s34 = scalar_select %p33, 0, %s32
    %s35 = ssub.s32 %s23, %s30
    %s36 = ssub.s32 %s22, %s34
    %s37 = sor.u32 %s35, %s36
    %p38 = scmp.eq.s32.totalorder %s37, 0
    %s40 = sadd.s32 %s39, 1
    %s41 = scalar_select %p38, %s39, %s40
    %p44 = pneg %p38
    %p45 = scmp.eq.s32.totalorder %s15, 1
    %p46 = por %p44, %p45
    %p47 = scmp.ne.s32.totalorder %s39, %s42
    %p48 = scmp.eq.s32.totalorder %s15, 0
    %p49 = por %p47, %p48
    %p50 = scmp.ne.s32.totalorder %s39, %s42
    %p51 = scmp.eq.s32.totalorder %s20, 1
    %p52 = por %p50, %p51
    %p53 = scmp.ne.s32.totalorder %s42, %s43
    %p54 = scmp.eq.s32.totalorder %s20, 0
    %p55 = por %p53, %p54
    %p56 = scmp.ne.s32.totalorder %s42, %s43
    %p57 = scmp.eq.s32.totalorder %s21, 1
    %p58 = por %p56, %p57
    %p60 = scmp.ne.s32.totalorder %s43, %s59
    %p61 = scmp.eq.s32.totalorder %s21, 0
    %p62 = por %p60, %p61
    %s63 = smul.u32 %s23, 2
    %s64 = ssub.s32 %s63, 1
    %p65 = scmp.gt.s32.totalorder %s64, 0
    %s66 = scalar_select %p65, %s64, 0
    %s67 = smul.u32 %s30, 2
    %s68 = ssub.s32 %s67, 1
    %p69 = scmp.gt.s32.totalorder %s68, 0
    %s70 = scalar_select %p69, %s68, 0
    %s71 = ssub.s32 %s66, %s70
    %s72 = ssub.s32 %s22, %s34
    %s73 = sor.u32 %s71, %s72
    %p74 = scmp.eq.s32.totalorder %s73, 0
    %s76 = sadd.s32 %s75, 1
    %s77 = scalar_select %p74, %s75, %s76
    %p80 = pneg %p74
    %p81 = scmp.eq.s32.totalorder %s15, 1
    %p82 = por %p80, %p81
    %p83 = scmp.ne.s32.totalorder %s75, %s78
    %p84 = scmp.eq.s32.totalorder %s15, 0
    %p85 = por %p83, %p84
    %p86 = scmp.ne.s32.totalorder %s75, %s78
    %p87 = scmp.eq.s32.totalorder %s20, 1
    %p88 = por %p86, %p87
    %p89 = scmp.ne.s32.totalorder %s78, %s79
    %p90 = scmp.eq.s32.totalorder %s20, 0
    %p91 = por %p89, %p90
    %p92 = scmp.ne.s32.totalorder %s78, %s79
    %p93 = scmp.eq.s32.totalorder %s21, 1
    %p94 = por %p92, %p93
    %p96 = scmp.ne.s32.totalorder %s79, %s95
    %p97 = scmp.eq.s32.totalorder %s21, 0
    %p98 = por %p96, %p97
    %s99 = sadd.s32 %s23, 1
    %s100 = smul.u32 %s99, 2
    %p101 = scmp.lt.s32.totalorder %s100, 3
    %s102 = scalar_select %p101, %s100, 3
    %s103 = sadd.s32 %s30, 1
    %s104 = smul.u32 %s103, 2
    %p105 = scmp.lt.s32.totalorder %s104, 3
    %s106 = scalar_select %p105, %s104, 3
    %s107 = ssub.s32 %s102, %s106
    %s108 = ssub.s32 %s22, %s34
    %s109 = sor.u32 %s107, %s108
    %p110 = scmp.eq.s32.totalorder %s109, 0
    %s112 = sadd.s32 %s111, 1
    %s113 = scalar_select %p110, %s111, %s112
    %p116 = pneg %p110
    %p117 = scmp.eq.s32.totalorder %s15, 1
    %p118 = por %p116, %p117
    %p119 = scmp.ne.s32.totalorder %s111, %s114
    %p120 = scmp.eq.s32.totalorder %s15, 0
    %p121 = por %p119, %p120
    %p122 = scmp.ne.s32.totalorder %s111, %s114
    %p123 = scmp.eq.s32.totalorder %s20, 1
    %p124 = por %p122, %p123
    %p125 = scmp.ne.s32.totalorder %s114, %s115
    %p126 = scmp.eq.s32.totalorder %s20, 0
    %p127 = por %p125, %p126
    %p128 = scmp.ne.s32.totalorder %s114, %s115
    %p129 = scmp.eq.s32.totalorder %s21, 1
    %p130 = por %p128, %p129
    %p132 = scmp.ne.s32.totalorder %s115, %s131
    %p133 = scmp.eq.s32.totalorder %s21, 0
    %p134 = por %p132, %p133
    %s135 = ssub.s32 %s22, %s34
    %p136 = scmp.eq.s32.totalorder %s135, 0
    %s138 = sadd.s32 %s137, 1
    %s139 = scalar_select %p136, %s137, %s138
    %p142 = pneg %p136
    %p143 = scmp.eq.s32.totalorder %s15, 1
    %p144 = por %p142, %p143
    %p145 = scmp.ne.s32.totalorder %s137, %s140
    %p146 = scmp.eq.s32.totalorder %s15, 0
    %p147 = por %p145, %p146
    %p148 = scmp.ne.s32.totalorder %s137, %s140
    %p149 = scmp.eq.s32.totalorder %s20, 1
    %p150 = por %p148, %p149
    %p151 = scmp.ne.s32.totalorder %s140, %s141
    %p152 = scmp.eq.s32.totalorder %s20, 0
    %p153 = por %p151, %p152
    %p154 = scmp.ne.s32.totalorder %s140, %s141
    %p155 = scmp.eq.s32.totalorder %s21, 1
    %p156 = por %p154, %p155
    %p158 = scmp.ne.s32.totalorder %s141, %s157
    %p159 = scmp.eq.s32.totalorder %s21, 0
    %p160 = por %p158, %p159
    %s161 = ssub.s32 %s22, %s34
    %p162 = scmp.eq.s32.totalorder %s161, 0
    %s164 = sadd.s32 %s163, 1
    %s165 = scalar_select %p162, %s163, %s164
    %p168 = pneg %p162
    %p169 = scmp.eq.s32.totalorder %s15, 1
    %p170 = por %p168, %p169
    %p171 = scmp.ne.s32.totalorder %s163, %s166
    %p172 = scmp.eq.s32.totalorder %s15, 0
    %p173 = por %p171, %p172
    %p174 = scmp.ne.s32.totalorder %s163, %s166
    %p175 = scmp.eq.s32.totalorder %s20, 1
    %p176 = por %p174, %p175
    %p177 = scmp.ne.s32.totalorder %s166, %s167
    %p178 = scmp.eq.s32.totalorder %s20, 0
    %p179 = por %p177, %p178
    %p180 = scmp.ne.s32.totalorder %s166, %s167
    %p181 = scmp.eq.s32.totalorder %s21, 1
    %p182 = por %p180, %p181
    %p184 = scmp.ne.s32.totalorder %s167, %s183
    %p185 = scmp.eq.s32.totalorder %s21, 0
    %p186 = por %p184, %p185
    %s187 = ssub.s32 %s22, %s34
    %p188 = scmp.eq.s32.totalorder %s187, 0
    %s190 = sadd.s32 %s189, 1
    %s191 = scalar_select %p188, %s189, %s190
    %p194 = pneg %p188
    %p195 = scmp.eq.s32.totalorder %s15, 1
    %p196 = por %p194, %p195
    %p197 = scmp.ne.s32.totalorder %s189, %s192
    %p198 = scmp.eq.s32.totalorder %s15, 0
    %p199 = por %p197, %p198
    %p200 = scmp.ne.s32.totalorder %s189, %s192
    %p201 = scmp.eq.s32.totalorder %s20, 1
    %p202 = por %p200, %p201
    %p203 = scmp.ne.s32.totalorder %s192, %s193
    %p204 = scmp.eq.s32.totalorder %s20, 0
    %p205 = por %p203, %p204
    %p206 = scmp.ne.s32.totalorder %s192, %s193
    %p207 = scmp.eq.s32.totalorder %s21, 1
    %p208 = por %p206, %p207
    %p210 = scmp.ne.s32.totalorder %s193, %s209
    %p211 = scmp.eq.s32.totalorder %s21, 0
    %p212 = por %p210, %p211
    %s213 = ssub.s32 %s22, %s34
    %p214 = scmp.eq.s32.totalorder %s213, 0
    %s216 = sadd.s32 %s215, 1
    %s217 = scalar_select %p214, %s215, %s216
    %p220 = pneg %p214
    %p221 = scmp.eq.s32.totalorder %s15, 1
    %p222 = por %p220, %p221
    %p223 = scmp.ne.s32.totalorder %s215, %s218
    %p224 = scmp.eq.s32.totalorder %s15, 0
    %p225 = por %p223, %p224
    %p226 = scmp.ne.s32.totalorder %s215, %s218
    %p227 = scmp.eq.s32.totalorder %s20, 1
    %p228 = por %p226, %p227
    %p229 = scmp.ne.s32.totalorder %s218, %s219
    %p230 = scmp.eq.s32.totalorder %s20, 0
    %p231 = por %p229, %p230
    %p232 = scmp.ne.s32.totalorder %s218, %s219
    %p233 = scmp.eq.s32.totalorder %s21, 1
    %p234 = por %p232, %p233
    %p236 = scmp.ne.s32.totalorder %s219, %s235
    %p237 = scmp.eq.s32.totalorder %s21, 0
    %p238 = por %p236, %p237
    %s239 = ssub.s32 %s22, %s34
    %p240 = scmp.eq.s32.totalorder %s239, 0
    %s242 = sadd.s32 %s241, 1
    %s243 = scalar_select %p240, %s241, %s242
    %p246 = pneg %p240
    %p247 = scmp.eq.s32.totalorder %s15, 1
    %p248 = por %p246, %p247
    %p249 = scmp.ne.s32.totalorder %s241, %s244
    %p250 = scmp.eq.s32.totalorder %s15, 0
    %p251 = por %p249, %p250
    %p252 = scmp.ne.s32.totalorder %s241, %s244
    %p253 = scmp.eq.s32.totalorder %s20, 1
    %p254 = por %p252, %p253
    %p255 = scmp.ne.s32.totalorder %s244, %s245
    %p256 = scmp.eq.s32.totalorder %s20, 0
    %p257 = por %p255, %p256
    %p258 = scmp.ne.s32.totalorder %s244, %s245
    %p259 = scmp.eq.s32.totalorder %s21, 1
    %p260 = por %p258, %p259
    %p262 = scmp.ne.s32.totalorder %s245, %s261
    %p263 = scmp.eq.s32.totalorder %s21, 0
    %p264 = por %p262, %p263
    %s265 = ssub.s32 %s22, %s34
    %p266 = scmp.eq.s32.totalorder %s265, 0
    %s268 = sadd.s32 %s267, 1
    %s269 = scalar_select %p266, %s267, %s268
    %p272 = pneg %p266
    %p273 = scmp.eq.s32.totalorder %s15, 1
    %p274 = por %p272, %p273
    %p275 = scmp.ne.s32.totalorder %s267, %s270
    %p276 = scmp.eq.s32.totalorder %s15, 0
    %p277 = por %p275, %p276
    %p278 = scmp.ne.s32.totalorder %s267, %s270
    %p279 = scmp.eq.s32.totalorder %s20, 1
    %p280 = por %p278, %p279
    %p281 = scmp.ne.s32.totalorder %s270, %s271
    %p282 = scmp.eq.s32.totalorder %s20, 0
    %p283 = por %p281, %p282
    %p284 = scmp.ne.s32.totalorder %s270, %s271
    %p285 = scmp.eq.s32.totalorder %s21, 1
    %p286 = por %p284, %p285
    %p288 = scmp.ne.s32.totalorder %s271, %s287
    %p289 = scmp.eq.s32.totalorder %s21, 0
    %p290 = por %p288, %p289
    %s291 = ssub.s32 %s23, %s30
    %s292 = ssub.s32 %s22, %s34
    %s293 = sor.u32 %s291, %s292
    %p294 = scmp.eq.s32.totalorder %s293, 0
    %s296 = sadd.s32 %s295, 1
    %s297 = scalar_select %p294, %s295, %s296
    %p300 = pneg %p294
    %p301 = scmp.eq.s32.totalorder %s15, 1
    %p302 = por %p300, %p301
    %p303 = scmp.ne.s32.totalorder %s295, %s298
    %p304 = scmp.eq.s32.totalorder %s15, 0
    %p305 = por %p303, %p304
    %p306 = scmp.ne.s32.totalorder %s295, %s298
    %p307 = scmp.eq.s32.totalorder %s20, 1
    %p308 = por %p306, %p307
    %p309 = scmp.ne.s32.totalorder %s298, %s299
    %p310 = scmp.eq.s32.totalorder %s20, 0
    %p311 = por %p309, %p310
    %p312 = scmp.ne.s32.totalorder %s298, %s299
    %p313 = scmp.eq.s32.totalorder %s21, 1
    %p314 = por %p312, %p313
    %p316 = scmp.ne.s32.totalorder %s299, %s315
    %p317 = scmp.eq.s32.totalorder %s21, 0
    %p318 = por %p316, %p317
    %p319 = scmp.le.s32.totalorder 1, %s15
    %p320 = scmp.lt.s32.totalorder %s15, 3
    %p321 = pnand %p319, %p320
    %p322 = pneg %p321
    // Predicated region
    $region9: #{axial_spatial_dw.1} parent=5 // pred_check
      _
    $region10: #{axial_spatial_dw.1} parent=5 // pred_check_branch
      %324 = sbr.rel (%p321) target = $region12
    $region11: #{axial_spatial_dw.1} parent=5 // pred_region
      %s325 = ssub.s32 %s15, 1
      // Predicated region
      $region13: #{axial_spatial_dw.1} parent=11 // pred_check
        %p326 = pneg %p153
      $region14: #{axial_spatial_dw.1} parent=11 // pred_check_branch
        %328 = sbr.rel (%p326) target = $region16
      $region15: #{axial_spatial_dw.1} parent=11 // pred_region
        %p329 = scmp.lt.s32.totalorder %s24, 0
        %s330 = scalar_select %p329, %s24, 0
        %s331 = smul.addr %s330, 8
        %s332 = scalar_lea.vmem %s3, %s331
      $region16: #{axial_spatial_dw.1} parent=11 // pred_fallthru
        _
      // Predicated region
      $region17: #{axial_spatial_dw.1} parent=11 // pred_check
        %p333 = pneg %p179
      $region18: #{axial_spatial_dw.1} parent=11 // pred_check_branch
        %335 = sbr.rel (%p333) target = $region20
      $region19: #{axial_spatial_dw.1} parent=11 // pred_region
        %p336 = scmp.lt.s32.totalorder %s24, 0
        %s337 = scalar_select %p336, %s24, 0
        %s338 = scalar_lea.vmem %s4, %s337
      $region20: #{axial_spatial_dw.1} parent=11 // pred_fallthru
        _
      // Predicated region
      $region21: #{axial_spatial_dw.1} parent=11 // pred_check
        %p339 = pneg %p205
      $region22: #{axial_spatial_dw.1} parent=11 // pred_check_branch
        %341 = sbr.rel (%p339) target = $region24
      $region23: #{axial_spatial_dw.1} parent=11 // pred_region
        %p342 = scmp.lt.s32.totalorder %s24, 0
        %s343 = scalar_select %p342, %s24, 0
        %s344 = smul.addr %s343, 8
        %s345 = scalar_lea.vmem %s5, %s344
      $region24: #{axial_spatial_dw.1} parent=11 // pred_fallthru
        _
      // Predicated region
      $region25: #{axial_spatial_dw.1} parent=11 // pred_check
        %p346 = pneg %p231
      $region26: #{axial_spatial_dw.1} parent=11 // pred_check_branch
        %348 = sbr.rel (%p346) target = $region28
      $region27: #{axial_spatial_dw.1} parent=11 // pred_region
        %p349 = scmp.lt.s32.totalorder %s24, 0
        %s350 = scalar_select %p349, %s24, 0
        %s351 = scalar_lea.vmem %s6, %s350
      $region28: #{axial_spatial_dw.1} parent=11 // pred_fallthru
        _
      // Predicated region
      $region29: #{axial_spatial_dw.1} parent=11 // pred_check
        %p352 = pneg %p257
      $region30: #{axial_spatial_dw.1} parent=11 // pred_check_branch
        %354 = sbr.rel (%p352) target = $region32
      $region31: #{axial_spatial_dw.1} parent=11 // pred_region
        %p355 = scmp.lt.s32.totalorder %s24, 0
        %s356 = scalar_select %p355, %s24, 0
        %s357 = smul.addr %s356, 4
        %s358 = scalar_lea.vmem %s7, %s357
      $region32: #{axial_spatial_dw.1} parent=11 // pred_fallthru
        _
      // Predicated region
      $region33: #{axial_spatial_dw.1} parent=11 // pred_check
        %p359 = pneg %p283
      $region34: #{axial_spatial_dw.1} parent=11 // pred_check_branch
        %361 = sbr.rel (%p359) target = $region36
      $region35: #{axial_spatial_dw.1} parent=11 // pred_region
        %p362 = scmp.lt.s32.totalorder %s24, 0
        %s363 = scalar_select %p362, %s24, 0
        %s364 = scalar_lea.vmem %s8, %s363
      $region36: #{axial_spatial_dw.1} parent=11 // pred_fallthru
        _
    $region12: #{axial_spatial_dw.1} parent=5 // pred_fallthru
      _
    %p365 = scmp.lt.s32.totalorder %s15, 2
    // Predicated region
    $region37: #{axial_spatial_dw.1} parent=5 // pred_check
      %p366 = pneg %p365
    $region38: #{axial_spatial_dw.1} parent=5 // pred_check_branch
      %368 = sbr.rel (%p366) target = $region40
    $region39: #{axial_spatial_dw.1} parent=5 // pred_region
      // Predicated region
      $region41: #{axial_spatial_dw.1} parent=39 // pred_check
        %p369 = pneg %p49
      $region42: #{axial_spatial_dw.1} parent=39 // pred_check_branch
        %371 = sbr.rel (%p369) target = $region44
      $region43: #{axial_spatial_dw.1} parent=39 // pred_region
        %s372 = smul.u32 8, %s23
        %p373 = scmp.lt.s32.totalorder %s372, 15
        %s374 = scalar_select %p373, %s372, 15
        %p375 = scmp.lt.s32.totalorder %s22, 0
        %s376 = scalar_select %p375, %s22, 0
        %s377 = smul.addr %s374, 3
        %s378 = sadd.s32 %s376, %s377
        %s379 = smul.addr %s378, 8
        %s380 = scalar_lea.vmem %s0, %s379
        %s381 = smul.u32 8, %s23
      $region44: #{axial_spatial_dw.1} parent=39 // pred_fallthru
        _
      // Predicated region
      $region45: #{axial_spatial_dw.1} parent=39 // pred_check
        %p382 = pneg %p85
      $region46: #{axial_spatial_dw.1} parent=39 // pred_check_branch
        %384 = sbr.rel (%p382) target = $region48
      $region47: #{axial_spatial_dw.1} parent=39 // pred_region
        %s385 = smul.u32 %s23, 2
        %s386 = ssub.s32 %s385, 1
        %p387 = scmp.gt.s32.totalorder %s386, 0
        %s388 = scalar_select %p387, %s386, 0
        %p389 = scmp.lt.s32.totalorder %s388, 3
        %s390 = scalar_select %p389, %s388, 3
        %p391 = scmp.lt.s32.totalorder %s22, 0
        %s392 = scalar_select %p391, %s22, 0
        %s393 = smul.addr %s390, 12
        %s394 = sadd.s32 %s392, %s393
        %s395 = smul.addr %s394, 8
        %s396 = scalar_lea.vmem %s1, %s395
        %s397 = smul.u32 %s23, 2
        %s398 = ssub.s32 %s397, 1
        %p399 = scmp.gt.s32.totalorder %s398, 0
        %s400 = scalar_select %p399, %s398, 0
      $region48: #{axial_spatial_dw.1} parent=39 // pred_fallthru
        _
      // Predicated region
      $region49: #{axial_spatial_dw.1} parent=39 // pred_check
        %p401 = pneg %p121
      $region50: #{axial_spatial_dw.1} parent=39 // pred_check_branch
        %403 = sbr.rel (%p401) target = $region52
      $region51: #{axial_spatial_dw.1} parent=39 // pred_region
        %s404 = sadd.s32 %s23, 1
        %s405 = smul.u32 %s404, 2
        %p406 = scmp.lt.s32.totalorder %s405, 3
        %s407 = scalar_select %p406, %s405, 3
        %p408 = scmp.lt.s32.totalorder %s407, 3
        %s409 = scalar_select %p408, %s407, 3
        %p410 = scmp.lt.s32.totalorder %s22, 0
        %s411 = scalar_select %p410, %s22, 0
        %s412 = smul.addr %s409, 12
        %s413 = sadd.s32 %s411, %s412
        %s414 = smul.addr %s413, 8
        %s415 = scalar_lea.vmem %s2, %s414
        %s416 = sadd.s32 %s23, 1
        %s417 = smul.u32 %s416, 2
        %p418 = scmp.lt.s32.totalorder %s417, 3
        %s419 = scalar_select %p418, %s417, 3
      $region52: #{axial_spatial_dw.1} parent=39 // pred_fallthru
        _
    $region40: #{axial_spatial_dw.1} parent=5 // pred_fallthru
      _
    %p420 = scmp.le.s32.totalorder 1, %s15
    %p421 = scmp.lt.s32.totalorder %s15, 3
    %p422 = pnand %p420, %p421
    %p423 = pneg %p422
    // Predicated region
    $region53: #{axial_spatial_dw.1} parent=5 // pred_check
      _
    $region54: #{axial_spatial_dw.1} parent=5 // pred_check_branch
      %425 = sbr.rel (%p422) target = $region56
    $region55: #{axial_spatial_dw.1} parent=5 // pred_region
      %s426 = ssub.s32 %s15, 1
      %s427 = smul.u32 8, %s25
      %p428 = scmp.lt.s32.totalorder %s427, 15
      %s429 = scalar_select %p428, %s427, 15
      %p430 = scmp.lt.s32.totalorder %s24, 0
      %s431 = scalar_select %p430, %s24, 0
      %s432 = smul.addr %s429, 3
      %s433 = sadd.s32 %s431, %s432
      %s434 = smul.addr %s433, 8
      %s435 = scalar_lea.vmem %s0, %s434
      %p436 = pneg %p55
      %p437 = pneg %p52
      %s438 = smul.u32 %s25, 2
      %s439 = ssub.s32 %s438, 1
      %p440 = scmp.gt.s32.totalorder %s439, 0
      %s441 = scalar_select %p440, %s439, 0
      %p442 = scmp.lt.s32.totalorder %s441, 3
      %s443 = scalar_select %p442, %s441, 3
      %p444 = scmp.lt.s32.totalorder %s24, 0
      %s445 = scalar_select %p444, %s24, 0
      %s446 = smul.addr %s443, 12
      %s447 = sadd.s32 %s445, %s446
      %s448 = smul.addr %s447, 8
      %s449 = scalar_lea.vmem %s1, %s448
      %p450 = pneg %p91
      %p451 = pneg %p88
      %s452 = sadd.s32 %s25, 1
      %s453 = smul.u32 %s452, 2
      %p454 = scmp.lt.s32.totalorder %s453, 3
      %s455 = scalar_select %p454, %s453, 3
      %p456 = scmp.lt.s32.totalorder %s455, 3
      %s457 = scalar_select %p456, %s455, 3
      %p458 = scmp.lt.s32.totalorder %s24, 0
      %s459 = scalar_select %p458, %s24, 0
      %s460 = smul.addr %s457, 12
      %s461 = sadd.s32 %s459, %s460
      %s462 = smul.addr %s461, 8
      %s463 = scalar_lea.vmem %s2, %s462
      %p464 = pneg %p127
      %p465 = pneg %p124
      %p466 = scmp.lt.s32.totalorder %s24, 0
      %s467 = scalar_select %p466, %s24, 0
      %s468 = smul.addr %s467, 8
      %s469 = scalar_lea.vmem %s3, %s468
      %p470 = pneg %p153
      %p471 = pneg %p150
      %p472 = scmp.lt.s32.totalorder %s24, 0
      %s473 = scalar_select %p472, %s24, 0
      %s474 = scalar_lea.vmem %s4, %s473
      %p475 = pneg %p179
      %p476 = pneg %p176
      %p477 = scmp.lt.s32.totalorder %s24, 0
      %s478 = scalar_select %p477, %s24, 0
      %s479 = smul.addr %s478, 8
      %s480 = scalar_lea.vmem %s5, %s479
      %p481 = pneg %p205
      %p482 = pneg %p202
      %p483 = scmp.lt.s32.totalorder %s24, 0
      %s484 = scalar_select %p483, %s24, 0
      %s485 = scalar_lea.vmem %s6, %s484
      %p486 = pneg %p231
      %p487 = pneg %p228
      %p488 = scmp.lt.s32.totalorder %s24, 0
      %s489 = scalar_select %p488, %s24, 0
      %s490 = smul.addr %s489, 4
      %s491 = scalar_lea.vmem %s7, %s490
      %p492 = pneg %p257
      %p493 = pneg %p254
      %p494 = scmp.lt.s32.totalorder %s24, 0
      %s495 = scalar_select %p494, %s24, 0
      %s496 = scalar_lea.vmem %s8, %s495
      %p497 = pneg %p283
      %p498 = pneg %p280
      %p499 = pneg %p311
      %p500 = pneg %p308
      %s501 = smul.u32 8, %s25
      %p502 = scmp.lt.s32.totalorder %s501, 15
      %s503 = scalar_select %p502, %s501, 15
      %p504 = scmp.lt.s32.totalorder %s24, 0
      %s505 = scalar_select %p504, %s24, 0
      %s506 = smul.addr %s503, 2
      %s507 = sadd.s32 %s505, %s506
      %s508 = smul.addr %s507, 8
      %s509 = scalar_lea.vmem %s9, %s508
      %s510 = smul.u32 8, %s25
      %p511 = scmp.lt.s32.totalorder %s510, 15
      %s512 = scalar_select %p511, %s510, 15
      %p513 = scmp.lt.s32.totalorder %s24, 0
      %s514 = scalar_select %p513, %s24, 0
      %s515 = smul.addr %s512, 3
      %s516 = sadd.s32 %s514, %s515
      %s517 = smul.addr %s516, 8
      %s518 = scalar_lea.vmem %s0, %s517
      %s519 = smul.u32 8, %s25
      %s520 = smul.u32 %s25, 2
      %s521 = ssub.s32 %s520, 1
      %p522 = scmp.gt.s32.totalorder %s521, 0
      %s523 = scalar_select %p522, %s521, 0
      %p524 = scmp.lt.s32.totalorder %s523, 3
      %s525 = scalar_select %p524, %s523, 3
      %p526 = scmp.lt.s32.totalorder %s24, 0
      %s527 = scalar_select %p526, %s24, 0
      %s528 = smul.addr %s525, 12
      %s529 = sadd.s32 %s527, %s528
      %s530 = smul.addr %s529, 8
      %s531 = scalar_lea.vmem %s1, %s530
      %s532 = smul.u32 %s25, 2
      %s533 = ssub.s32 %s532, 1
      %p534 = scmp.gt.s32.totalorder %s533, 0
      %s535 = scalar_select %p534, %s533, 0
      %s536 = sadd.s32 %s25, 1
      %s537 = smul.u32 %s536, 2
      %p538 = scmp.lt.s32.totalorder %s537, 3
      %s539 = scalar_select %p538, %s537, 3
      %p540 = scmp.lt.s32.totalorder %s539, 3
      %s541 = scalar_select %p540, %s539, 3
      %p542 = scmp.lt.s32.totalorder %s24, 0
      %s543 = scalar_select %p542, %s24, 0
      %s544 = smul.addr %s541, 12
      %s545 = sadd.s32 %s543, %s544
      %s546 = smul.addr %s545, 8
      %s547 = scalar_lea.vmem %s2, %s546
      %s548 = sadd.s32 %s25, 1
      %s549 = smul.u32 %s548, 2
      %p550 = scmp.lt.s32.totalorder %s549, 3
      %s551 = scalar_select %p550, %s549, 3
      %p552 = scmp.lt.s32.totalorder %s24, 0
      %s553 = scalar_select %p552, %s24, 0
      %s554 = smul.addr %s553, 8
      %s555 = scalar_lea.vmem %s3, %s554
      %p556 = scmp.lt.s32.totalorder %s24, 0
      %s557 = scalar_select %p556, %s24, 0
      %s558 = scalar_lea.vmem %s4, %s557
      %p559 = scmp.lt.s32.totalorder %s24, 0
      %s560 = scalar_select %p559, %s24, 0
      %s561 = smul.addr %s560, 8
      %s562 = scalar_lea.vmem %s5, %s561
      %p563 = scmp.lt.s32.totalorder %s24, 0
      %s564 = scalar_select %p563, %s24, 0
      %s565 = scalar_lea.vmem %s6, %s564
      %p566 = scmp.lt.s32.totalorder %s24, 0
      %s567 = scalar_select %p566, %s24, 0
      %s568 = smul.addr %s567, 4
      %s569 = scalar_lea.vmem %s7, %s568
      %p570 = scmp.lt.s32.totalorder %s24, 0
      %s571 = scalar_select %p570, %s24, 0
      %s572 = scalar_lea.vmem %s8, %s571
      %s573 = smul.u32 8, %s25
      %p574 = scmp.lt.s32.totalorder %s573, 15
      %s575 = scalar_select %p574, %s573, 15
      %p576 = scmp.lt.s32.totalorder %s24, 0
      %s577 = scalar_select %p576, %s24, 0
      %s578 = smul.addr %s575, 2
      %s579 = sadd.s32 %s577, %s578
      %s580 = smul.addr %s579, 8
      %s581 = scalar_lea.vmem %s9, %s580
      %s582 = smul.u32 8, %s25
      %s583 = smul.u32 %s25, 8
      %v584 = vld [vmem:[%s555] sm:$0x7f]
      %v585 = vld [vmem:[%s562] sm:$0x7f]
      %v586 = vld [vmem:[%s569] sm:$0x7]
      %v587 = vld [vmem:[%s569 + $0x4] sm:$0x7]
      %v588 = vld [vmem:[%s569 + $0x8] sm:$0x7]
      %v589 = vld [vmem:[%s558] sm:$0x1]
      %v590 = vld [vmem:[%s565] sm:$0x1]
      %v591 = vld [vmem:[%s572] sm:$0x1]
      %v592 = vld [vmem:[%s531] sm:$0xff]
      %v593 = vld [vmem:[%s531 + $0x8] sm:$0xff]
      %v594 = vld [vmem:[%s531 + $0x10] sm:$0x3f]
      %v595 = vld [vmem:[%s531 + $0x18] sm:$0xff]
      %v596 = vld [vmem:[%s531 + $0x20] sm:$0xff]
      %v597 = vld [vmem:[%s531 + $0x28] sm:$0x3f]
      %v598 = vld [vmem:[%s531 + $0x30] sm:$0xff]
      %v599 = vld [vmem:[%s531 + $0x38] sm:$0xff]
      %v600 = vld [vmem:[%s531 + $0x40] sm:$0x3f]
      %v601 = vld [vmem:[%s531 + $0x48] sm:$0xff]
      %v602 = vld [vmem:[%s531 + $0x50] sm:$0xff]
      %v603 = vld [vmem:[%s531 + $0x58] sm:$0x3f]
      %v604 = vlaneseq
      %v605 = vshrl.u32 %v604, 7
      %v606 = vsub.s32 0, %v605
      %v607 = vrot.slane %v584, %v606
      %v608 = vmul.f32 %v592, %v607
      %v609 = vmul.f32 %v593, %v607
      %v610 = vmul.f32 %v595, %v607
      %v611 = vmul.f32 %v596, %v607
      %v612 = vmul.f32 %v598, %v607
      %v613 = vmul.f32 %v599, %v607
      %v614 = vmul.f32 %v601, %v607
      %v615 = vmul.f32 %v602, %v607
      %v616 = vlaneseq
      %v617 = vshrl.u32 %v616, 7
      %v618 = vsub.s32 1, %v617
      %v619 = vrot.slane %v584, %v618
      %v620 = vmul.f32 %v592, %v619
      %v621 = vmul.f32 %v593, %v619
      %v622 = vmul.f32 %v594, %v619
      %v623 = vmul.f32 %v595, %v619
      %v624 = vmul.f32 %v596, %v619
      %v625 = vmul.f32 %v597, %v619
      %v626 = vmul.f32 %v598, %v619
      %v627 = vmul.f32 %v599, %v619
      %v628 = vmul.f32 %v600, %v619
      %v629 = vmul.f32 %v601, %v619
      %v630 = vmul.f32 %v602, %v619
      %v631 = vmul.f32 %v603, %v619
      %vm644 = vcmask 1046528
      %v645 = vrot.slane %v620, 1
      %v646 = vrot.slane %v621, 1
      %v647 = vsel %vm644, %v645, %v646
      %v648 = vrot.slane %v622, 1
      %v649 = vsel %vm644, %v646, %v648
      %v650 = vrot.slane %v623, 1
      %v651 = vrot.slane %v624, 1
      %v652 = vsel %vm644, %v650, %v651
      %v653 = vrot.slane %v625, 1
      %v654 = vsel %vm644, %v651, %v653
      %v655 = vrot.slane %v626, 1
      %v656 = vrot.slane %v627, 1
      %v657 = vsel %vm644, %v655, %v656
      %v658 = vrot.slane %v628, 1
      %v659 = vsel %vm644, %v656, %v658
      %v660 = vrot.slane %v629, 1
      %v661 = vrot.slane %v630, 1
      %v662 = vsel %vm644, %v660, %v661
      %v663 = vrot.slane %v631, 1
      %v664 = vsel %vm644, %v661, %v663
      %v673 = vadd.f32 %v608, %v647
      %v674 = vadd.f32 %v609, %v649
      %v675 = vadd.f32 %v610, %v652
      %v676 = vadd.f32 %v611, %v654
      %v677 = vadd.f32 %v612, %v657
      %v678 = vadd.f32 %v613, %v659
      %v679 = vadd.f32 %v614, %v662
      %v680 = vadd.f32 %v615, %v664
      %v681 = vlaneseq
      %v682 = vshrl.u32 %v681, 7
      %v683 = vsub.s32 2, %v682
      %v684 = vrot.slane %v584, %v683
      %v685 = vmul.f32 %v592, %v684
      %v686 = vmul.f32 %v593, %v684
      %v687 = vmul.f32 %v594, %v684
      %v688 = vmul.f32 %v595, %v684
      %v689 = vmul.f32 %v596, %v684
      %v690 = vmul.f32 %v597, %v684
      %v691 = vmul.f32 %v598, %v684
      %v692 = vmul.f32 %v599, %v684
      %v693 = vmul.f32 %v600, %v684
      %v694 = vmul.f32 %v601, %v684
      %v695 = vmul.f32 %v602, %v684
      %v696 = vmul.f32 %v603, %v684
      %vm709 = vcmask 1045504
      %v710 = vrot.slane %v685, 2
      %v711 = vrot.slane %v686, 2
      %v712 = vsel %vm709, %v710, %v711
      %v713 = vrot.slane %v687, 2
      %v714 = vsel %vm709, %v711, %v713
      %v715 = vrot.slane %v688, 2
      %v716 = vrot.slane %v689, 2
      %v717 = vsel %vm709, %v715, %v716
      %v718 = vrot.slane %v690, 2
      %v719 = vsel %vm709, %v716, %v718
      %v720 = vrot.slane %v691, 2
      %v721 = vrot.slane %v692, 2
      %v722 = vsel %vm709, %v720, %v721
      %v723 = vrot.slane %v693, 2
      %v724 = vsel %vm709, %v721, %v723
      %v725 = vrot.slane %v694, 2
      %v726 = vrot.slane %v695, 2
      %v727 = vsel %vm709, %v725, %v726
      %v728 = vrot.slane %v696, 2
      %v729 = vsel %vm709, %v726, %v728
      %v738 = vadd.f32 %v673, %v712
      %v739 = vadd.f32 %v674, %v714
      %v740 = vadd.f32 %v675, %v717
      %v741 = vadd.f32 %v676, %v719
      %v742 = vadd.f32 %v677, %v722
      %v743 = vadd.f32 %v678, %v724
      %v744 = vadd.f32 %v679, %v727
      %v745 = vadd.f32 %v680, %v729
      %v746 = vlaneseq
      %v747 = vshrl.u32 %v746, 7
      %v748 = vsub.s32 3, %v747
      %v749 = vrot.slane %v584, %v748
      %v750 = vmul.f32 %v592, %v749
      %v751 = vmul.f32 %v593, %v749
      %v752 = vmul.f32 %v594, %v749
      %v753 = vmul.f32 %v595, %v749
      %v754 = vmul.f32 %v596, %v749
      %v755 = vmul.f32 %v597, %v749
      %v756 = vmul.f32 %v598, %v749
      %v757 = vmul.f32 %v599, %v749
      %v758 = vmul.f32 %v600, %v749
      %v759 = vmul.f32 %v601, %v749
      %v760 = vmul.f32 %v602, %v749
      %v761 = vmul.f32 %v603, %v749
      %vm774 = vcmask 1044480
      %v775 = vrot.slane %v750, 3
      %v776 = vrot.slane %v751, 3
      %v777 = vsel %vm774, %v775, %v776
      %v778 = vrot.slane %v752, 3
      %v779 = vsel %vm774, %v776, %v778
      %v780 = vrot.slane %v753, 3
      %v781 = vrot.slane %v754, 3
      %v782 = vsel %vm774, %v780, %v781
      %v783 = vrot.slane %v755, 3
      %v784 = vsel %vm774, %v781, %v783
      %v785 = vrot.slane %v756, 3
      %v786 = vrot.slane %v757, 3
      %v787 = vsel %vm774, %v785, %v786
      %v788 = vrot.slane %v758, 3
      %v789 = vsel %vm774, %v786, %v788
      %v790 = vrot.slane %v759, 3
      %v791 = vrot.slane %v760, 3
      %v792 = vsel %vm774, %v790, %v791
      %v793 = vrot.slane %v761, 3
      %v794 = vsel %vm774, %v791, %v793
      %v803 = vadd.f32 %v738, %v777
      %v804 = vadd.f32 %v739, %v779
      %v805 = vadd.f32 %v740, %v782
      %v806 = vadd.f32 %v741, %v784
      %v807 = vadd.f32 %v742, %v787
      %v808 = vadd.f32 %v743, %v789
      %v809 = vadd.f32 %v744, %v792
      %v810 = vadd.f32 %v745, %v794
      %v811 = vlaneseq
      %v812 = vshrl.u32 %v811, 7
      %v813 = vsub.s32 4, %v812
      %v814 = vrot.slane %v584, %v813
      %v815 = vmul.f32 %v592, %v814
      %v816 = vmul.f32 %v593, %v814
      %v817 = vmul.f32 %v594, %v814
      %v818 = vmul.f32 %v595, %v814
      %v819 = vmul.f32 %v596, %v814
      %v820 = vmul.f32 %v597, %v814
      %v821 = vmul.f32 %v598, %v814
      %v822 = vmul.f32 %v599, %v814
      %v823 = vmul.f32 %v600, %v814
      %v824 = vmul.f32 %v601, %v814
      %v825 = vmul.f32 %v602, %v814
      %v826 = vmul.f32 %v603, %v814
      %vm839 = vcmask 1043456
      %v840 = vrot.slane %v815, 4
      %v841 = vrot.slane %v816, 4
      %v842 = vsel %vm839, %v840, %v841
      %v843 = vrot.slane %v817, 4
      %v844 = vsel %vm839, %v841, %v843
      %v845 = vrot.slane %v818, 4
      %v846 = vrot.slane %v819, 4
      %v847 = vsel %vm839, %v845, %v846
      %v848 = vrot.slane %v820, 4
      %v849 = vsel %vm839, %v846, %v848
      %v850 = vrot.slane %v821, 4
      %v851 = vrot.slane %v822, 4
      %v852 = vsel %vm839, %v850, %v851
      %v853 = vrot.slane %v823, 4
      %v854 = vsel %vm839, %v851, %v853
      %v855 = vrot.slane %v824, 4
      %v856 = vrot.slane %v825, 4
      %v857 = vsel %vm839, %v855, %v856
      %v858 = vrot.slane %v826, 4
      %v859 = vsel %vm839, %v856, %v858
      %v868 = vadd.f32 %v803, %v842
      %v869 = vadd.f32 %v804, %v844
      %v870 = vadd.f32 %v805, %v847
      %v871 = vadd.f32 %v806, %v849
      %v872 = vadd.f32 %v807, %v852
      %v873 = vadd.f32 %v808, %v854
      %v874 = vadd.f32 %v809, %v857
      %v875 = vadd.f32 %v810, %v859
      %v876 = vlaneseq
      %v877 = vshrl.u32 %v876, 7
      %v878 = vsub.s32 5, %v877
      %v879 = vrot.slane %v584, %v878
      %v880 = vmul.f32 %v592, %v879
      %v881 = vmul.f32 %v593, %v879
      %v882 = vmul.f32 %v594, %v879
      %v883 = vmul.f32 %v595, %v879
      %v884 = vmul.f32 %v596, %v879
      %v885 = vmul.f32 %v597, %v879
      %v886 = vmul.f32 %v598, %v879
      %v887 = vmul.f32 %v599, %v879
      %v888 = vmul.f32 %v600, %v879
      %v889 = vmul.f32 %v601, %v879
      %v890 = vmul.f32 %v602, %v879
      %v891 = vmul.f32 %v603, %v879
      %vm904 = vcmask 1042432
      %v905 = vrot.slane %v880, 5
      %v906 = vrot.slane %v881, 5
      %v907 = vsel %vm904, %v905, %v906
      %v908 = vrot.slane %v882, 5
      %v909 = vsel %vm904, %v906, %v908
      %v910 = vrot.slane %v883, 5
      %v911 = vrot.slane %v884, 5
      %v912 = vsel %vm904, %v910, %v911
      %v913 = vrot.slane %v885, 5
      %v914 = vsel %vm904, %v911, %v913
      %v915 = vrot.slane %v886, 5
      %v916 = vrot.slane %v887, 5
      %v917 = vsel %vm904, %v915, %v916
      %v918 = vrot.slane %v888, 5
      %v919 = vsel %vm904, %v916, %v918
      %v920 = vrot.slane %v889, 5
      %v921 = vrot.slane %v890, 5
      %v922 = vsel %vm904, %v920, %v921
      %v923 = vrot.slane %v891, 5
      %v924 = vsel %vm904, %v921, %v923
      %v933 = vadd.f32 %v868, %v907
      %v934 = vadd.f32 %v869, %v909
      %v935 = vadd.f32 %v870, %v912
      %v936 = vadd.f32 %v871, %v914
      %v937 = vadd.f32 %v872, %v917
      %v938 = vadd.f32 %v873, %v919
      %v939 = vadd.f32 %v874, %v922
      %v940 = vadd.f32 %v875, %v924
      %v941 = vlaneseq
      %v942 = vshrl.u32 %v941, 7
      %v943 = vsub.s32 6, %v942
      %v944 = vrot.slane %v584, %v943
      %v945 = vmul.f32 %v592, %v944
      %v946 = vmul.f32 %v593, %v944
      %v947 = vmul.f32 %v594, %v944
      %v948 = vmul.f32 %v595, %v944
      %v949 = vmul.f32 %v596, %v944
      %v950 = vmul.f32 %v597, %v944
      %v951 = vmul.f32 %v598, %v944
      %v952 = vmul.f32 %v599, %v944
      %v953 = vmul.f32 %v600, %v944
      %v954 = vmul.f32 %v601, %v944
      %v955 = vmul.f32 %v602, %v944
      %v956 = vmul.f32 %v603, %v944
      %vm969 = vcmask 1041408
      %v970 = vrot.slane %v945, 6
      %v971 = vrot.slane %v946, 6
      %v972 = vsel %vm969, %v970, %v971
      %v973 = vrot.slane %v947, 6
      %v974 = vsel %vm969, %v971, %v973
      %v975 = vrot.slane %v948, 6
      %v976 = vrot.slane %v949, 6
      %v977 = vsel %vm969, %v975, %v976
      %v978 = vrot.slane %v950, 6
      %v979 = vsel %vm969, %v976, %v978
      %v980 = vrot.slane %v951, 6
      %v981 = vrot.slane %v952, 6
      %v982 = vsel %vm969, %v980, %v981
      %v983 = vrot.slane %v953, 6
      %v984 = vsel %vm969, %v981, %v983
      %v985 = vrot.slane %v954, 6
      %v986 = vrot.slane %v955, 6
      %v987 = vsel %vm969, %v985, %v986
      %v988 = vrot.slane %v956, 6
      %v989 = vsel %vm969, %v986, %v988
      %v998 = vadd.f32 %v933, %v972
      %v999 = vadd.f32 %v934, %v974
      %v1000 = vadd.f32 %v935, %v977
      %v1001 = vadd.f32 %v936, %v979
      %v1002 = vadd.f32 %v937, %v982
      %v1003 = vadd.f32 %v938, %v984
      %v1004 = vadd.f32 %v939, %v987
      %v1005 = vadd.f32 %v940, %v989
      %s1006 = ssub.s32 %s583, 4
      %v1007 = vstv %s1006
      %v1008 = vadd.s32 %v1007, 1
      %v1009 = vadd.s32 %v1007, 2
      %v1010 = vadd.s32 %v1007, 3
      %vm1011 = vcmp.ge.s32.totalorder %v1007, 0
      %vm1012 = vcmp.ge.s32.totalorder %v1008, 0
      %vm1013 = vcmp.ge.s32.totalorder %v1009, 0
      %vm1014 = vcmp.ge.s32.totalorder %v1010, 0
      %vm1015 = vcmp.lt.s32.totalorder %v1007, 16
      %vm1016 = vcmp.lt.s32.totalorder %v1008, 16
      %vm1017 = vcmp.lt.s32.totalorder %v1009, 16
      %vm1018 = vcmp.lt.s32.totalorder %v1010, 16
      %vm1019 = vmand %vm1011, %vm1015
      %vm1020 = vmand %vm1012, %vm1016
      %vm1021 = vmand %vm1013, %vm1017
      %vm1022 = vmand %vm1014, %vm1018
      %v1023 = vsel %vm1019, 1, 0
      %v1024 = vsel %vm1020, 1, 0
      %v1025 = vsel %vm1021, 1, 0
      %v1026 = vsel %vm1022, 1, 0
      %v1027 = vcvt.s32.f32 %v1023
      %v1028 = vcvt.s32.f32 %v1024
      %v1029 = vcvt.s32.f32 %v1025
      %v1030 = vcvt.s32.f32 %v1026
      %v1032 = vlaneseq
      %v1033 = vshrl.u32 %v1032, 7
      %v1034 = vsub.s32 0, %v1033
      %v1035 = vrot.slane %v589, %v1034
      %v1037 = vadd.f32 %v998, %v1035
      %v1038 = vadd.f32 %v999, %v1035
      %v1039 = vadd.f32 %v1000, %v1035
      %v1040 = vadd.f32 %v1001, %v1035
      %v1041 = vadd.f32 %v1002, %v1035
      %v1042 = vadd.f32 %v1003, %v1035
      %v1043 = vadd.f32 %v1004, %v1035
      %v1044 = vadd.f32 %v1005, %v1035
      %v1045 = vmul.f32 %v1037, %v1027
      %v1046 = vmul.f32 %v1038, %v1027
      %v1047 = vmul.f32 %v1039, %v1028
      %v1048 = vmul.f32 %v1040, %v1028
      %v1049 = vmul.f32 %v1041, %v1029
      %v1050 = vmul.f32 %v1042, %v1029
      %v1051 = vmul.f32 %v1043, %v1030
      %v1052 = vmul.f32 %v1044, %v1030
      %vm1053 = vcmask 261120
      %1054 = vst.msk [vmem:[#allocation2] sm:$0xff] %vm1053, %v1045
      %1055 = vst.msk [vmem:[#allocation2 + $0x8] sm:$0xff] %vm1053, %v1046
      %1056 = vst.msk [vmem:[#allocation2 + $0x10] sm:$0xff] %vm1053, %v1047
      %1057 = vst.msk [vmem:[#allocation2 + $0x18] sm:$0xff] %vm1053, %v1048
      %1058 = vst.msk [vmem:[#allocation2 + $0x20] sm:$0xff] %vm1053, %v1049
      %1059 = vst.msk [vmem:[#allocation2 + $0x28] sm:$0xff] %vm1053, %v1050
      %1060 = vst.msk [vmem:[#allocation2 + $0x30] sm:$0xff] %vm1053, %v1051
      %1061 = vst.msk [vmem:[#allocation2 + $0x38] sm:$0xff] %vm1053, %v1052
      %v1062 = vld [vmem:[%s518] sm:$0xff]
      %v1063 = vld [vmem:[%s518 + $0x8] sm:$0xff]
      %v1064 = vld [vmem:[%s518 + $0x10] sm:$0x3f]
      %v1065 = vld [vmem:[%s518 + $0x18] sm:$0xff]
      %v1066 = vld [vmem:[%s518 + $0x20] sm:$0xff]
      %v1067 = vld [vmem:[%s518 + $0x28] sm:$0x3f]
      %v1068 = vld [vmem:[%s518 + $0x30] sm:$0xff]
      %v1069 = vld [vmem:[%s518 + $0x38] sm:$0xff]
      %v1070 = vld [vmem:[%s518 + $0x40] sm:$0x3f]
      %v1071 = vld [vmem:[%s518 + $0x48] sm:$0xff]
      %v1072 = vld [vmem:[%s518 + $0x50] sm:$0xff]
      %v1073 = vld [vmem:[%s518 + $0x58] sm:$0x3f]
      %v1074 = vld [vmem:[%s518 + $0x60] sm:$0xff]
      %v1075 = vld [vmem:[%s518 + $0x68] sm:$0xff]
      %v1076 = vld [vmem:[%s518 + $0x70] sm:$0x3f]
      %v1077 = vld [vmem:[%s518 + $0x78] sm:$0xff]
      %v1078 = vld [vmem:[%s518 + $0x80] sm:$0xff]
      %v1079 = vld [vmem:[%s518 + $0x88] sm:$0x3f]
      %v1080 = vld [vmem:[%s518 + $0x90] sm:$0xff]
      %v1081 = vld [vmem:[%s518 + $0x98] sm:$0xff]
      %v1082 = vld [vmem:[%s518 + $0xa0] sm:$0x3f]
      %v1083 = vld [vmem:[%s518 + $0xa8] sm:$0xff]
      %v1084 = vld [vmem:[%s518 + $0xb0] sm:$0xff]
      %v1085 = vld [vmem:[%s518 + $0xb8] sm:$0x3f]
      %v1086 = vmul.f32 %v1062, %v607
      %v1087 = vmul.f32 %v1063, %v607
      %v1088 = vmul.f32 %v1065, %v607
      %v1089 = vmul.f32 %v1066, %v607
      %v1090 = vmul.f32 %v1068, %v607
      %v1091 = vmul.f32 %v1069, %v607
      %v1092 = vmul.f32 %v1071, %v607
      %v1093 = vmul.f32 %v1072, %v607
      %v1094 = vmul.f32 %v1074, %v607
      %v1095 = vmul.f32 %v1075, %v607
      %v1096 = vmul.f32 %v1077, %v607
      %v1097 = vmul.f32 %v1078, %v607
      %v1098 = vmul.f32 %v1080, %v607
      %v1099 = vmul.f32 %v1081, %v607
      %v1100 = vmul.f32 %v1083, %v607
      %v1101 = vmul.f32 %v1084, %v607
      %v1102 = vmul.f32 %v1062, %v619
      %v1103 = vmul.f32 %v1063, %v619
      %v1104 = vmul.f32 %v1064, %v619
      %v1105 = vmul.f32 %v1065, %v619
      %v1106 = vmul.f32 %v1066, %v619
      %v1107 = vmul.f32 %v1067, %v619
      %v1108 = vmul.f32 %v1068, %v619
      %v1109 = vmul.f32 %v1069, %v619
      %v1110 = vmul.f32 %v1070, %v619
      %v1111 = vmul.f32 %v1071, %v619
      %v1112 = vmul.f32 %v1072, %v619
      %v1113 = vmul.f32 %v1073, %v619
      %v1114 = vmul.f32 %v1074, %v619
      %v1115 = vmul.f32 %v1075, %v619
      %v1116 = vmul.f32 %v1076, %v619
      %v1117 = vmul.f32 %v1077, %v619
      %v1118 = vmul.f32 %v1078, %v619
      %v1119 = vmul.f32 %v1079, %v619
      %v1120 = vmul.f32 %v1080, %v619
      %v1121 = vmul.f32 %v1081, %v619
      %v1122 = vmul.f32 %v1082, %v619
      %v1123 = vmul.f32 %v1083, %v619
      %v1124 = vmul.f32 %v1084, %v619
      %v1125 = vmul.f32 %v1085, %v619
      %v1150 = vrot.slane %v1102, 1
      %v1151 = vrot.slane %v1103, 1
      %v1152 = vsel %vm644, %v1150, %v1151
      %v1153 = vrot.slane %v1104, 1
      %v1154 = vsel %vm644, %v1151, %v1153
      %v1155 = vrot.slane %v1105, 1
      %v1156 = vrot.slane %v1106, 1
      %v1157 = vsel %vm644, %v1155, %v1156
      %v1158 = vrot.slane %v1107, 1
      %v1159 = vsel %vm644, %v1156, %v1158
      %v1160 = vrot.slane %v1108, 1
      %v1161 = vrot.slane %v1109, 1
      %v1162 = vsel %vm644, %v1160, %v1161
      %v1163 = vrot.slane %v1110, 1
      %v1164 = vsel %vm644, %v1161, %v1163
      %v1165 = vrot.slane %v1111, 1
      %v1166 = vrot.slane %v1112, 1
      %v1167 = vsel %vm644, %v1165, %v1166
      %v1168 = vrot.slane %v1113, 1
      %v1169 = vsel %vm644, %v1166, %v1168
      %v1170 = vrot.slane %v1114, 1
      %v1171 = vrot.slane %v1115, 1
      %v1172 = vsel %vm644, %v1170, %v1171
      %v1173 = vrot.slane %v1116, 1
      %v1174 = vsel %vm644, %v1171, %v1173
      %v1175 = vrot.slane %v1117, 1
      %v1176 = vrot.slane %v1118, 1
      %v1177 = vsel %vm644, %v1175, %v1176
      %v1178 = vrot.slane %v1119, 1
      %v1179 = vsel %vm644, %v1176, %v1178
      %v1180 = vrot.slane %v1120, 1
      %v1181 = vrot.slane %v1121, 1
      %v1182 = vsel %vm644, %v1180, %v1181
      %v1183 = vrot.slane %v1122, 1
      %v1184 = vsel %vm644, %v1181, %v1183
      %v1185 = vrot.slane %v1123, 1
      %v1186 = vrot.slane %v1124, 1
      %v1187 = vsel %vm644, %v1185, %v1186
      %v1188 = vrot.slane %v1125, 1
      %v1189 = vsel %vm644, %v1186, %v1188
      %v1206 = vadd.f32 %v1086, %v1152
      %v1207 = vadd.f32 %v1087, %v1154
      %v1208 = vadd.f32 %v1088, %v1157
      %v1209 = vadd.f32 %v1089, %v1159
      %v1210 = vadd.f32 %v1090, %v1162
      %v1211 = vadd.f32 %v1091, %v1164
      %v1212 = vadd.f32 %v1092, %v1167
      %v1213 = vadd.f32 %v1093, %v1169
      %v1214 = vadd.f32 %v1094, %v1172
      %v1215 = vadd.f32 %v1095, %v1174
      %v1216 = vadd.f32 %v1096, %v1177
      %v1217 = vadd.f32 %v1097, %v1179
      %v1218 = vadd.f32 %v1098, %v1182
      %v1219 = vadd.f32 %v1099, %v1184
      %v1220 = vadd.f32 %v1100, %v1187
      %v1221 = vadd.f32 %v1101, %v1189
      %v1222 = vmul.f32 %v1062, %v684
      %v1223 = vmul.f32 %v1063, %v684
      %v1224 = vmul.f32 %v1064, %v684
      %v1225 = vmul.f32 %v1065, %v684
      %v1226 = vmul.f32 %v1066, %v684
      %v1227 = vmul.f32 %v1067, %v684
      %v1228 = vmul.f32 %v1068, %v684
      %v1229 = vmul.f32 %v1069, %v684
      %v1230 = vmul.f32 %v1070, %v684
      %v1231 = vmul.f32 %v1071, %v684
      %v1232 = vmul.f32 %v1072, %v684
      %v1233 = vmul.f32 %v1073, %v684
      %v1234 = vmul.f32 %v1074, %v684
      %v1235 = vmul.f32 %v1075, %v684
      %v1236 = vmul.f32 %v1076, %v684
      %v1237 = vmul.f32 %v1077, %v684
      %v1238 = vmul.f32 %v1078, %v684
      %v1239 = vmul.f32 %v1079, %v684
      %v1240 = vmul.f32 %v1080, %v684
      %v1241 = vmul.f32 %v1081, %v684
      %v1242 = vmul.f32 %v1082, %v684
      %v1243 = vmul.f32 %v1083, %v684
      %v1244 = vmul.f32 %v1084, %v684
      %v1245 = vmul.f32 %v1085, %v684
      %v1270 = vrot.slane %v1222, 2
      %v1271 = vrot.slane %v1223, 2
      %v1272 = vsel %vm709, %v1270, %v1271
      %v1273 = vrot.slane %v1224, 2
      %v1274 = vsel %vm709, %v1271, %v1273
      %v1275 = vrot.slane %v1225, 2
      %v1276 = vrot.slane %v1226, 2
      %v1277 = vsel %vm709, %v1275, %v1276
      %v1278 = vrot.slane %v1227, 2
      %v1279 = vsel %vm709, %v1276, %v1278
      %v1280 = vrot.slane %v1228, 2
      %v1281 = vrot.slane %v1229, 2
      %v1282 = vsel %vm709, %v1280, %v1281
      %v1283 = vrot.slane %v1230, 2
      %v1284 = vsel %vm709, %v1281, %v1283
      %v1285 = vrot.slane %v1231, 2
      %v1286 = vrot.slane %v1232, 2
      %v1287 = vsel %vm709, %v1285, %v1286
      %v1288 = vrot.slane %v1233, 2
      %v1289 = vsel %vm709, %v1286, %v1288
      %v1290 = vrot.slane %v1234, 2
      %v1291 = vrot.slane %v1235, 2
      %v1292 = vsel %vm709, %v1290, %v1291
      %v1293 = vrot.slane %v1236, 2
      %v1294 = vsel %vm709, %v1291, %v1293
      %v1295 = vrot.slane %v1237, 2
      %v1296 = vrot.slane %v1238, 2
      %v1297 = vsel %vm709, %v1295, %v1296
      %v1298 = vrot.slane %v1239, 2
      %v1299 = vsel %vm709, %v1296, %v1298
      %v1300 = vrot.slane %v1240, 2
      %v1301 = vrot.slane %v1241, 2
      %v1302 = vsel %vm709, %v1300, %v1301
      %v1303 = vrot.slane %v1242, 2
      %v1304 = vsel %vm709, %v1301, %v1303
      %v1305 = vrot.slane %v1243, 2
      %v1306 = vrot.slane %v1244, 2
      %v1307 = vsel %vm709, %v1305, %v1306
      %v1308 = vrot.slane %v1245, 2
      %v1309 = vsel %vm709, %v1306, %v1308
      %v1326 = vadd.f32 %v1206, %v1272
      %v1327 = vadd.f32 %v1207, %v1274
      %v1328 = vadd.f32 %v1208, %v1277
      %v1329 = vadd.f32 %v1209, %v1279
      %v1330 = vadd.f32 %v1210, %v1282
      %v1331 = vadd.f32 %v1211, %v1284
      %v1332 = vadd.f32 %v1212, %v1287
      %v1333 = vadd.f32 %v1213, %v1289
      %v1334 = vadd.f32 %v1214, %v1292
      %v1335 = vadd.f32 %v1215, %v1294
      %v1336 = vadd.f32 %v1216, %v1297
      %v1337 = vadd.f32 %v1217, %v1299
      %v1338 = vadd.f32 %v1218, %v1302
      %v1339 = vadd.f32 %v1219, %v1304
      %v1340 = vadd.f32 %v1220, %v1307
      %v1341 = vadd.f32 %v1221, %v1309
      %v1342 = vmul.f32 %v1062, %v749
      %v1343 = vmul.f32 %v1063, %v749
      %v1344 = vmul.f32 %v1064, %v749
      %v1345 = vmul.f32 %v1065, %v749
      %v1346 = vmul.f32 %v1066, %v749
      %v1347 = vmul.f32 %v1067, %v749
      %v1348 = vmul.f32 %v1068, %v749
      %v1349 = vmul.f32 %v1069, %v749
      %v1350 = vmul.f32 %v1070, %v749
      %v1351 = vmul.f32 %v1071, %v749
      %v1352 = vmul.f32 %v1072, %v749
      %v1353 = vmul.f32 %v1073, %v749
      %v1354 = vmul.f32 %v1074, %v749
      %v1355 = vmul.f32 %v1075, %v749
      %v1356 = vmul.f32 %v1076, %v749
      %v1357 = vmul.f32 %v1077, %v749
      %v1358 = vmul.f32 %v1078, %v749
      %v1359 = vmul.f32 %v1079, %v749
      %v1360 = vmul.f32 %v1080, %v749
      %v1361 = vmul.f32 %v1081, %v749
      %v1362 = vmul.f32 %v1082, %v749
      %v1363 = vmul.f32 %v1083, %v749
      %v1364 = vmul.f32 %v1084, %v749
      %v1365 = vmul.f32 %v1085, %v749
      %v1390 = vrot.slane %v1342, 3
      %v1391 = vrot.slane %v1343, 3
      %v1392 = vsel %vm774, %v1390, %v1391
      %v1393 = vrot.slane %v1344, 3
      %v1394 = vsel %vm774, %v1391, %v1393
      %v1395 = vrot.slane %v1345, 3
      %v1396 = vrot.slane %v1346, 3
      %v1397 = vsel %vm774, %v1395, %v1396
      %v1398 = vrot.slane %v1347, 3
      %v1399 = vsel %vm774, %v1396, %v1398
      %v1400 = vrot.slane %v1348, 3
      %v1401 = vrot.slane %v1349, 3
      %v1402 = vsel %vm774, %v1400, %v1401
      %v1403 = vrot.slane %v1350, 3
      %v1404 = vsel %vm774, %v1401, %v1403
      %v1405 = vrot.slane %v1351, 3
      %v1406 = vrot.slane %v1352, 3
      %v1407 = vsel %vm774, %v1405, %v1406
      %v1408 = vrot.slane %v1353, 3
      %v1409 = vsel %vm774, %v1406, %v1408
      %v1410 = vrot.slane %v1354, 3
      %v1411 = vrot.slane %v1355, 3
      %v1412 = vsel %vm774, %v1410, %v1411
      %v1413 = vrot.slane %v1356, 3
      %v1414 = vsel %vm774, %v1411, %v1413
      %v1415 = vrot.slane %v1357, 3
      %v1416 = vrot.slane %v1358, 3
      %v1417 = vsel %vm774, %v1415, %v1416
      %v1418 = vrot.slane %v1359, 3
      %v1419 = vsel %vm774, %v1416, %v1418
      %v1420 = vrot.slane %v1360, 3
      %v1421 = vrot.slane %v1361, 3
      %v1422 = vsel %vm774, %v1420, %v1421
      %v1423 = vrot.slane %v1362, 3
      %v1424 = vsel %vm774, %v1421, %v1423
      %v1425 = vrot.slane %v1363, 3
      %v1426 = vrot.slane %v1364, 3
      %v1427 = vsel %vm774, %v1425, %v1426
      %v1428 = vrot.slane %v1365, 3
      %v1429 = vsel %vm774, %v1426, %v1428
      %v1446 = vadd.f32 %v1326, %v1392
      %v1447 = vadd.f32 %v1327, %v1394
      %v1448 = vadd.f32 %v1328, %v1397
      %v1449 = vadd.f32 %v1329, %v1399
      %v1450 = vadd.f32 %v1330, %v1402
      %v1451 = vadd.f32 %v1331, %v1404
      %v1452 = vadd.f32 %v1332, %v1407
      %v1453 = vadd.f32 %v1333, %v1409
      %v1454 = vadd.f32 %v1334, %v1412
      %v1455 = vadd.f32 %v1335, %v1414
      %v1456 = vadd.f32 %v1336, %v1417
      %v1457 = vadd.f32 %v1337, %v1419
      %v1458 = vadd.f32 %v1338, %v1422
      %v1459 = vadd.f32 %v1339, %v1424
      %v1460 = vadd.f32 %v1340, %v1427
      %v1461 = vadd.f32 %v1341, %v1429
      %v1462 = vmul.f32 %v1062, %v814
      %v1463 = vmul.f32 %v1063, %v814
      %v1464 = vmul.f32 %v1064, %v814
      %v1465 = vmul.f32 %v1065, %v814
      %v1466 = vmul.f32 %v1066, %v814
      %v1467 = vmul.f32 %v1067, %v814
      %v1468 = vmul.f32 %v1068, %v814
      %v1469 = vmul.f32 %v1069, %v814
      %v1470 = vmul.f32 %v1070, %v814
      %v1471 = vmul.f32 %v1071, %v814
      %v1472 = vmul.f32 %v1072, %v814
      %v1473 = vmul.f32 %v1073, %v814
      %v1474 = vmul.f32 %v1074, %v814
      %v1475 = vmul.f32 %v1075, %v814
      %v1476 = vmul.f32 %v1076, %v814
      %v1477 = vmul.f32 %v1077, %v814
      %v1478 = vmul.f32 %v1078, %v814
      %v1479 = vmul.f32 %v1079, %v814
      %v1480 = vmul.f32 %v1080, %v814
      %v1481 = vmul.f32 %v1081, %v814
      %v1482 = vmul.f32 %v1082, %v814
      %v1483 = vmul.f32 %v1083, %v814
      %v1484 = vmul.f32 %v1084, %v814
      %v1485 = vmul.f32 %v1085, %v814
      %v1510 = vrot.slane %v1462, 4
      %v1511 = vrot.slane %v1463, 4
      %v1512 = vsel %vm839, %v1510, %v1511
      %v1513 = vrot.slane %v1464, 4
      %v1514 = vsel %vm839, %v1511, %v1513
      %v1515 = vrot.slane %v1465, 4
      %v1516 = vrot.slane %v1466, 4
      %v1517 = vsel %vm839, %v1515, %v1516
      %v1518 = vrot.slane %v1467, 4
      %v1519 = vsel %vm839, %v1516, %v1518
      %v1520 = vrot.slane %v1468, 4
      %v1521 = vrot.slane %v1469, 4
      %v1522 = vsel %vm839, %v1520, %v1521
      %v1523 = vrot.slane %v1470, 4
      %v1524 = vsel %vm839, %v1521, %v1523
      %v1525 = vrot.slane %v1471, 4
      %v1526 = vrot.slane %v1472, 4
      %v1527 = vsel %vm839, %v1525, %v1526
      %v1528 = vrot.slane %v1473, 4
      %v1529 = vsel %vm839, %v1526, %v1528
      %v1530 = vrot.slane %v1474, 4
      %v1531 = vrot.slane %v1475, 4
      %v1532 = vsel %vm839, %v1530, %v1531
      %v1533 = vrot.slane %v1476, 4
      %v1534 = vsel %vm839, %v1531, %v1533
      %v1535 = vrot.slane %v1477, 4
      %v1536 = vrot.slane %v1478, 4
      %v1537 = vsel %vm839, %v1535, %v1536
      %v1538 = vrot.slane %v1479, 4
      %v1539 = vsel %vm839, %v1536, %v1538
      %v1540 = vrot.slane %v1480, 4
      %v1541 = vrot.slane %v1481, 4
      %v1542 = vsel %vm839, %v1540, %v1541
      %v1543 = vrot.slane %v1482, 4
      %v1544 = vsel %vm839, %v1541, %v1543
      %v1545 = vrot.slane %v1483, 4
      %v1546 = vrot.slane %v1484, 4
      %v1547 = vsel %vm839, %v1545, %v1546
      %v1548 = vrot.slane %v1485, 4
      %v1549 = vsel %vm839, %v1546, %v1548
      %v1566 = vadd.f32 %v1446, %v1512
      %v1567 = vadd.f32 %v1447, %v1514
      %v1568 = vadd.f32 %v1448, %v1517
      %v1569 = vadd.f32 %v1449, %v1519
      %v1570 = vadd.f32 %v1450, %v1522
      %v1571 = vadd.f32 %v1451, %v1524
      %v1572 = vadd.f32 %v1452, %v1527
      %v1573 = vadd.f32 %v1453, %v1529
      %v1574 = vadd.f32 %v1454, %v1532
      %v1575 = vadd.f32 %v1455, %v1534
      %v1576 = vadd.f32 %v1456, %v1537
      %v1577 = vadd.f32 %v1457, %v1539
      %v1578 = vadd.f32 %v1458, %v1542
      %v1579 = vadd.f32 %v1459, %v1544
      %v1580 = vadd.f32 %v1460, %v1547
      %v1581 = vadd.f32 %v1461, %v1549
      %v1582 = vmul.f32 %v1062, %v879
      %v1583 = vmul.f32 %v1063, %v879
      %v1584 = vmul.f32 %v1064, %v879
      %v1585 = vmul.f32 %v1065, %v879
      %v1586 = vmul.f32 %v1066, %v879
      %v1587 = vmul.f32 %v1067, %v879
      %v1588 = vmul.f32 %v1068, %v879
      %v1589 = vmul.f32 %v1069, %v879
      %v1590 = vmul.f32 %v1070, %v879
      %v1591 = vmul.f32 %v1071, %v879
      %v1592 = vmul.f32 %v1072, %v879
      %v1593 = vmul.f32 %v1073, %v879
      %v1594 = vmul.f32 %v1074, %v879
      %v1595 = vmul.f32 %v1075, %v879
      %v1596 = vmul.f32 %v1076, %v879
      %v1597 = vmul.f32 %v1077, %v879
      %v1598 = vmul.f32 %v1078, %v879
      %v1599 = vmul.f32 %v1079, %v879
      %v1600 = vmul.f32 %v1080, %v879
      %v1601 = vmul.f32 %v1081, %v879
      %v1602 = vmul.f32 %v1082, %v879
      %v1603 = vmul.f32 %v1083, %v879
      %v1604 = vmul.f32 %v1084, %v879
      %v1605 = vmul.f32 %v1085, %v879
      %v1630 = vrot.slane %v1582, 5
      %v1631 = vrot.slane %v1583, 5
      %v1632 = vsel %vm904, %v1630, %v1631
      %v1633 = vrot.slane %v1584, 5
      %v1634 = vsel %vm904, %v1631, %v1633
      %v1635 = vrot.slane %v1585, 5
      %v1636 = vrot.slane %v1586, 5
      %v1637 = vsel %vm904, %v1635, %v1636
      %v1638 = vrot.slane %v1587, 5
      %v1639 = vsel %vm904, %v1636, %v1638
      %v1640 = vrot.slane %v1588, 5
      %v1641 = vrot.slane %v1589, 5
      %v1642 = vsel %vm904, %v1640, %v1641
      %v1643 = vrot.slane %v1590, 5
      %v1644 = vsel %vm904, %v1641, %v1643
      %v1645 = vrot.slane %v1591, 5
      %v1646 = vrot.slane %v1592, 5
      %v1647 = vsel %vm904, %v1645, %v1646
      %v1648 = vrot.slane %v1593, 5
      %v1649 = vsel %vm904, %v1646, %v1648
      %v1650 = vrot.slane %v1594, 5
      %v1651 = vrot.slane %v1595, 5
      %v1652 = vsel %vm904, %v1650, %v1651
      %v1653 = vrot.slane %v1596, 5
      %v1654 = vsel %vm904, %v1651, %v1653
      %v1655 = vrot.slane %v1597, 5
      %v1656 = vrot.slane %v1598, 5
      %v1657 = vsel %vm904, %v1655, %v1656
      %v1658 = vrot.slane %v1599, 5
      %v1659 = vsel %vm904, %v1656, %v1658
      %v1660 = vrot.slane %v1600, 5
      %v1661 = vrot.slane %v1601, 5
      %v1662 = vsel %vm904, %v1660, %v1661
      %v1663 = vrot.slane %v1602, 5
      %v1664 = vsel %vm904, %v1661, %v1663
      %v1665 = vrot.slane %v1603, 5
      %v1666 = vrot.slane %v1604, 5
      %v1667 = vsel %vm904, %v1665, %v1666
      %v1668 = vrot.slane %v1605, 5
      %v1669 = vsel %vm904, %v1666, %v1668
      %v1686 = vadd.f32 %v1566, %v1632
      %v1687 = vadd.f32 %v1567, %v1634
      %v1688 = vadd.f32 %v1568, %v1637
      %v1689 = vadd.f32 %v1569, %v1639
      %v1690 = vadd.f32 %v1570, %v1642
      %v1691 = vadd.f32 %v1571, %v1644
      %v1692 = vadd.f32 %v1572, %v1647
      %v1693 = vadd.f32 %v1573, %v1649
      %v1694 = vadd.f32 %v1574, %v1652
      %v1695 = vadd.f32 %v1575, %v1654
      %v1696 = vadd.f32 %v1576, %v1657
      %v1697 = vadd.f32 %v1577, %v1659
      %v1698 = vadd.f32 %v1578, %v1662
      %v1699 = vadd.f32 %v1579, %v1664
      %v1700 = vadd.f32 %v1580, %v1667
      %v1701 = vadd.f32 %v1581, %v1669
      %v1702 = vmul.f32 %v1062, %v944
      %v1703 = vmul.f32 %v1063, %v944
      %v1704 = vmul.f32 %v1064, %v944
      %v1705 = vmul.f32 %v1065, %v944
      %v1706 = vmul.f32 %v1066, %v944
      %v1707 = vmul.f32 %v1067, %v944
      %v1708 = vmul.f32 %v1068, %v944
      %v1709 = vmul.f32 %v1069, %v944
      %v1710 = vmul.f32 %v1070, %v944
      %v1711 = vmul.f32 %v1071, %v944
      %v1712 = vmul.f32 %v1072, %v944
      %v1713 = vmul.f32 %v1073, %v944
      %v1714 = vmul.f32 %v1074, %v944
      %v1715 = vmul.f32 %v1075, %v944
      %v1716 = vmul.f32 %v1076, %v944
      %v1717 = vmul.f32 %v1077, %v944
      %v1718 = vmul.f32 %v1078, %v944
      %v1719 = vmul.f32 %v1079, %v944
      %v1720 = vmul.f32 %v1080, %v944
      %v1721 = vmul.f32 %v1081, %v944
      %v1722 = vmul.f32 %v1082, %v944
      %v1723 = vmul.f32 %v1083, %v944
      %v1724 = vmul.f32 %v1084, %v944
      %v1725 = vmul.f32 %v1085, %v944
      %v1750 = vrot.slane %v1702, 6
      %v1751 = vrot.slane %v1703, 6
      %v1752 = vsel %vm969, %v1750, %v1751
      %v1753 = vrot.slane %v1704, 6
      %v1754 = vsel %vm969, %v1751, %v1753
      %v1755 = vrot.slane %v1705, 6
      %v1756 = vrot.slane %v1706, 6
      %v1757 = vsel %vm969, %v1755, %v1756
      %v1758 = vrot.slane %v1707, 6
      %v1759 = vsel %vm969, %v1756, %v1758
      %v1760 = vrot.slane %v1708, 6
      %v1761 = vrot.slane %v1709, 6
      %v1762 = vsel %vm969, %v1760, %v1761
      %v1763 = vrot.slane %v1710, 6
      %v1764 = vsel %vm969, %v1761, %v1763
      %v1765 = vrot.slane %v1711, 6
      %v1766 = vrot.slane %v1712, 6
      %v1767 = vsel %vm969, %v1765, %v1766
      %v1768 = vrot.slane %v1713, 6
      %v1769 = vsel %vm969, %v1766, %v1768
      %v1770 = vrot.slane %v1714, 6
      %v1771 = vrot.slane %v1715, 6
      %v1772 = vsel %vm969, %v1770, %v1771
      %v1773 = vrot.slane %v1716, 6
      %v1774 = vsel %vm969, %v1771, %v1773
      %v1775 = vrot.slane %v1717, 6
      %v1776 = vrot.slane %v1718, 6
      %v1777 = vsel %vm969, %v1775, %v1776
      %v1778 = vrot.slane %v1719, 6
      %v1779 = vsel %vm969, %v1776, %v1778
      %v1780 = vrot.slane %v1720, 6
      %v1781 = vrot.slane %v1721, 6
      %v1782 = vsel %vm969, %v1780, %v1781
      %v1783 = vrot.slane %v1722, 6
      %v1784 = vsel %vm969, %v1781, %v1783
      %v1785 = vrot.slane %v1723, 6
      %v1786 = vrot.slane %v1724, 6
      %v1787 = vsel %vm969, %v1785, %v1786
      %v1788 = vrot.slane %v1725, 6
      %v1789 = vsel %vm969, %v1786, %v1788
      %v1806 = vadd.f32 %v1686, %v1752
      %v1807 = vadd.f32 %v1687, %v1754
      %v1808 = vadd.f32 %v1688, %v1757
      %v1809 = vadd.f32 %v1689, %v1759
      %v1810 = vadd.f32 %v1690, %v1762
      %v1811 = vadd.f32 %v1691, %v1764
      %v1812 = vadd.f32 %v1692, %v1767
      %v1813 = vadd.f32 %v1693, %v1769
      %v1814 = vadd.f32 %v1694, %v1772
      %v1815 = vadd.f32 %v1695, %v1774
      %v1816 = vadd.f32 %v1696, %v1777
      %v1817 = vadd.f32 %v1697, %v1779
      %v1818 = vadd.f32 %v1698, %v1782
      %v1819 = vadd.f32 %v1699, %v1784
      %v1820 = vadd.f32 %v1700, %v1787
      %v1821 = vadd.f32 %v1701, %v1789
      %v1822 = vstv %s583
      %v1823 = vadd.s32 %v1822, 1
      %v1824 = vadd.s32 %v1822, 2
      %v1825 = vadd.s32 %v1822, 3
      %v1826 = vadd.s32 %v1822, 4
      %v1827 = vadd.s32 %v1822, 5
      %v1828 = vadd.s32 %v1822, 6
      %v1829 = vadd.s32 %v1822, 7
      %vm1830 = vcmp.ge.s32.totalorder %v1822, 0
      %vm1831 = vcmp.ge.s32.totalorder %v1823, 0
      %vm1832 = vcmp.ge.s32.totalorder %v1824, 0
      %vm1833 = vcmp.ge.s32.totalorder %v1825, 0
      %vm1834 = vcmp.ge.s32.totalorder %v1826, 0
      %vm1835 = vcmp.ge.s32.totalorder %v1827, 0
      %vm1836 = vcmp.ge.s32.totalorder %v1828, 0
      %vm1837 = vcmp.ge.s32.totalorder %v1829, 0
      %vm1838 = vcmp.lt.s32.totalorder %v1822, 16
      %vm1839 = vcmp.lt.s32.totalorder %v1823, 16
      %vm1840 = vcmp.lt.s32.totalorder %v1824, 16
      %vm1841 = vcmp.lt.s32.totalorder %v1825, 16
      %vm1842 = vcmp.lt.s32.totalorder %v1826, 16
      %vm1843 = vcmp.lt.s32.totalorder %v1827, 16
      %vm1844 = vcmp.lt.s32.totalorder %v1828, 16
      %vm1845 = vcmp.lt.s32.totalorder %v1829, 16
      %vm1846 = vmand %vm1830, %vm1838
      %vm1847 = vmand %vm1831, %vm1839
      %vm1848 = vmand %vm1832, %vm1840
      %vm1849 = vmand %vm1833, %vm1841
      %vm1850 = vmand %vm1834, %vm1842
      %vm1851 = vmand %vm1835, %vm1843
      %vm1852 = vmand %vm1836, %vm1844
      %vm1853 = vmand %vm1837, %vm1845
      %v1854 = vsel %vm1846, 1, 0
      %v1855 = vsel %vm1847, 1, 0
      %v1856 = vsel %vm1848, 1, 0
      %v1857 = vsel %vm1849, 1, 0
      %v1858 = vsel %vm1850, 1, 0
      %v1859 = vsel %vm1851, 1, 0
      %v1860 = vsel %vm1852, 1, 0
      %v1861 = vsel %vm1853, 1, 0
      %v1862 = vcvt.s32.f32 %v1854
      %v1863 = vcvt.s32.f32 %v1855
      %v1864 = vcvt.s32.f32 %v1856
      %v1865 = vcvt.s32.f32 %v1857
      %v1866 = vcvt.s32.f32 %v1858
      %v1867 = vcvt.s32.f32 %v1859
      %v1868 = vcvt.s32.f32 %v1860
      %v1869 = vcvt.s32.f32 %v1861
      %v1870 = vadd.f32 %v1806, %v1035
      %v1871 = vadd.f32 %v1807, %v1035
      %v1872 = vadd.f32 %v1808, %v1035
      %v1873 = vadd.f32 %v1809, %v1035
      %v1874 = vadd.f32 %v1810, %v1035
      %v1875 = vadd.f32 %v1811, %v1035
      %v1876 = vadd.f32 %v1812, %v1035
      %v1877 = vadd.f32 %v1813, %v1035
      %v1878 = vadd.f32 %v1814, %v1035
      %v1879 = vadd.f32 %v1815, %v1035
      %v1880 = vadd.f32 %v1816, %v1035
      %v1881 = vadd.f32 %v1817, %v1035
      %v1882 = vadd.f32 %v1818, %v1035
      %v1883 = vadd.f32 %v1819, %v1035
      %v1884 = vadd.f32 %v1820, %v1035
      %v1885 = vadd.f32 %v1821, %v1035
      %v1886 = vmul.f32 %v1870, %v1862
      %v1887 = vmul.f32 %v1871, %v1862
      %v1888 = vmul.f32 %v1872, %v1863
      %v1889 = vmul.f32 %v1873, %v1863
      %v1890 = vmul.f32 %v1874, %v1864
      %v1891 = vmul.f32 %v1875, %v1864
      %v1892 = vmul.f32 %v1876, %v1865
      %v1893 = vmul.f32 %v1877, %v1865
      %v1894 = vmul.f32 %v1878, %v1866
      %v1895 = vmul.f32 %v1879, %v1866
      %v1896 = vmul.f32 %v1880, %v1867
      %v1897 = vmul.f32 %v1881, %v1867
      %v1898 = vmul.f32 %v1882, %v1868
      %v1899 = vmul.f32 %v1883, %v1868
      %v1900 = vmul.f32 %v1884, %v1869
      %v1901 = vmul.f32 %v1885, %v1869
      %s1902 = scalar_lea.vmem [#allocation2], 64
      %1903 = vst.msk [vmem:[%s1902] sm:$0xff] %vm1053, %v1886
      %1904 = vst.msk [vmem:[%s1902 + $0x8] sm:$0xff] %vm1053, %v1887
      %1905 = vst.msk [vmem:[%s1902 + $0x10] sm:$0xff] %vm1053, %v1888
      %1906 = vst.msk [vmem:[%s1902 + $0x18] sm:$0xff] %vm1053, %v1889
      %1907 = vst.msk [vmem:[%s1902 + $0x20] sm:$0xff] %vm1053, %v1890
      %1908 = vst.msk [vmem:[%s1902 + $0x28] sm:$0xff] %vm1053, %v1891
      %1909 = vst.msk [vmem:[%s1902 + $0x30] sm:$0xff] %vm1053, %v1892
      %1910 = vst.msk [vmem:[%s1902 + $0x38] sm:$0xff] %vm1053, %v1893
      %1911 = vst.msk [vmem:[%s1902 + $0x40] sm:$0xff] %vm1053, %v1894
      %1912 = vst.msk [vmem:[%s1902 + $0x48] sm:$0xff] %vm1053, %v1895
      %1913 = vst.msk [vmem:[%s1902 + $0x50] sm:$0xff] %vm1053, %v1896
      %1914 = vst.msk [vmem:[%s1902 + $0x58] sm:$0xff] %vm1053, %v1897
      %1915 = vst.msk [vmem:[%s1902 + $0x60] sm:$0xff] %vm1053, %v1898
      %1916 = vst.msk [vmem:[%s1902 + $0x68] sm:$0xff] %vm1053, %v1899
      %1917 = vst.msk [vmem:[%s1902 + $0x70] sm:$0xff] %vm1053, %v1900
      %1918 = vst.msk [vmem:[%s1902 + $0x78] sm:$0xff] %vm1053, %v1901
      %v1919 = vld [vmem:[%s547] sm:$0xff]
      %v1920 = vld [vmem:[%s547 + $0x8] sm:$0xff]
      %v1921 = vld [vmem:[%s547 + $0x10] sm:$0x3f]
      %v1922 = vld [vmem:[%s547 + $0x18] sm:$0xff]
      %v1923 = vld [vmem:[%s547 + $0x20] sm:$0xff]
      %v1924 = vld [vmem:[%s547 + $0x28] sm:$0x3f]
      %v1925 = vld [vmem:[%s547 + $0x30] sm:$0xff]
      %v1926 = vld [vmem:[%s547 + $0x38] sm:$0xff]
      %v1927 = vld [vmem:[%s547 + $0x40] sm:$0x3f]
      %v1928 = vld [vmem:[%s547 + $0x48] sm:$0xff]
      %v1929 = vld [vmem:[%s547 + $0x50] sm:$0xff]
      %v1930 = vld [vmem:[%s547 + $0x58] sm:$0x3f]
      %v1931 = vmul.f32 %v1919, %v607
      %v1932 = vmul.f32 %v1920, %v607
      %v1933 = vmul.f32 %v1922, %v607
      %v1934 = vmul.f32 %v1923, %v607
      %v1935 = vmul.f32 %v1925, %v607
      %v1936 = vmul.f32 %v1926, %v607
      %v1937 = vmul.f32 %v1928, %v607
      %v1938 = vmul.f32 %v1929, %v607
      %v1939 = vmul.f32 %v1919, %v619
      %v1940 = vmul.f32 %v1920, %v619
      %v1941 = vmul.f32 %v1921, %v619
      %v1942 = vmul.f32 %v1922, %v619
      %v1943 = vmul.f32 %v1923, %v619
      %v1944 = vmul.f32 %v1924, %v619
      %v1945 = vmul.f32 %v1925, %v619
      %v1946 = vmul.f32 %v1926, %v619
      %v1947 = vmul.f32 %v1927, %v619
      %v1948 = vmul.f32 %v1928, %v619
      %v1949 = vmul.f32 %v1929, %v619
      %v1950 = vmul.f32 %v1930, %v619
      %v1963 = vrot.slane %v1939, 1
      %v1964 = vrot.slane %v1940, 1
      %v1965 = vsel %vm644, %v1963, %v1964
      %v1966 = vrot.slane %v1941, 1
      %v1967 = vsel %vm644, %v1964, %v1966
      %v1968 = vrot.slane %v1942, 1
      %v1969 = vrot.slane %v1943, 1
      %v1970 = vsel %vm644, %v1968, %v1969
      %v1971 = vrot.slane %v1944, 1
      %v1972 = vsel %vm644, %v1969, %v1971
      %v1973 = vrot.slane %v1945, 1
      %v1974 = vrot.slane %v1946, 1
      %v1975 = vsel %vm644, %v1973, %v1974
      %v1976 = vrot.slane %v1947, 1
      %v1977 = vsel %vm644, %v1974, %v1976
      %v1978 = vrot.slane %v1948, 1
      %v1979 = vrot.slane %v1949, 1
      %v1980 = vsel %vm644, %v1978, %v1979
      %v1981 = vrot.slane %v1950, 1
      %v1982 = vsel %vm644, %v1979, %v1981
      %v1991 = vadd.f32 %v1931, %v1965
      %v1992 = vadd.f32 %v1932, %v1967
      %v1993 = vadd.f32 %v1933, %v1970
      %v1994 = vadd.f32 %v1934, %v1972
      %v1995 = vadd.f32 %v1935, %v1975
      %v1996 = vadd.f32 %v1936, %v1977
      %v1997 = vadd.f32 %v1937, %v1980
      %v1998 = vadd.f32 %v1938, %v1982
      %v1999 = vmul.f32 %v1919, %v684
      %v2000 = vmul.f32 %v1920, %v684
      %v2001 = vmul.f32 %v1921, %v684
      %v2002 = vmul.f32 %v1922, %v684
      %v2003 = vmul.f32 %v1923, %v684
      %v2004 = vmul.f32 %v1924, %v684
      %v2005 = vmul.f32 %v1925, %v684
      %v2006 = vmul.f32 %v1926, %v684
      %v2007 = vmul.f32 %v1927, %v684
      %v2008 = vmul.f32 %v1928, %v684
      %v2009 = vmul.f32 %v1929, %v684
      %v2010 = vmul.f32 %v1930, %v684
      %v2023 = vrot.slane %v1999, 2
      %v2024 = vrot.slane %v2000, 2
      %v2025 = vsel %vm709, %v2023, %v2024
      %v2026 = vrot.slane %v2001, 2
      %v2027 = vsel %vm709, %v2024, %v2026
      %v2028 = vrot.slane %v2002, 2
      %v2029 = vrot.slane %v2003, 2
      %v2030 = vsel %vm709, %v2028, %v2029
      %v2031 = vrot.slane %v2004, 2
      %v2032 = vsel %vm709, %v2029, %v2031
      %v2033 = vrot.slane %v2005, 2
      %v2034 = vrot.slane %v2006, 2
      %v2035 = vsel %vm709, %v2033, %v2034
      %v2036 = vrot.slane %v2007, 2
      %v2037 = vsel %vm709, %v2034, %v2036
      %v2038 = vrot.slane %v2008, 2
      %v2039 = vrot.slane %v2009, 2
      %v2040 = vsel %vm709, %v2038, %v2039
      %v2041 = vrot.slane %v2010, 2
      %v2042 = vsel %vm709, %v2039, %v2041
      %v2051 = vadd.f32 %v1991, %v2025
      %v2052 = vadd.f32 %v1992, %v2027
      %v2053 = vadd.f32 %v1993, %v2030
      %v2054 = vadd.f32 %v1994, %v2032
      %v2055 = vadd.f32 %v1995, %v2035
      %v2056 = vadd.f32 %v1996, %v2037
      %v2057 = vadd.f32 %v1997, %v2040
      %v2058 = vadd.f32 %v1998, %v2042
      %v2059 = vmul.f32 %v1919, %v749
      %v2060 = vmul.f32 %v1920, %v749
      %v2061 = vmul.f32 %v1921, %v749
      %v2062 = vmul.f32 %v1922, %v749
      %v2063 = vmul.f32 %v1923, %v749
      %v2064 = vmul.f32 %v1924, %v749
      %v2065 = vmul.f32 %v1925, %v749
      %v2066 = vmul.f32 %v1926, %v749
      %v2067 = vmul.f32 %v1927, %v749
      %v2068 = vmul.f32 %v1928, %v749
      %v2069 = vmul.f32 %v1929, %v749
      %v2070 = vmul.f32 %v1930, %v749
      %v2083 = vrot.slane %v2059, 3
      %v2084 = vrot.slane %v2060, 3
      %v2085 = vsel %vm774, %v2083, %v2084
      %v2086 = vrot.slane %v2061, 3
      %v2087 = vsel %vm774, %v2084, %v2086
      %v2088 = vrot.slane %v2062, 3
      %v2089 = vrot.slane %v2063, 3
      %v2090 = vsel %vm774, %v2088, %v2089
      %v2091 = vrot.slane %v2064, 3
      %v2092 = vsel %vm774, %v2089, %v2091
      %v2093 = vrot.slane %v2065, 3
      %v2094 = vrot.slane %v2066, 3
      %v2095 = vsel %vm774, %v2093, %v2094
      %v2096 = vrot.slane %v2067, 3
      %v2097 = vsel %vm774, %v2094, %v2096
      %v2098 = vrot.slane %v2068, 3
      %v2099 = vrot.slane %v2069, 3
      %v2100 = vsel %vm774, %v2098, %v2099
      %v2101 = vrot.slane %v2070, 3
      %v2102 = vsel %vm774, %v2099, %v2101
      %v2111 = vadd.f32 %v2051, %v2085
      %v2112 = vadd.f32 %v2052, %v2087
      %v2113 = vadd.f32 %v2053, %v2090
      %v2114 = vadd.f32 %v2054, %v2092
      %v2115 = vadd.f32 %v2055, %v2095
      %v2116 = vadd.f32 %v2056, %v2097
      %v2117 = vadd.f32 %v2057, %v2100
      %v2118 = vadd.f32 %v2058, %v2102
      %v2119 = vmul.f32 %v1919, %v814
      %v2120 = vmul.f32 %v1920, %v814
      %v2121 = vmul.f32 %v1921, %v814
      %v2122 = vmul.f32 %v1922, %v814
      %v2123 = vmul.f32 %v1923, %v814
      %v2124 = vmul.f32 %v1924, %v814
      %v2125 = vmul.f32 %v1925, %v814
      %v2126 = vmul.f32 %v1926, %v814
      %v2127 = vmul.f32 %v1927, %v814
      %v2128 = vmul.f32 %v1928, %v814
      %v2129 = vmul.f32 %v1929, %v814
      %v2130 = vmul.f32 %v1930, %v814
      %v2143 = vrot.slane %v2119, 4
      %v2144 = vrot.slane %v2120, 4
      %v2145 = vsel %vm839, %v2143, %v2144
      %v2146 = vrot.slane %v2121, 4
      %v2147 = vsel %vm839, %v2144, %v2146
      %v2148 = vrot.slane %v2122, 4
      %v2149 = vrot.slane %v2123, 4
      %v2150 = vsel %vm839, %v2148, %v2149
      %v2151 = vrot.slane %v2124, 4
      %v2152 = vsel %vm839, %v2149, %v2151
      %v2153 = vrot.slane %v2125, 4
      %v2154 = vrot.slane %v2126, 4
      %v2155 = vsel %vm839, %v2153, %v2154
      %v2156 = vrot.slane %v2127, 4
      %v2157 = vsel %vm839, %v2154, %v2156
      %v2158 = vrot.slane %v2128, 4
      %v2159 = vrot.slane %v2129, 4
      %v2160 = vsel %vm839, %v2158, %v2159
      %v2161 = vrot.slane %v2130, 4
      %v2162 = vsel %vm839, %v2159, %v2161
      %v2171 = vadd.f32 %v2111, %v2145
      %v2172 = vadd.f32 %v2112, %v2147
      %v2173 = vadd.f32 %v2113, %v2150
      %v2174 = vadd.f32 %v2114, %v2152
      %v2175 = vadd.f32 %v2115, %v2155
      %v2176 = vadd.f32 %v2116, %v2157
      %v2177 = vadd.f32 %v2117, %v2160
      %v2178 = vadd.f32 %v2118, %v2162
      %v2179 = vmul.f32 %v1919, %v879
      %v2180 = vmul.f32 %v1920, %v879
      %v2181 = vmul.f32 %v1921, %v879
      %v2182 = vmul.f32 %v1922, %v879
      %v2183 = vmul.f32 %v1923, %v879
      %v2184 = vmul.f32 %v1924, %v879
      %v2185 = vmul.f32 %v1925, %v879
      %v2186 = vmul.f32 %v1926, %v879
      %v2187 = vmul.f32 %v1927, %v879
      %v2188 = vmul.f32 %v1928, %v879
      %v2189 = vmul.f32 %v1929, %v879
      %v2190 = vmul.f32 %v1930, %v879
      %v2203 = vrot.slane %v2179, 5
      %v2204 = vrot.slane %v2180, 5
      %v2205 = vsel %vm904, %v2203, %v2204
      %v2206 = vrot.slane %v2181, 5
      %v2207 = vsel %vm904, %v2204, %v2206
      %v2208 = vrot.slane %v2182, 5
      %v2209 = vrot.slane %v2183, 5
      %v2210 = vsel %vm904, %v2208, %v2209
      %v2211 = vrot.slane %v2184, 5
      %v2212 = vsel %vm904, %v2209, %v2211
      %v2213 = vrot.slane %v2185, 5
      %v2214 = vrot.slane %v2186, 5
      %v2215 = vsel %vm904, %v2213, %v2214
      %v2216 = vrot.slane %v2187, 5
      %v2217 = vsel %vm904, %v2214, %v2216
      %v2218 = vrot.slane %v2188, 5
      %v2219 = vrot.slane %v2189, 5
      %v2220 = vsel %vm904, %v2218, %v2219
      %v2221 = vrot.slane %v2190, 5
      %v2222 = vsel %vm904, %v2219, %v2221
      %v2231 = vadd.f32 %v2171, %v2205
      %v2232 = vadd.f32 %v2172, %v2207
      %v2233 = vadd.f32 %v2173, %v2210
      %v2234 = vadd.f32 %v2174, %v2212
      %v2235 = vadd.f32 %v2175, %v2215
      %v2236 = vadd.f32 %v2176, %v2217
      %v2237 = vadd.f32 %v2177, %v2220
      %v2238 = vadd.f32 %v2178, %v2222
      %v2239 = vmul.f32 %v1919, %v944
      %v2240 = vmul.f32 %v1920, %v944
      %v2241 = vmul.f32 %v1921, %v944
      %v2242 = vmul.f32 %v1922, %v944
      %v2243 = vmul.f32 %v1923, %v944
      %v2244 = vmul.f32 %v1924, %v944
      %v2245 = vmul.f32 %v1925, %v944
      %v2246 = vmul.f32 %v1926, %v944
      %v2247 = vmul.f32 %v1927, %v944
      %v2248 = vmul.f32 %v1928, %v944
      %v2249 = vmul.f32 %v1929, %v944
      %v2250 = vmul.f32 %v1930, %v944
      %v2263 = vrot.slane %v2239, 6
      %v2264 = vrot.slane %v2240, 6
      %v2265 = vsel %vm969, %v2263, %v2264
      %v2266 = vrot.slane %v2241, 6
      %v2267 = vsel %vm969, %v2264, %v2266
      %v2268 = vrot.slane %v2242, 6
      %v2269 = vrot.slane %v2243, 6
      %v2270 = vsel %vm969, %v2268, %v2269
      %v2271 = vrot.slane %v2244, 6
      %v2272 = vsel %vm969, %v2269, %v2271
      %v2273 = vrot.slane %v2245, 6
      %v2274 = vrot.slane %v2246, 6
      %v2275 = vsel %vm969, %v2273, %v2274
      %v2276 = vrot.slane %v2247, 6
      %v2277 = vsel %vm969, %v2274, %v2276
      %v2278 = vrot.slane %v2248, 6
      %v2279 = vrot.slane %v2249, 6
      %v2280 = vsel %vm969, %v2278, %v2279
      %v2281 = vrot.slane %v2250, 6
      %v2282 = vsel %vm969, %v2279, %v2281
      %v2291 = vadd.f32 %v2231, %v2265
      %v2292 = vadd.f32 %v2232, %v2267
      %v2293 = vadd.f32 %v2233, %v2270
      %v2294 = vadd.f32 %v2234, %v2272
      %v2295 = vadd.f32 %v2235, %v2275
      %v2296 = vadd.f32 %v2236, %v2277
      %v2297 = vadd.f32 %v2237, %v2280
      %v2298 = vadd.f32 %v2238, %v2282
      %s2299 = sadd.s32 %s583, 8
      %v2300 = vstv %s2299
      %v2301 = vadd.s32 %v2300, 1
      %v2302 = vadd.s32 %v2300, 2
      %v2303 = vadd.s32 %v2300, 3
      %vm2304 = vcmp.ge.s32.totalorder %v2300, 0
      %vm2305 = vcmp.ge.s32.totalorder %v2301, 0
      %vm2306 = vcmp.ge.s32.totalorder %v2302, 0
      %vm2307 = vcmp.ge.s32.totalorder %v2303, 0
      %vm2308 = vcmp.lt.s32.totalorder %v2300, 16
      %vm2309 = vcmp.lt.s32.totalorder %v2301, 16
      %vm2310 = vcmp.lt.s32.totalorder %v2302, 16
      %vm2311 = vcmp.lt.s32.totalorder %v2303, 16
      %vm2312 = vmand %vm2304, %vm2308
      %vm2313 = vmand %vm2305, %vm2309
      %vm2314 = vmand %vm2306, %vm2310
      %vm2315 = vmand %vm2307, %vm2311
      %v2316 = vsel %vm2312, 1, 0
      %v2317 = vsel %vm2313, 1, 0
      %v2318 = vsel %vm2314, 1, 0
      %v2319 = vsel %vm2315, 1, 0
      %v2320 = vcvt.s32.f32 %v2316
      %v2321 = vcvt.s32.f32 %v2317
      %v2322 = vcvt.s32.f32 %v2318
      %v2323 = vcvt.s32.f32 %v2319
      %v2324 = vadd.f32 %v2291, %v1035
      %v2325 = vadd.f32 %v2292, %v1035
      %v2326 = vadd.f32 %v2293, %v1035
      %v2327 = vadd.f32 %v2294, %v1035
      %v2328 = vadd.f32 %v2295, %v1035
      %v2329 = vadd.f32 %v2296, %v1035
      %v2330 = vadd.f32 %v2297, %v1035
      %v2331 = vadd.f32 %v2298, %v1035
      %v2332 = vmul.f32 %v2324, %v2320
      %v2333 = vmul.f32 %v2325, %v2320
      %v2334 = vmul.f32 %v2326, %v2321
      %v2335 = vmul.f32 %v2327, %v2321
      %v2336 = vmul.f32 %v2328, %v2322
      %v2337 = vmul.f32 %v2329, %v2322
      %v2338 = vmul.f32 %v2330, %v2323
      %v2339 = vmul.f32 %v2331, %v2323
      %s2340 = scalar_lea.vmem [#allocation2], 192
      %2341 = vst.msk [vmem:[%s2340] sm:$0xff] %vm1053, %v2332
      %2342 = vst.msk [vmem:[%s2340 + $0x8] sm:$0xff] %vm1053, %v2333
      %2343 = vst.msk [vmem:[%s2340 + $0x10] sm:$0xff] %vm1053, %v2334
      %2344 = vst.msk [vmem:[%s2340 + $0x18] sm:$0xff] %vm1053, %v2335
      %2345 = vst.msk [vmem:[%s2340 + $0x20] sm:$0xff] %vm1053, %v2336
      %2346 = vst.msk [vmem:[%s2340 + $0x28] sm:$0xff] %vm1053, %v2337
      %2347 = vst.msk [vmem:[%s2340 + $0x30] sm:$0xff] %vm1053, %v2338
      %2348 = vst.msk [vmem:[%s2340 + $0x38] sm:$0xff] %vm1053, %v2339
      %v2349 = vld [vmem:[#allocation2] sm:$0xff]
      %v2350 = vld [vmem:[#allocation2 + $0x8] sm:$0xff]
      %v2351 = vld [vmem:[#allocation2 + $0x10] sm:$0xff]
      %v2352 = vld [vmem:[#allocation2 + $0x18] sm:$0xff]
      %v2353 = vld [vmem:[#allocation2 + $0x20] sm:$0xff]
      %v2354 = vld [vmem:[#allocation2 + $0x28] sm:$0xff]
      %v2355 = vld [vmem:[#allocation2 + $0x30] sm:$0xff]
      %v2356 = vld [vmem:[#allocation2 + $0x38] sm:$0xff]
      %v2357 = vld [vmem:[#allocation2 + $0x40] sm:$0xff]
      %v2358 = vld [vmem:[#allocation2 + $0x48] sm:$0xff]
      %v2359 = vld [vmem:[#allocation2 + $0x50] sm:$0xff]
      %v2360 = vld [vmem:[#allocation2 + $0x58] sm:$0xff]
      %v2361 = vld [vmem:[#allocation2 + $0x60] sm:$0xff]
      %v2362 = vld [vmem:[#allocation2 + $0x68] sm:$0xff]
      %v2363 = vld [vmem:[#allocation2 + $0x70] sm:$0xff]
      %v2364 = vld [vmem:[#allocation2 + $0x78] sm:$0xff]
      %v2365 = vlaneseq
      %v2366 = vshrl.u32 %v2365, 7
      %v2367 = vsub.s32 0, %v2366
      %v2368 = vrot.slane %v585, %v2367
      %v2369 = vmul.f32 %v2349, %v2368
      %v2370 = vmul.f32 %v2350, %v2368
      %v2371 = vmul.f32 %v2351, %v2368
      %v2372 = vmul.f32 %v2352, %v2368
      %v2373 = vmul.f32 %v2353, %v2368
      %v2374 = vmul.f32 %v2354, %v2368
      %v2375 = vmul.f32 %v2355, %v2368
      %v2376 = vmul.f32 %v2356, %v2368
      %v2377 = vmul.f32 %v2357, %v2368
      %v2378 = vmul.f32 %v2358, %v2368
      %v2379 = vmul.f32 %v2359, %v2368
      %v2380 = vmul.f32 %v2360, %v2368
      %v2381 = vmul.f32 %v2361, %v2368
      %v2382 = vmul.f32 %v2362, %v2368
      %v2383 = vmul.f32 %v2363, %v2368
      %v2384 = vmul.f32 %v2364, %v2368
      %s2385 = scalar_lea.vmem [#allocation2], 16
      %v2386 = vld [vmem:[%s2385] sm:$0xff]
      %v2387 = vld [vmem:[%s2385 + $0x8] sm:$0xff]
      %v2388 = vld [vmem:[%s2385 + $0x10] sm:$0xff]
      %v2389 = vld [vmem:[%s2385 + $0x18] sm:$0xff]
      %v2390 = vld [vmem:[%s2385 + $0x20] sm:$0xff]
      %v2391 = vld [vmem:[%s2385 + $0x28] sm:$0xff]
      %v2392 = vld [vmem:[%s2385 + $0x30] sm:$0xff]
      %v2393 = vld [vmem:[%s2385 + $0x38] sm:$0xff]
      %v2394 = vld [vmem:[%s2385 + $0x40] sm:$0xff]
      %v2395 = vld [vmem:[%s2385 + $0x48] sm:$0xff]
      %v2396 = vld [vmem:[%s2385 + $0x50] sm:$0xff]
      %v2397 = vld [vmem:[%s2385 + $0x58] sm:$0xff]
      %v2398 = vld [vmem:[%s2385 + $0x60] sm:$0xff]
      %v2399 = vld [vmem:[%s2385 + $0x68] sm:$0xff]
      %v2400 = vld [vmem:[%s2385 + $0x70] sm:$0xff]
      %v2401 = vld [vmem:[%s2385 + $0x78] sm:$0xff]
      %v2402 = vlaneseq
      %v2403 = vshrl.u32 %v2402, 7
      %v2404 = vsub.s32 1, %v2403
      %v2405 = vrot.slane %v585, %v2404
      %v2406 = vmul.f32 %v2386, %v2405
      %v2407 = vmul.f32 %v2387, %v2405
      %v2408 = vmul.f32 %v2388, %v2405
      %v2409 = vmul.f32 %v2389, %v2405
      %v2410 = vmul.f32 %v2390, %v2405
      %v2411 = vmul.f32 %v2391, %v2405
      %v2412 = vmul.f32 %v2392, %v2405
      %v2413 = vmul.f32 %v2393, %v2405
      %v2414 = vmul.f32 %v2394, %v2405
      %v2415 = vmul.f32 %v2395, %v2405
      %v2416 = vmul.f32 %v2396, %v2405
      %v2417 = vmul.f32 %v2397, %v2405
      %v2418 = vmul.f32 %v2398, %v2405
      %v2419 = vmul.f32 %v2399, %v2405
      %v2420 = vmul.f32 %v2400, %v2405
      %v2421 = vmul.f32 %v2401, %v2405
      %v2422 = vadd.f32 %v2369, %v2406
      %v2423 = vadd.f32 %v2370, %v2407
      %v2424 = vadd.f32 %v2371, %v2408
      %v2425 = vadd.f32 %v2372, %v2409
      %v2426 = vadd.f32 %v2373, %v2410
      %v2427 = vadd.f32 %v2374, %v2411
      %v2428 = vadd.f32 %v2375, %v2412
      %v2429 = vadd.f32 %v2376, %v2413
      %v2430 = vadd.f32 %v2377, %v2414
      %v2431 = vadd.f32 %v2378, %v2415
      %v2432 = vadd.f32 %v2379, %v2416
      %v2433 = vadd.f32 %v2380, %v2417
      %v2434 = vadd.f32 %v2381, %v2418
      %v2435 = vadd.f32 %v2382, %v2419
      %v2436 = vadd.f32 %v2383, %v2420
      %v2437 = vadd.f32 %v2384, %v2421
      %s2438 = scalar_lea.vmem [#allocation2], 32
      %v2439 = vld [vmem:[%s2438] sm:$0xff]
      %v2440 = vld [vmem:[%s2438 + $0x8] sm:$0xff]
      %v2441 = vld [vmem:[%s2438 + $0x10] sm:$0xff]
      %v2442 = vld [vmem:[%s2438 + $0x18] sm:$0xff]
      %v2443 = vld [vmem:[%s2438 + $0x20] sm:$0xff]
      %v2444 = vld [vmem:[%s2438 + $0x28] sm:$0xff]
      %v2445 = vld [vmem:[%s2438 + $0x30] sm:$0xff]
      %v2446 = vld [vmem:[%s2438 + $0x38] sm:$0xff]
      %v2447 = vld [vmem:[%s2438 + $0x40] sm:$0xff]
      %v2448 = vld [vmem:[%s2438 + $0x48] sm:$0xff]
      %v2449 = vld [vmem:[%s2438 + $0x50] sm:$0xff]
      %v2450 = vld [vmem:[%s2438 + $0x58] sm:$0xff]
      %v2451 = vld [vmem:[%s2438 + $0x60] sm:$0xff]
      %v2452 = vld [vmem:[%s2438 + $0x68] sm:$0xff]
      %v2453 = vld [vmem:[%s2438 + $0x70] sm:$0xff]
      %v2454 = vld [vmem:[%s2438 + $0x78] sm:$0xff]
      %v2455 = vlaneseq
      %v2456 = vshrl.u32 %v2455, 7
      %v2457 = vsub.s32 2, %v2456
      %v2458 = vrot.slane %v585, %v2457
      %v2459 = vmul.f32 %v2439, %v2458
      %v2460 = vmul.f32 %v2440, %v2458
      %v2461 = vmul.f32 %v2441, %v2458
      %v2462 = vmul.f32 %v2442, %v2458
      %v2463 = vmul.f32 %v2443, %v2458
      %v2464 = vmul.f32 %v2444, %v2458
      %v2465 = vmul.f32 %v2445, %v2458
      %v2466 = vmul.f32 %v2446, %v2458
      %v2467 = vmul.f32 %v2447, %v2458
      %v2468 = vmul.f32 %v2448, %v2458
      %v2469 = vmul.f32 %v2449, %v2458
      %v2470 = vmul.f32 %v2450, %v2458
      %v2471 = vmul.f32 %v2451, %v2458
      %v2472 = vmul.f32 %v2452, %v2458
      %v2473 = vmul.f32 %v2453, %v2458
      %v2474 = vmul.f32 %v2454, %v2458
      %v2475 = vadd.f32 %v2422, %v2459
      %v2476 = vadd.f32 %v2423, %v2460
      %v2477 = vadd.f32 %v2424, %v2461
      %v2478 = vadd.f32 %v2425, %v2462
      %v2479 = vadd.f32 %v2426, %v2463
      %v2480 = vadd.f32 %v2427, %v2464
      %v2481 = vadd.f32 %v2428, %v2465
      %v2482 = vadd.f32 %v2429, %v2466
      %v2483 = vadd.f32 %v2430, %v2467
      %v2484 = vadd.f32 %v2431, %v2468
      %v2485 = vadd.f32 %v2432, %v2469
      %v2486 = vadd.f32 %v2433, %v2470
      %v2487 = vadd.f32 %v2434, %v2471
      %v2488 = vadd.f32 %v2435, %v2472
      %v2489 = vadd.f32 %v2436, %v2473
      %v2490 = vadd.f32 %v2437, %v2474
      %s2491 = scalar_lea.vmem [#allocation2], 48
      %v2492 = vld [vmem:[%s2491] sm:$0xff]
      %v2493 = vld [vmem:[%s2491 + $0x8] sm:$0xff]
      %v2494 = vld [vmem:[%s2491 + $0x10] sm:$0xff]
      %v2495 = vld [vmem:[%s2491 + $0x18] sm:$0xff]
      %v2496 = vld [vmem:[%s2491 + $0x20] sm:$0xff]
      %v2497 = vld [vmem:[%s2491 + $0x28] sm:$0xff]
      %v2498 = vld [vmem:[%s2491 + $0x30] sm:$0xff]
      %v2499 = vld [vmem:[%s2491 + $0x38] sm:$0xff]
      %v2500 = vld [vmem:[%s2491 + $0x40] sm:$0xff]
      %v2501 = vld [vmem:[%s2491 + $0x48] sm:$0xff]
      %v2502 = vld [vmem:[%s2491 + $0x50] sm:$0xff]
      %v2503 = vld [vmem:[%s2491 + $0x58] sm:$0xff]
      %v2504 = vld [vmem:[%s2491 + $0x60] sm:$0xff]
      %v2505 = vld [vmem:[%s2491 + $0x68] sm:$0xff]
      %v2506 = vld [vmem:[%s2491 + $0x70] sm:$0xff]
      %v2507 = vld [vmem:[%s2491 + $0x78] sm:$0xff]
      %v2508 = vlaneseq
      %v2509 = vshrl.u32 %v2508, 7
      %v2510 = vsub.s32 3, %v2509
      %v2511 = vrot.slane %v585, %v2510
      %v2512 = vmul.f32 %v2492, %v2511
      %v2513 = vmul.f32 %v2493, %v2511
      %v2514 = vmul.f32 %v2494, %v2511
      %v2515 = vmul.f32 %v2495, %v2511
      %v2516 = vmul.f32 %v2496, %v2511
      %v2517 = vmul.f32 %v2497, %v2511
      %v2518 = vmul.f32 %v2498, %v2511
      %v2519 = vmul.f32 %v2499, %v2511
      %v2520 = vmul.f32 %v2500, %v2511
      %v2521 = vmul.f32 %v2501, %v2511
      %v2522 = vmul.f32 %v2502, %v2511
      %v2523 = vmul.f32 %v2503, %v2511
      %v2524 = vmul.f32 %v2504, %v2511
      %v2525 = vmul.f32 %v2505, %v2511
      %v2526 = vmul.f32 %v2506, %v2511
      %v2527 = vmul.f32 %v2507, %v2511
      %v2528 = vadd.f32 %v2475, %v2512
      %v2529 = vadd.f32 %v2476, %v2513
      %v2530 = vadd.f32 %v2477, %v2514
      %v2531 = vadd.f32 %v2478, %v2515
      %v2532 = vadd.f32 %v2479, %v2516
      %v2533 = vadd.f32 %v2480, %v2517
      %v2534 = vadd.f32 %v2481, %v2518
      %v2535 = vadd.f32 %v2482, %v2519
      %v2536 = vadd.f32 %v2483, %v2520
      %v2537 = vadd.f32 %v2484, %v2521
      %v2538 = vadd.f32 %v2485, %v2522
      %v2539 = vadd.f32 %v2486, %v2523
      %v2540 = vadd.f32 %v2487, %v2524
      %v2541 = vadd.f32 %v2488, %v2525
      %v2542 = vadd.f32 %v2489, %v2526
      %v2543 = vadd.f32 %v2490, %v2527
      %v2544 = vld [vmem:[%s1902] sm:$0xff]
      %v2545 = vld [vmem:[%s1902 + $0x8] sm:$0xff]
      %v2546 = vld [vmem:[%s1902 + $0x10] sm:$0xff]
      %v2547 = vld [vmem:[%s1902 + $0x18] sm:$0xff]
      %v2548 = vld [vmem:[%s1902 + $0x20] sm:$0xff]
      %v2549 = vld [vmem:[%s1902 + $0x28] sm:$0xff]
      %v2550 = vld [vmem:[%s1902 + $0x30] sm:$0xff]
      %v2551 = vld [vmem:[%s1902 + $0x38] sm:$0xff]
      %v2552 = vld [vmem:[%s1902 + $0x40] sm:$0xff]
      %v2553 = vld [vmem:[%s1902 + $0x48] sm:$0xff]
      %v2554 = vld [vmem:[%s1902 + $0x50] sm:$0xff]
      %v2555 = vld [vmem:[%s1902 + $0x58] sm:$0xff]
      %v2556 = vld [vmem:[%s1902 + $0x60] sm:$0xff]
      %v2557 = vld [vmem:[%s1902 + $0x68] sm:$0xff]
      %v2558 = vld [vmem:[%s1902 + $0x70] sm:$0xff]
      %v2559 = vld [vmem:[%s1902 + $0x78] sm:$0xff]
      %v2560 = vlaneseq
      %v2561 = vshrl.u32 %v2560, 7
      %v2562 = vsub.s32 4, %v2561
      %v2563 = vrot.slane %v585, %v2562
      %v2564 = vmul.f32 %v2544, %v2563
      %v2565 = vmul.f32 %v2545, %v2563
      %v2566 = vmul.f32 %v2546, %v2563
      %v2567 = vmul.f32 %v2547, %v2563
      %v2568 = vmul.f32 %v2548, %v2563
      %v2569 = vmul.f32 %v2549, %v2563
      %v2570 = vmul.f32 %v2550, %v2563
      %v2571 = vmul.f32 %v2551, %v2563
      %v2572 = vmul.f32 %v2552, %v2563
      %v2573 = vmul.f32 %v2553, %v2563
      %v2574 = vmul.f32 %v2554, %v2563
      %v2575 = vmul.f32 %v2555, %v2563
      %v2576 = vmul.f32 %v2556, %v2563
      %v2577 = vmul.f32 %v2557, %v2563
      %v2578 = vmul.f32 %v2558, %v2563
      %v2579 = vmul.f32 %v2559, %v2563
      %v2580 = vadd.f32 %v2528, %v2564
      %v2581 = vadd.f32 %v2529, %v2565
      %v2582 = vadd.f32 %v2530, %v2566
      %v2583 = vadd.f32 %v2531, %v2567
      %v2584 = vadd.f32 %v2532, %v2568
      %v2585 = vadd.f32 %v2533, %v2569
      %v2586 = vadd.f32 %v2534, %v2570
      %v2587 = vadd.f32 %v2535, %v2571
      %v2588 = vadd.f32 %v2536, %v2572
      %v2589 = vadd.f32 %v2537, %v2573
      %v2590 = vadd.f32 %v2538, %v2574
      %v2591 = vadd.f32 %v2539, %v2575
      %v2592 = vadd.f32 %v2540, %v2576
      %v2593 = vadd.f32 %v2541, %v2577
      %v2594 = vadd.f32 %v2542, %v2578
      %v2595 = vadd.f32 %v2543, %v2579
      %s2596 = scalar_lea.vmem [#allocation2], 80
      %v2597 = vld [vmem:[%s2596] sm:$0xff]
      %v2598 = vld [vmem:[%s2596 + $0x8] sm:$0xff]
      %v2599 = vld [vmem:[%s2596 + $0x10] sm:$0xff]
      %v2600 = vld [vmem:[%s2596 + $0x18] sm:$0xff]
      %v2601 = vld [vmem:[%s2596 + $0x20] sm:$0xff]
      %v2602 = vld [vmem:[%s2596 + $0x28] sm:$0xff]
      %v2603 = vld [vmem:[%s2596 + $0x30] sm:$0xff]
      %v2604 = vld [vmem:[%s2596 + $0x38] sm:$0xff]
      %v2605 = vld [vmem:[%s2596 + $0x40] sm:$0xff]
      %v2606 = vld [vmem:[%s2596 + $0x48] sm:$0xff]
      %v2607 = vld [vmem:[%s2596 + $0x50] sm:$0xff]
      %v2608 = vld [vmem:[%s2596 + $0x58] sm:$0xff]
      %v2609 = vld [vmem:[%s2596 + $0x60] sm:$0xff]
      %v2610 = vld [vmem:[%s2596 + $0x68] sm:$0xff]
      %v2611 = vld [vmem:[%s2596 + $0x70] sm:$0xff]
      %v2612 = vld [vmem:[%s2596 + $0x78] sm:$0xff]
      %v2613 = vlaneseq
      %v2614 = vshrl.u32 %v2613, 7
      %v2615 = vsub.s32 5, %v2614
      %v2616 = vrot.slane %v585, %v2615
      %v2617 = vmul.f32 %v2597, %v2616
      %v2618 = vmul.f32 %v2598, %v2616
      %v2619 = vmul.f32 %v2599, %v2616
      %v2620 = vmul.f32 %v2600, %v2616
      %v2621 = vmul.f32 %v2601, %v2616
      %v2622 = vmul.f32 %v2602, %v2616
      %v2623 = vmul.f32 %v2603, %v2616
      %v2624 = vmul.f32 %v2604, %v2616
      %v2625 = vmul.f32 %v2605, %v2616
      %v2626 = vmul.f32 %v2606, %v2616
      %v2627 = vmul.f32 %v2607, %v2616
      %v2628 = vmul.f32 %v2608, %v2616
      %v2629 = vmul.f32 %v2609, %v2616
      %v2630 = vmul.f32 %v2610, %v2616
      %v2631 = vmul.f32 %v2611, %v2616
      %v2632 = vmul.f32 %v2612, %v2616
      %v2633 = vadd.f32 %v2580, %v2617
      %v2634 = vadd.f32 %v2581, %v2618
      %v2635 = vadd.f32 %v2582, %v2619
      %v2636 = vadd.f32 %v2583, %v2620
      %v2637 = vadd.f32 %v2584, %v2621
      %v2638 = vadd.f32 %v2585, %v2622
      %v2639 = vadd.f32 %v2586, %v2623
      %v2640 = vadd.f32 %v2587, %v2624
      %v2641 = vadd.f32 %v2588, %v2625
      %v2642 = vadd.f32 %v2589, %v2626
      %v2643 = vadd.f32 %v2590, %v2627
      %v2644 = vadd.f32 %v2591, %v2628
      %v2645 = vadd.f32 %v2592, %v2629
      %v2646 = vadd.f32 %v2593, %v2630
      %v2647 = vadd.f32 %v2594, %v2631
      %v2648 = vadd.f32 %v2595, %v2632
      %s2649 = scalar_lea.vmem [#allocation2], 96
      %v2650 = vld [vmem:[%s2649] sm:$0xff]
      %v2651 = vld [vmem:[%s2649 + $0x8] sm:$0xff]
      %v2652 = vld [vmem:[%s2649 + $0x10] sm:$0xff]
      %v2653 = vld [vmem:[%s2649 + $0x18] sm:$0xff]
      %v2654 = vld [vmem:[%s2649 + $0x20] sm:$0xff]
      %v2655 = vld [vmem:[%s2649 + $0x28] sm:$0xff]
      %v2656 = vld [vmem:[%s2649 + $0x30] sm:$0xff]
      %v2657 = vld [vmem:[%s2649 + $0x38] sm:$0xff]
      %v2658 = vld [vmem:[%s2649 + $0x40] sm:$0xff]
      %v2659 = vld [vmem:[%s2649 + $0x48] sm:$0xff]
      %v2660 = vld [vmem:[%s2649 + $0x50] sm:$0xff]
      %v2661 = vld [vmem:[%s2649 + $0x58] sm:$0xff]
      %v2662 = vld [vmem:[%s2649 + $0x60] sm:$0xff]
      %v2663 = vld [vmem:[%s2649 + $0x68] sm:$0xff]
      %v2664 = vld [vmem:[%s2649 + $0x70] sm:$0xff]
      %v2665 = vld [vmem:[%s2649 + $0x78] sm:$0xff]
      %v2666 = vlaneseq
      %v2667 = vshrl.u32 %v2666, 7
      %v2668 = vsub.s32 6, %v2667
      %v2669 = vrot.slane %v585, %v2668
      %v2670 = vmul.f32 %v2650, %v2669
      %v2671 = vmul.f32 %v2651, %v2669
      %v2672 = vmul.f32 %v2652, %v2669
      %v2673 = vmul.f32 %v2653, %v2669
      %v2674 = vmul.f32 %v2654, %v2669
      %v2675 = vmul.f32 %v2655, %v2669
      %v2676 = vmul.f32 %v2656, %v2669
      %v2677 = vmul.f32 %v2657, %v2669
      %v2678 = vmul.f32 %v2658, %v2669
      %v2679 = vmul.f32 %v2659, %v2669
      %v2680 = vmul.f32 %v2660, %v2669
      %v2681 = vmul.f32 %v2661, %v2669
      %v2682 = vmul.f32 %v2662, %v2669
      %v2683 = vmul.f32 %v2663, %v2669
      %v2684 = vmul.f32 %v2664, %v2669
      %v2685 = vmul.f32 %v2665, %v2669
      %v2686 = vadd.f32 %v2633, %v2670
      %v2687 = vadd.f32 %v2634, %v2671
      %v2688 = vadd.f32 %v2635, %v2672
      %v2689 = vadd.f32 %v2636, %v2673
      %v2690 = vadd.f32 %v2637, %v2674
      %v2691 = vadd.f32 %v2638, %v2675
      %v2692 = vadd.f32 %v2639, %v2676
      %v2693 = vadd.f32 %v2640, %v2677
      %v2694 = vadd.f32 %v2641, %v2678
      %v2695 = vadd.f32 %v2642, %v2679
      %v2696 = vadd.f32 %v2643, %v2680
      %v2697 = vadd.f32 %v2644, %v2681
      %v2698 = vadd.f32 %v2645, %v2682
      %v2699 = vadd.f32 %v2646, %v2683
      %v2700 = vadd.f32 %v2647, %v2684
      %v2701 = vadd.f32 %v2648, %v2685
      %s2702 = ssub.s32 %s583, 1
      %v2703 = vstv %s2702
      %v2704 = vadd.s32 %v2703, 1
      %v2705 = vadd.s32 %v2703, 2
      %v2706 = vadd.s32 %v2703, 3
      %v2707 = vadd.s32 %v2703, 4
      %v2708 = vadd.s32 %v2703, 5
      %v2709 = vadd.s32 %v2703, 6
      %v2710 = vadd.s32 %v2703, 7
      %vm2711 = vcmp.ge.s32.totalorder %v2703, 0
      %vm2712 = vcmp.ge.s32.totalorder %v2704, 0
      %vm2713 = vcmp.ge.s32.totalorder %v2705, 0
      %vm2714 = vcmp.ge.s32.totalorder %v2706, 0
      %vm2715 = vcmp.ge.s32.totalorder %v2707, 0
      %vm2716 = vcmp.ge.s32.totalorder %v2708, 0
      %vm2717 = vcmp.ge.s32.totalorder %v2709, 0
      %vm2718 = vcmp.ge.s32.totalorder %v2710, 0
      %vm2719 = vcmp.lt.s32.totalorder %v2703, 16
      %vm2720 = vcmp.lt.s32.totalorder %v2704, 16
      %vm2721 = vcmp.lt.s32.totalorder %v2705, 16
      %vm2722 = vcmp.lt.s32.totalorder %v2706, 16
      %vm2723 = vcmp.lt.s32.totalorder %v2707, 16
      %vm2724 = vcmp.lt.s32.totalorder %v2708, 16
      %vm2725 = vcmp.lt.s32.totalorder %v2709, 16
      %vm2726 = vcmp.lt.s32.totalorder %v2710, 16
      %vm2727 = vmand %vm2711, %vm2719
      %vm2728 = vmand %vm2712, %vm2720
      %vm2729 = vmand %vm2713, %vm2721
      %vm2730 = vmand %vm2714, %vm2722
      %vm2731 = vmand %vm2715, %vm2723
      %vm2732 = vmand %vm2716, %vm2724
      %vm2733 = vmand %vm2717, %vm2725
      %vm2734 = vmand %vm2718, %vm2726
      %v2735 = vsel %vm2727, 1, 0
      %v2736 = vsel %vm2728, 1, 0
      %v2737 = vsel %vm2729, 1, 0
      %v2738 = vsel %vm2730, 1, 0
      %v2739 = vsel %vm2731, 1, 0
      %v2740 = vsel %vm2732, 1, 0
      %v2741 = vsel %vm2733, 1, 0
      %v2742 = vsel %vm2734, 1, 0
      %v2743 = vcvt.s32.f32 %v2735
      %v2744 = vcvt.s32.f32 %v2736
      %v2745 = vcvt.s32.f32 %v2737
      %v2746 = vcvt.s32.f32 %v2738
      %v2747 = vcvt.s32.f32 %v2739
      %v2748 = vcvt.s32.f32 %v2740
      %v2749 = vcvt.s32.f32 %v2741
      %v2750 = vcvt.s32.f32 %v2742
      %v2752 = vlaneseq
      %v2753 = vshrl.u32 %v2752, 7
      %v2754 = vsub.s32 0, %v2753
      %v2755 = vrot.slane %v590, %v2754
      %v2757 = vadd.f32 %v2686, %v2755
      %v2758 = vadd.f32 %v2687, %v2755
      %v2759 = vadd.f32 %v2688, %v2755
      %v2760 = vadd.f32 %v2689, %v2755
      %v2761 = vadd.f32 %v2690, %v2755
      %v2762 = vadd.f32 %v2691, %v2755
      %v2763 = vadd.f32 %v2692, %v2755
      %v2764 = vadd.f32 %v2693, %v2755
      %v2765 = vadd.f32 %v2694, %v2755
      %v2766 = vadd.f32 %v2695, %v2755
      %v2767 = vadd.f32 %v2696, %v2755
      %v2768 = vadd.f32 %v2697, %v2755
      %v2769 = vadd.f32 %v2698, %v2755
      %v2770 = vadd.f32 %v2699, %v2755
      %v2771 = vadd.f32 %v2700, %v2755
      %v2772 = vadd.f32 %v2701, %v2755
      %v2773 = vmul.f32 %v2757, %v2743
      %v2774 = vmul.f32 %v2758, %v2743
      %v2775 = vmul.f32 %v2759, %v2744
      %v2776 = vmul.f32 %v2760, %v2744
      %v2777 = vmul.f32 %v2761, %v2745
      %v2778 = vmul.f32 %v2762, %v2745
      %v2779 = vmul.f32 %v2763, %v2746
      %v2780 = vmul.f32 %v2764, %v2746
      %v2781 = vmul.f32 %v2765, %v2747
      %v2782 = vmul.f32 %v2766, %v2747
      %v2783 = vmul.f32 %v2767, %v2748
      %v2784 = vmul.f32 %v2768, %v2748
      %v2785 = vmul.f32 %v2769, %v2749
      %v2786 = vmul.f32 %v2770, %v2749
      %v2787 = vmul.f32 %v2771, %v2750
      %v2788 = vmul.f32 %v2772, %v2750
      %2789 = vst.msk [vmem:[#allocation3 + $0x1] sm:$0xff] %vm1053, %v2773
      %2790 = vst.msk [vmem:[#allocation3 + $0x9] sm:$0xff] %vm1053, %v2774
      %2791 = vst.msk [vmem:[#allocation3 + $0x19] sm:$0xff] %vm1053, %v2775
      %2792 = vst.msk [vmem:[#allocation3 + $0x21] sm:$0xff] %vm1053, %v2776
      %2793 = vst.msk [vmem:[#allocation3 + $0x31] sm:$0xff] %vm1053, %v2777
      %2794 = vst.msk [vmem:[#allocation3 + $0x39] sm:$0xff] %vm1053, %v2778
      %2795 = vst.msk [vmem:[#allocation3 + $0x49] sm:$0xff] %vm1053, %v2779
      %2796 = vst.msk [vmem:[#allocation3 + $0x51] sm:$0xff] %vm1053, %v2780
      %2797 = vst.msk [vmem:[#allocation3 + $0x61] sm:$0xff] %vm1053, %v2781
      %2798 = vst.msk [vmem:[#allocation3 + $0x69] sm:$0xff] %vm1053, %v2782
      %2799 = vst.msk [vmem:[#allocation3 + $0x79] sm:$0xff] %vm1053, %v2783
      %2800 = vst.msk [vmem:[#allocation3 + $0x81] sm:$0xff] %vm1053, %v2784
      %2801 = vst.msk [vmem:[#allocation3 + $0x91] sm:$0xff] %vm1053, %v2785
      %2802 = vst.msk [vmem:[#allocation3 + $0x99] sm:$0xff] %vm1053, %v2786
      %2803 = vst.msk [vmem:[#allocation3 + $0xa9] sm:$0xff] %vm1053, %v2787
      %2804 = vst.msk [vmem:[#allocation3 + $0xb1] sm:$0xff] %vm1053, %v2788
      %s2805 = scalar_lea.vmem [#allocation2], 128
      %v2806 = vld [vmem:[%s2805] sm:$0xff]
      %v2807 = vld [vmem:[%s2805 + $0x8] sm:$0xff]
      %v2808 = vld [vmem:[%s2805 + $0x10] sm:$0xff]
      %v2809 = vld [vmem:[%s2805 + $0x18] sm:$0xff]
      %v2810 = vmul.f32 %v2806, %v2368
      %v2811 = vmul.f32 %v2807, %v2368
      %v2812 = vmul.f32 %v2808, %v2368
      %v2813 = vmul.f32 %v2809, %v2368
      %s2814 = scalar_lea.vmem [#allocation2], 144
      %v2815 = vld [vmem:[%s2814] sm:$0xff]
      %v2816 = vld [vmem:[%s2814 + $0x8] sm:$0xff]
      %v2817 = vld [vmem:[%s2814 + $0x10] sm:$0xff]
      %v2818 = vld [vmem:[%s2814 + $0x18] sm:$0xff]
      %v2819 = vmul.f32 %v2815, %v2405
      %v2820 = vmul.f32 %v2816, %v2405
      %v2821 = vmul.f32 %v2817, %v2405
      %v2822 = vmul.f32 %v2818, %v2405
      %v2823 = vadd.f32 %v2810, %v2819
      %v2824 = vadd.f32 %v2811, %v2820
      %v2825 = vadd.f32 %v2812, %v2821
      %v2826 = vadd.f32 %v2813, %v2822
      %s2827 = scalar_lea.vmem [#allocation2], 160
      %v2828 = vld [vmem:[%s2827] sm:$0xff]
      %v2829 = vld [vmem:[%s2827 + $0x8] sm:$0xff]
      %v2830 = vld [vmem:[%s2827 + $0x10] sm:$0xff]
      %v2831 = vld [vmem:[%s2827 + $0x18] sm:$0xff]
      %v2832 = vmul.f32 %v2828, %v2458
      %v2833 = vmul.f32 %v2829, %v2458
      %v2834 = vmul.f32 %v2830, %v2458
      %v2835 = vmul.f32 %v2831, %v2458
      %v2836 = vadd.f32 %v2823, %v2832
      %v2837 = vadd.f32 %v2824, %v2833
      %v2838 = vadd.f32 %v2825, %v2834
      %v2839 = vadd.f32 %v2826, %v2835
      %s2840 = scalar_lea.vmem [#allocation2], 176
      %v2841 = vld [vmem:[%s2840] sm:$0xff]
      %v2842 = vld [vmem:[%s2840 + $0x8] sm:$0xff]
      %v2843 = vld [vmem:[%s2840 + $0x10] sm:$0xff]
      %v2844 = vld [vmem:[%s2840 + $0x18] sm:$0xff]
      %v2845 = vmul.f32 %v2841, %v2511
      %v2846 = vmul.f32 %v2842, %v2511
      %v2847 = vmul.f32 %v2843, %v2511
      %v2848 = vmul.f32 %v2844, %v2511
      %v2849 = vadd.f32 %v2836, %v2845
      %v2850 = vadd.f32 %v2837, %v2846
      %v2851 = vadd.f32 %v2838, %v2847
      %v2852 = vadd.f32 %v2839, %v2848
      %v2853 = vld [vmem:[%s2340] sm:$0xff]
      %v2854 = vld [vmem:[%s2340 + $0x8] sm:$0xff]
      %v2855 = vld [vmem:[%s2340 + $0x10] sm:$0xff]
      %v2856 = vld [vmem:[%s2340 + $0x18] sm:$0xff]
      %v2857 = vmul.f32 %v2853, %v2563
      %v2858 = vmul.f32 %v2854, %v2563
      %v2859 = vmul.f32 %v2855, %v2563
      %v2860 = vmul.f32 %v2856, %v2563
      %v2861 = vadd.f32 %v2849, %v2857
      %v2862 = vadd.f32 %v2850, %v2858
      %v2863 = vadd.f32 %v2851, %v2859
      %v2864 = vadd.f32 %v2852, %v2860
      %s2865 = scalar_lea.vmem [#allocation2], 208
      %v2866 = vld [vmem:[%s2865] sm:$0xff]
      %v2867 = vld [vmem:[%s2865 + $0x8] sm:$0xff]
      %v2868 = vld [vmem:[%s2865 + $0x10] sm:$0xff]
      %v2869 = vld [vmem:[%s2865 + $0x18] sm:$0xff]
      %v2870 = vmul.f32 %v2866, %v2616
      %v2871 = vmul.f32 %v2867, %v2616
      %v2872 = vmul.f32 %v2868, %v2616
      %v2873 = vmul.f32 %v2869, %v2616
      %v2874 = vadd.f32 %v2861, %v2870
      %v2875 = vadd.f32 %v2862, %v2871
      %v2876 = vadd.f32 %v2863, %v2872
      %v2877 = vadd.f32 %v2864, %v2873
      %s2878 = scalar_lea.vmem [#allocation2], 224
      %v2879 = vld [vmem:[%s2878] sm:$0xff]
      %v2880 = vld [vmem:[%s2878 + $0x8] sm:$0xff]
      %v2881 = vld [vmem:[%s2878 + $0x10] sm:$0xff]
      %v2882 = vld [vmem:[%s2878 + $0x18] sm:$0xff]
      %v2883 = vmul.f32 %v2879, %v2669
      %v2884 = vmul.f32 %v2880, %v2669
      %v2885 = vmul.f32 %v2881, %v2669
      %v2886 = vmul.f32 %v2882, %v2669
      %v2887 = vadd.f32 %v2874, %v2883
      %v2888 = vadd.f32 %v2875, %v2884
      %v2889 = vadd.f32 %v2876, %v2885
      %v2890 = vadd.f32 %v2877, %v2886
      %s2891 = sadd.s32 %s583, 7
      %v2892 = vstv %s2891
      %v2893 = vadd.s32 %v2892, 1
      %vm2894 = vcmp.ge.s32.totalorder %v2892, 0
      %vm2895 = vcmp.ge.s32.totalorder %v2893, 0
      %vm2896 = vcmp.lt.s32.totalorder %v2892, 16
      %vm2897 = vcmp.lt.s32.totalorder %v2893, 16
      %vm2898 = vmand %vm2894, %vm2896
      %vm2899 = vmand %vm2895, %vm2897
      %v2900 = vsel %vm2898, 1, 0
      %v2901 = vsel %vm2899, 1, 0
      %v2902 = vcvt.s32.f32 %v2900
      %v2903 = vcvt.s32.f32 %v2901
      %v2904 = vadd.f32 %v2887, %v2755
      %v2905 = vadd.f32 %v2888, %v2755
      %v2906 = vadd.f32 %v2889, %v2755
      %v2907 = vadd.f32 %v2890, %v2755
      %v2908 = vmul.f32 %v2904, %v2902
      %v2909 = vmul.f32 %v2905, %v2902
      %v2910 = vmul.f32 %v2906, %v2903
      %v2911 = vmul.f32 %v2907, %v2903
      %s2912 = scalar_lea.vmem [#allocation3], 192
      %2913 = vst.msk [vmem:[%s2912 + $0x1] sm:$0xff] %vm1053, %v2908
      %2914 = vst.msk [vmem:[%s2912 + $0x9] sm:$0xff] %vm1053, %v2909
      %2915 = vst.msk [vmem:[%s2912 + $0x19] sm:$0xff] %vm1053, %v2910
      %2916 = vst.msk [vmem:[%s2912 + $0x21] sm:$0xff] %vm1053, %v2911
      %vm2917 = vcmask 253952
      %2918 = vst.msk [vmem:[#allocation3] sm:$0x1] %vm2917, 0.0
      %2919 = vst.msk [vmem:[#allocation3 + $0x18] sm:$0x1] %vm2917, 0.0
      %2920 = vst.msk [vmem:[#allocation3 + $0x30] sm:$0x1] %vm2917, 0.0
      %2921 = vst.msk [vmem:[#allocation3 + $0x48] sm:$0x1] %vm2917, 0.0
      %2922 = vst.msk [vmem:[#allocation3 + $0x60] sm:$0x1] %vm2917, 0.0
      %2923 = vst.msk [vmem:[#allocation3 + $0x78] sm:$0x1] %vm2917, 0.0
      %2924 = vst.msk [vmem:[#allocation3 + $0x90] sm:$0x1] %vm2917, 0.0
      %2925 = vst.msk [vmem:[#allocation3 + $0xa8] sm:$0x1] %vm2917, 0.0
      %2926 = vst.msk [vmem:[#allocation3 + $0xc0] sm:$0x1] %vm2917, 0.0
      %2927 = vst.msk [vmem:[#allocation3 + $0xd8] sm:$0x1] %vm2917, 0.0
      %2928 = vst.msk [vmem:[#allocation3 + $0x11] sm:$0x1] %vm2917, 0.0
      %2929 = vst.msk [vmem:[#allocation3 + $0x29] sm:$0x1] %vm2917, 0.0
      %2930 = vst.msk [vmem:[#allocation3 + $0x41] sm:$0x1] %vm2917, 0.0
      %2931 = vst.msk [vmem:[#allocation3 + $0x59] sm:$0x1] %vm2917, 0.0
      %2932 = vst.msk [vmem:[#allocation3 + $0x71] sm:$0x1] %vm2917, 0.0
      %2933 = vst.msk [vmem:[#allocation3 + $0x89] sm:$0x1] %vm2917, 0.0
      %2934 = vst.msk [vmem:[#allocation3 + $0xa1] sm:$0x1] %vm2917, 0.0
      %2935 = vst.msk [vmem:[#allocation3 + $0xb9] sm:$0x1] %vm2917, 0.0
      %2936 = vst.msk [vmem:[#allocation3 + $0xd1] sm:$0x1] %vm2917, 0.0
      %2937 = vst.msk [vmem:[#allocation3 + $0xe9] sm:$0x1] %vm2917, 0.0
      %v2938 = vld [vmem:[#allocation3] sm:$0xff]
      %v2939 = vld [vmem:[#allocation3 + $0x8] sm:$0xff]
      %v2940 = vld [vmem:[#allocation3 + $0x18] sm:$0xff]
      %v2941 = vld [vmem:[#allocation3 + $0x20] sm:$0xff]
      %v2942 = vld [vmem:[#allocation3 + $0x30] sm:$0xff]
      %v2943 = vld [vmem:[#allocation3 + $0x38] sm:$0xff]
      %v2944 = vld [vmem:[#allocation3 + $0x48] sm:$0xff]
      %v2945 = vld [vmem:[#allocation3 + $0x50] sm:$0xff]
      %v2946 = vld [vmem:[#allocation3 + $0x60] sm:$0xff]
      %v2947 = vld [vmem:[#allocation3 + $0x68] sm:$0xff]
      %v2948 = vld [vmem:[#allocation3 + $0x78] sm:$0xff]
      %v2949 = vld [vmem:[#allocation3 + $0x80] sm:$0xff]
      %v2950 = vld [vmem:[#allocation3 + $0x90] sm:$0xff]
      %v2951 = vld [vmem:[#allocation3 + $0x98] sm:$0xff]
      %v2952 = vld [vmem:[#allocation3 + $0xa8] sm:$0xff]
      %v2953 = vld [vmem:[#allocation3 + $0xb0] sm:$0xff]
      %v2954 = vlaneseq
      %v2955 = vshrl.u32 %v2954, 7
      %v2956 = vsub.s32 0, %v2955
      %v2957 = vrot.slane %v586, %v2956
      %v2958 = vmul.f32 %v2938, %v2957
      %v2959 = vmul.f32 %v2939, %v2957
      %v2960 = vmul.f32 %v2940, %v2957
      %v2961 = vmul.f32 %v2941, %v2957
      %v2962 = vmul.f32 %v2942, %v2957
      %v2963 = vmul.f32 %v2943, %v2957
      %v2964 = vmul.f32 %v2944, %v2957
      %v2965 = vmul.f32 %v2945, %v2957
      %v2966 = vmul.f32 %v2946, %v2957
      %v2967 = vmul.f32 %v2947, %v2957
      %v2968 = vmul.f32 %v2948, %v2957
      %v2969 = vmul.f32 %v2949, %v2957
      %v2970 = vmul.f32 %v2950, %v2957
      %v2971 = vmul.f32 %v2951, %v2957
      %v2972 = vmul.f32 %v2952, %v2957
      %v2973 = vmul.f32 %v2953, %v2957
      %v2974 = vld [vmem:[#allocation3 + $0x1] sm:$0xff]
      %v2975 = vld [vmem:[#allocation3 + $0x9] sm:$0xff]
      %v2976 = vld [vmem:[#allocation3 + $0x19] sm:$0xff]
      %v2977 = vld [vmem:[#allocation3 + $0x21] sm:$0xff]
      %v2978 = vld [vmem:[#allocation3 + $0x31] sm:$0xff]
      %v2979 = vld [vmem:[#allocation3 + $0x39] sm:$0xff]
      %v2980 = vld [vmem:[#allocation3 + $0x49] sm:$0xff]
      %v2981 = vld [vmem:[#allocation3 + $0x51] sm:$0xff]
      %v2982 = vld [vmem:[#allocation3 + $0x61] sm:$0xff]
      %v2983 = vld [vmem:[#allocation3 + $0x69] sm:$0xff]
      %v2984 = vld [vmem:[#allocation3 + $0x79] sm:$0xff]
      %v2985 = vld [vmem:[#allocation3 + $0x81] sm:$0xff]
      %v2986 = vld [vmem:[#allocation3 + $0x91] sm:$0xff]
      %v2987 = vld [vmem:[#allocation3 + $0x99] sm:$0xff]
      %v2988 = vld [vmem:[#allocation3 + $0xa9] sm:$0xff]
      %v2989 = vld [vmem:[#allocation3 + $0xb1] sm:$0xff]
      %v2990 = vlaneseq
      %v2991 = vshrl.u32 %v2990, 7
      %v2992 = vsub.s32 1, %v2991
      %v2993 = vrot.slane %v586, %v2992
      %v2994 = vmul.f32 %v2974, %v2993
      %v2995 = vmul.f32 %v2975, %v2993
      %v2996 = vmul.f32 %v2976, %v2993
      %v2997 = vmul.f32 %v2977, %v2993
      %v2998 = vmul.f32 %v2978, %v2993
      %v2999 = vmul.f32 %v2979, %v2993
      %v3000 = vmul.f32 %v2980, %v2993
      %v3001 = vmul.f32 %v2981, %v2993
      %v3002 = vmul.f32 %v2982, %v2993
      %v3003 = vmul.f32 %v2983, %v2993
      %v3004 = vmul.f32 %v2984, %v2993
      %v3005 = vmul.f32 %v2985, %v2993
      %v3006 = vmul.f32 %v2986, %v2993
      %v3007 = vmul.f32 %v2987, %v2993
      %v3008 = vmul.f32 %v2988, %v2993
      %v3009 = vmul.f32 %v2989, %v2993
      %v3010 = vadd.f32 %v2958, %v2994
      %v3011 = vadd.f32 %v2959, %v2995
      %v3012 = vadd.f32 %v2960, %v2996
      %v3013 = vadd.f32 %v2961, %v2997
      %v3014 = vadd.f32 %v2962, %v2998
      %v3015 = vadd.f32 %v2963, %v2999
      %v3016 = vadd.f32 %v2964, %v3000
      %v3017 = vadd.f32 %v2965, %v3001
      %v3018 = vadd.f32 %v2966, %v3002
      %v3019 = vadd.f32 %v2967, %v3003
      %v3020 = vadd.f32 %v2968, %v3004
      %v3021 = vadd.f32 %v2969, %v3005
      %v3022 = vadd.f32 %v2970, %v3006
      %v3023 = vadd.f32 %v2971, %v3007
      %v3024 = vadd.f32 %v2972, %v3008
      %v3025 = vadd.f32 %v2973, %v3009
      %v3026 = vld [vmem:[#allocation3 + $0x2] sm:$0xff]
      %v3027 = vld [vmem:[#allocation3 + $0xa] sm:$0xff]
      %v3028 = vld [vmem:[#allocation3 + $0x1a] sm:$0xff]
      %v3029 = vld [vmem:[#allocation3 + $0x22] sm:$0xff]
      %v3030 = vld [vmem:[#allocation3 + $0x32] sm:$0xff]
      %v3031 = vld [vmem:[#allocation3 + $0x3a] sm:$0xff]
      %v3032 = vld [vmem:[#allocation3 + $0x4a] sm:$0xff]
      %v3033 = vld [vmem:[#allocation3 + $0x52] sm:$0xff]
      %v3034 = vld [vmem:[#allocation3 + $0x62] sm:$0xff]
      %v3035 = vld [vmem:[#allocation3 + $0x6a] sm:$0xff]
      %v3036 = vld [vmem:[#allocation3 + $0x7a] sm:$0xff]
      %v3037 = vld [vmem:[#allocation3 + $0x82] sm:$0xff]
      %v3038 = vld [vmem:[#allocation3 + $0x92] sm:$0xff]
      %v3039 = vld [vmem:[#allocation3 + $0x9a] sm:$0xff]
      %v3040 = vld [vmem:[#allocation3 + $0xaa] sm:$0xff]
      %v3041 = vld [vmem:[#allocation3 + $0xb2] sm:$0xff]
      %v3042 = vlaneseq
      %v3043 = vshrl.u32 %v3042, 7
      %v3044 = vsub.s32 2, %v3043
      %v3045 = vrot.slane %v586, %v3044
      %v3046 = vmul.f32 %v3026, %v3045
      %v3047 = vmul.f32 %v3027, %v3045
      %v3048 = vmul.f32 %v3028, %v3045
      %v3049 = vmul.f32 %v3029, %v3045
      %v3050 = vmul.f32 %v3030, %v3045
      %v3051 = vmul.f32 %v3031, %v3045
      %v3052 = vmul.f32 %v3032, %v3045
      %v3053 = vmul.f32 %v3033, %v3045
      %v3054 = vmul.f32 %v3034, %v3045
      %v3055 = vmul.f32 %v3035, %v3045
      %v3056 = vmul.f32 %v3036, %v3045
      %v3057 = vmul.f32 %v3037, %v3045
      %v3058 = vmul.f32 %v3038, %v3045
      %v3059 = vmul.f32 %v3039, %v3045
      %v3060 = vmul.f32 %v3040, %v3045
      %v3061 = vmul.f32 %v3041, %v3045
      %v3062 = vadd.f32 %v3010, %v3046
      %v3063 = vadd.f32 %v3011, %v3047
      %v3064 = vadd.f32 %v3012, %v3048
      %v3065 = vadd.f32 %v3013, %v3049
      %v3066 = vadd.f32 %v3014, %v3050
      %v3067 = vadd.f32 %v3015, %v3051
      %v3068 = vadd.f32 %v3016, %v3052
      %v3069 = vadd.f32 %v3017, %v3053
      %v3070 = vadd.f32 %v3018, %v3054
      %v3071 = vadd.f32 %v3019, %v3055
      %v3072 = vadd.f32 %v3020, %v3056
      %v3073 = vadd.f32 %v3021, %v3057
      %v3074 = vadd.f32 %v3022, %v3058
      %v3075 = vadd.f32 %v3023, %v3059
      %v3076 = vadd.f32 %v3024, %v3060
      %v3077 = vadd.f32 %v3025, %v3061
      %s3078 = scalar_lea.vmem [#allocation3], 24
      %v3079 = vld [vmem:[%s3078] sm:$0xff]
      %v3080 = vld [vmem:[%s3078 + $0x8] sm:$0xff]
      %v3081 = vld [vmem:[%s3078 + $0x18] sm:$0xff]
      %v3082 = vld [vmem:[%s3078 + $0x20] sm:$0xff]
      %v3083 = vld [vmem:[%s3078 + $0x30] sm:$0xff]
      %v3084 = vld [vmem:[%s3078 + $0x38] sm:$0xff]
      %v3085 = vld [vmem:[%s3078 + $0x48] sm:$0xff]
      %v3086 = vld [vmem:[%s3078 + $0x50] sm:$0xff]
      %v3087 = vld [vmem:[%s3078 + $0x60] sm:$0xff]
      %v3088 = vld [vmem:[%s3078 + $0x68] sm:$0xff]
      %v3089 = vld [vmem:[%s3078 + $0x78] sm:$0xff]
      %v3090 = vld [vmem:[%s3078 + $0x80] sm:$0xff]
      %v3091 = vld [vmem:[%s3078 + $0x90] sm:$0xff]
      %v3092 = vld [vmem:[%s3078 + $0x98] sm:$0xff]
      %v3093 = vld [vmem:[%s3078 + $0xa8] sm:$0xff]
      %v3094 = vld [vmem:[%s3078 + $0xb0] sm:$0xff]
      %v3095 = vlaneseq
      %v3096 = vshrl.u32 %v3095, 7
      %v3097 = vsub.s32 0, %v3096
      %v3098 = vrot.slane %v587, %v3097
      %v3099 = vmul.f32 %v3079, %v3098
      %v3100 = vmul.f32 %v3080, %v3098
      %v3101 = vmul.f32 %v3081, %v3098
      %v3102 = vmul.f32 %v3082, %v3098
      %v3103 = vmul.f32 %v3083, %v3098
      %v3104 = vmul.f32 %v3084, %v3098
      %v3105 = vmul.f32 %v3085, %v3098
      %v3106 = vmul.f32 %v3086, %v3098
      %v3107 = vmul.f32 %v3087, %v3098
      %v3108 = vmul.f32 %v3088, %v3098
      %v3109 = vmul.f32 %v3089, %v3098
      %v3110 = vmul.f32 %v3090, %v3098
      %v3111 = vmul.f32 %v3091, %v3098
      %v3112 = vmul.f32 %v3092, %v3098
      %v3113 = vmul.f32 %v3093, %v3098
      %v3114 = vmul.f32 %v3094, %v3098
      %v3115 = vadd.f32 %v3062, %v3099
      %v3116 = vadd.f32 %v3063, %v3100
      %v3117 = vadd.f32 %v3064, %v3101
      %v3118 = vadd.f32 %v3065, %v3102
      %v3119 = vadd.f32 %v3066, %v3103
      %v3120 = vadd.f32 %v3067, %v3104
      %v3121 = vadd.f32 %v3068, %v3105
      %v3122 = vadd.f32 %v3069, %v3106
      %v3123 = vadd.f32 %v3070, %v3107
      %v3124 = vadd.f32 %v3071, %v3108
      %v3125 = vadd.f32 %v3072, %v3109
      %v3126 = vadd.f32 %v3073, %v3110
      %v3127 = vadd.f32 %v3074, %v3111
      %v3128 = vadd.f32 %v3075, %v3112
      %v3129 = vadd.f32 %v3076, %v3113
      %v3130 = vadd.f32 %v3077, %v3114
      %v3131 = vld [vmem:[%s3078 + $0x1] sm:$0xff]
      %v3132 = vld [vmem:[%s3078 + $0x9] sm:$0xff]
      %v3133 = vld [vmem:[%s3078 + $0x19] sm:$0xff]
      %v3134 = vld [vmem:[%s3078 + $0x21] sm:$0xff]
      %v3135 = vld [vmem:[%s3078 + $0x31] sm:$0xff]
      %v3136 = vld [vmem:[%s3078 + $0x39] sm:$0xff]
      %v3137 = vld [vmem:[%s3078 + $0x49] sm:$0xff]
      %v3138 = vld [vmem:[%s3078 + $0x51] sm:$0xff]
      %v3139 = vld [vmem:[%s3078 + $0x61] sm:$0xff]
      %v3140 = vld [vmem:[%s3078 + $0x69] sm:$0xff]
      %v3141 = vld [vmem:[%s3078 + $0x79] sm:$0xff]
      %v3142 = vld [vmem:[%s3078 + $0x81] sm:$0xff]
      %v3143 = vld [vmem:[%s3078 + $0x91] sm:$0xff]
      %v3144 = vld [vmem:[%s3078 + $0x99] sm:$0xff]
      %v3145 = vld [vmem:[%s3078 + $0xa9] sm:$0xff]
      %v3146 = vld [vmem:[%s3078 + $0xb1] sm:$0xff]
      %v3147 = vlaneseq
      %v3148 = vshrl.u32 %v3147, 7
      %v3149 = vsub.s32 1, %v3148
      %v3150 = vrot.slane %v587, %v3149
      %v3151 = vmul.f32 %v3131, %v3150
      %v3152 = vmul.f32 %v3132, %v3150
      %v3153 = vmul.f32 %v3133, %v3150
      %v3154 = vmul.f32 %v3134, %v3150
      %v3155 = vmul.f32 %v3135, %v3150
      %v3156 = vmul.f32 %v3136, %v3150
      %v3157 = vmul.f32 %v3137, %v3150
      %v3158 = vmul.f32 %v3138, %v3150
      %v3159 = vmul.f32 %v3139, %v3150
      %v3160 = vmul.f32 %v3140, %v3150
      %v3161 = vmul.f32 %v3141, %v3150
      %v3162 = vmul.f32 %v3142, %v3150
      %v3163 = vmul.f32 %v3143, %v3150
      %v3164 = vmul.f32 %v3144, %v3150
      %v3165 = vmul.f32 %v3145, %v3150
      %v3166 = vmul.f32 %v3146, %v3150
      %v3167 = vadd.f32 %v3115, %v3151
      %v3168 = vadd.f32 %v3116, %v3152
      %v3169 = vadd.f32 %v3117, %v3153
      %v3170 = vadd.f32 %v3118, %v3154
      %v3171 = vadd.f32 %v3119, %v3155
      %v3172 = vadd.f32 %v3120, %v3156
      %v3173 = vadd.f32 %v3121, %v3157
      %v3174 = vadd.f32 %v3122, %v3158
      %v3175 = vadd.f32 %v3123, %v3159
      %v3176 = vadd.f32 %v3124, %v3160
      %v3177 = vadd.f32 %v3125, %v3161
      %v3178 = vadd.f32 %v3126, %v3162
      %v3179 = vadd.f32 %v3127, %v3163
      %v3180 = vadd.f32 %v3128, %v3164
      %v3181 = vadd.f32 %v3129, %v3165
      %v3182 = vadd.f32 %v3130, %v3166
      %v3183 = vld [vmem:[%s3078 + $0x2] sm:$0xff]
      %v3184 = vld [vmem:[%s3078 + $0xa] sm:$0xff]
      %v3185 = vld [vmem:[%s3078 + $0x1a] sm:$0xff]
      %v3186 = vld [vmem:[%s3078 + $0x22] sm:$0xff]
      %v3187 = vld [vmem:[%s3078 + $0x32] sm:$0xff]
      %v3188 = vld [vmem:[%s3078 + $0x3a] sm:$0xff]
      %v3189 = vld [vmem:[%s3078 + $0x4a] sm:$0xff]
      %v3190 = vld [vmem:[%s3078 + $0x52] sm:$0xff]
      %v3191 = vld [vmem:[%s3078 + $0x62] sm:$0xff]
      %v3192 = vld [vmem:[%s3078 + $0x6a] sm:$0xff]
      %v3193 = vld [vmem:[%s3078 + $0x7a] sm:$0xff]
      %v3194 = vld [vmem:[%s3078 + $0x82] sm:$0xff]
      %v3195 = vld [vmem:[%s3078 + $0x92] sm:$0xff]
      %v3196 = vld [vmem:[%s3078 + $0x9a] sm:$0xff]
      %v3197 = vld [vmem:[%s3078 + $0xaa] sm:$0xff]
      %v3198 = vld [vmem:[%s3078 + $0xb2] sm:$0xff]
      %v3199 = vlaneseq
      %v3200 = vshrl.u32 %v3199, 7
      %v3201 = vsub.s32 2, %v3200
      %v3202 = vrot.slane %v587, %v3201
      %v3203 = vmul.f32 %v3183, %v3202
      %v3204 = vmul.f32 %v3184, %v3202
      %v3205 = vmul.f32 %v3185, %v3202
      %v3206 = vmul.f32 %v3186, %v3202
      %v3207 = vmul.f32 %v3187, %v3202
      %v3208 = vmul.f32 %v3188, %v3202
      %v3209 = vmul.f32 %v3189, %v3202
      %v3210 = vmul.f32 %v3190, %v3202
      %v3211 = vmul.f32 %v3191, %v3202
      %v3212 = vmul.f32 %v3192, %v3202
      %v3213 = vmul.f32 %v3193, %v3202
      %v3214 = vmul.f32 %v3194, %v3202
      %v3215 = vmul.f32 %v3195, %v3202
      %v3216 = vmul.f32 %v3196, %v3202
      %v3217 = vmul.f32 %v3197, %v3202
      %v3218 = vmul.f32 %v3198, %v3202
      %v3219 = vadd.f32 %v3167, %v3203
      %v3220 = vadd.f32 %v3168, %v3204
      %v3221 = vadd.f32 %v3169, %v3205
      %v3222 = vadd.f32 %v3170, %v3206
      %v3223 = vadd.f32 %v3171, %v3207
      %v3224 = vadd.f32 %v3172, %v3208
      %v3225 = vadd.f32 %v3173, %v3209
      %v3226 = vadd.f32 %v3174, %v3210
      %v3227 = vadd.f32 %v3175, %v3211
      %v3228 = vadd.f32 %v3176, %v3212
      %v3229 = vadd.f32 %v3177, %v3213
      %v3230 = vadd.f32 %v3178, %v3214
      %v3231 = vadd.f32 %v3179, %v3215
      %v3232 = vadd.f32 %v3180, %v3216
      %v3233 = vadd.f32 %v3181, %v3217
      %v3234 = vadd.f32 %v3182, %v3218
      %s3235 = scalar_lea.vmem [#allocation3], 48
      %v3236 = vld [vmem:[%s3235] sm:$0xff]
      %v3237 = vld [vmem:[%s3235 + $0x8] sm:$0xff]
      %v3238 = vld [vmem:[%s3235 + $0x18] sm:$0xff]
      %v3239 = vld [vmem:[%s3235 + $0x20] sm:$0xff]
      %v3240 = vld [vmem:[%s3235 + $0x30] sm:$0xff]
      %v3241 = vld [vmem:[%s3235 + $0x38] sm:$0xff]
      %v3242 = vld [vmem:[%s3235 + $0x48] sm:$0xff]
      %v3243 = vld [vmem:[%s3235 + $0x50] sm:$0xff]
      %v3244 = vld [vmem:[%s3235 + $0x60] sm:$0xff]
      %v3245 = vld [vmem:[%s3235 + $0x68] sm:$0xff]
      %v3246 = vld [vmem:[%s3235 + $0x78] sm:$0xff]
      %v3247 = vld [vmem:[%s3235 + $0x80] sm:$0xff]
      %v3248 = vld [vmem:[%s3235 + $0x90] sm:$0xff]
      %v3249 = vld [vmem:[%s3235 + $0x98] sm:$0xff]
      %v3250 = vld [vmem:[%s3235 + $0xa8] sm:$0xff]
      %v3251 = vld [vmem:[%s3235 + $0xb0] sm:$0xff]
      %v3252 = vlaneseq
      %v3253 = vshrl.u32 %v3252, 7
      %v3254 = vsub.s32 0, %v3253
      %v3255 = vrot.slane %v588, %v3254
      %v3256 = vmul.f32 %v3236, %v3255
      %v3257 = vmul.f32 %v3237, %v3255
      %v3258 = vmul.f32 %v3238, %v3255
      %v3259 = vmul.f32 %v3239, %v3255
      %v3260 = vmul.f32 %v3240, %v3255
      %v3261 = vmul.f32 %v3241, %v3255
      %v3262 = vmul.f32 %v3242, %v3255
      %v3263 = vmul.f32 %v3243, %v3255
      %v3264 = vmul.f32 %v3244, %v3255
      %v3265 = vmul.f32 %v3245, %v3255
      %v3266 = vmul.f32 %v3246, %v3255
      %v3267 = vmul.f32 %v3247, %v3255
      %v3268 = vmul.f32 %v3248, %v3255
      %v3269 = vmul.f32 %v3249, %v3255
      %v3270 = vmul.f32 %v3250, %v3255
      %v3271 = vmul.f32 %v3251, %v3255
      %v3272 = vadd.f32 %v3219, %v3256
      %v3273 = vadd.f32 %v3220, %v3257
      %v3274 = vadd.f32 %v3221, %v3258
      %v3275 = vadd.f32 %v3222, %v3259
      %v3276 = vadd.f32 %v3223, %v3260
      %v3277 = vadd.f32 %v3224, %v3261
      %v3278 = vadd.f32 %v3225, %v3262
      %v3279 = vadd.f32 %v3226, %v3263
      %v3280 = vadd.f32 %v3227, %v3264
      %v3281 = vadd.f32 %v3228, %v3265
      %v3282 = vadd.f32 %v3229, %v3266
      %v3283 = vadd.f32 %v3230, %v3267
      %v3284 = vadd.f32 %v3231, %v3268
      %v3285 = vadd.f32 %v3232, %v3269
      %v3286 = vadd.f32 %v3233, %v3270
      %v3287 = vadd.f32 %v3234, %v3271
      %v3288 = vld [vmem:[%s3235 + $0x1] sm:$0xff]
      %v3289 = vld [vmem:[%s3235 + $0x9] sm:$0xff]
      %v3290 = vld [vmem:[%s3235 + $0x19] sm:$0xff]
      %v3291 = vld [vmem:[%s3235 + $0x21] sm:$0xff]
      %v3292 = vld [vmem:[%s3235 + $0x31] sm:$0xff]
      %v3293 = vld [vmem:[%s3235 + $0x39] sm:$0xff]
      %v3294 = vld [vmem:[%s3235 + $0x49] sm:$0xff]
      %v3295 = vld [vmem:[%s3235 + $0x51] sm:$0xff]
      %v3296 = vld [vmem:[%s3235 + $0x61] sm:$0xff]
      %v3297 = vld [vmem:[%s3235 + $0x69] sm:$0xff]
      %v3298 = vld [vmem:[%s3235 + $0x79] sm:$0xff]
      %v3299 = vld [vmem:[%s3235 + $0x81] sm:$0xff]
      %v3300 = vld [vmem:[%s3235 + $0x91] sm:$0xff]
      %v3301 = vld [vmem:[%s3235 + $0x99] sm:$0xff]
      %v3302 = vld [vmem:[%s3235 + $0xa9] sm:$0xff]
      %v3303 = vld [vmem:[%s3235 + $0xb1] sm:$0xff]
      %v3304 = vlaneseq
      %v3305 = vshrl.u32 %v3304, 7
      %v3306 = vsub.s32 1, %v3305
      %v3307 = vrot.slane %v588, %v3306
      %v3308 = vmul.f32 %v3288, %v3307
      %v3309 = vmul.f32 %v3289, %v3307
      %v3310 = vmul.f32 %v3290, %v3307
      %v3311 = vmul.f32 %v3291, %v3307
      %v3312 = vmul.f32 %v3292, %v3307
      %v3313 = vmul.f32 %v3293, %v3307
      %v3314 = vmul.f32 %v3294, %v3307
      %v3315 = vmul.f32 %v3295, %v3307
      %v3316 = vmul.f32 %v3296, %v3307
      %v3317 = vmul.f32 %v3297, %v3307
      %v3318 = vmul.f32 %v3298, %v3307
      %v3319 = vmul.f32 %v3299, %v3307
      %v3320 = vmul.f32 %v3300, %v3307
      %v3321 = vmul.f32 %v3301, %v3307
      %v3322 = vmul.f32 %v3302, %v3307
      %v3323 = vmul.f32 %v3303, %v3307
      %v3324 = vadd.f32 %v3272, %v3308
      %v3325 = vadd.f32 %v3273, %v3309
      %v3326 = vadd.f32 %v3274, %v3310
      %v3327 = vadd.f32 %v3275, %v3311
      %v3328 = vadd.f32 %v3276, %v3312
      %v3329 = vadd.f32 %v3277, %v3313
      %v3330 = vadd.f32 %v3278, %v3314
      %v3331 = vadd.f32 %v3279, %v3315
      %v3332 = vadd.f32 %v3280, %v3316
      %v3333 = vadd.f32 %v3281, %v3317
      %v3334 = vadd.f32 %v3282, %v3318
      %v3335 = vadd.f32 %v3283, %v3319
      %v3336 = vadd.f32 %v3284, %v3320
      %v3337 = vadd.f32 %v3285, %v3321
      %v3338 = vadd.f32 %v3286, %v3322
      %v3339 = vadd.f32 %v3287, %v3323
      %v3340 = vld [vmem:[%s3235 + $0x2] sm:$0xff]
      %v3341 = vld [vmem:[%s3235 + $0xa] sm:$0xff]
      %v3342 = vld [vmem:[%s3235 + $0x1a] sm:$0xff]
      %v3343 = vld [vmem:[%s3235 + $0x22] sm:$0xff]
      %v3344 = vld [vmem:[%s3235 + $0x32] sm:$0xff]
      %v3345 = vld [vmem:[%s3235 + $0x3a] sm:$0xff]
      %v3346 = vld [vmem:[%s3235 + $0x4a] sm:$0xff]
      %v3347 = vld [vmem:[%s3235 + $0x52] sm:$0xff]
      %v3348 = vld [vmem:[%s3235 + $0x62] sm:$0xff]
      %v3349 = vld [vmem:[%s3235 + $0x6a] sm:$0xff]
      %v3350 = vld [vmem:[%s3235 + $0x7a] sm:$0xff]
      %v3351 = vld [vmem:[%s3235 + $0x82] sm:$0xff]
      %v3352 = vld [vmem:[%s3235 + $0x92] sm:$0xff]
      %v3353 = vld [vmem:[%s3235 + $0x9a] sm:$0xff]
      %v3354 = vld [vmem:[%s3235 + $0xaa] sm:$0xff]
      %v3355 = vld [vmem:[%s3235 + $0xb2] sm:$0xff]
      %v3356 = vlaneseq
      %v3357 = vshrl.u32 %v3356, 7
      %v3358 = vsub.s32 2, %v3357
      %v3359 = vrot.slane %v588, %v3358
      %v3360 = vmul.f32 %v3340, %v3359
      %v3361 = vmul.f32 %v3341, %v3359
      %v3362 = vmul.f32 %v3342, %v3359
      %v3363 = vmul.f32 %v3343, %v3359
      %v3364 = vmul.f32 %v3344, %v3359
      %v3365 = vmul.f32 %v3345, %v3359
      %v3366 = vmul.f32 %v3346, %v3359
      %v3367 = vmul.f32 %v3347, %v3359
      %v3368 = vmul.f32 %v3348, %v3359
      %v3369 = vmul.f32 %v3349, %v3359
      %v3370 = vmul.f32 %v3350, %v3359
      %v3371 = vmul.f32 %v3351, %v3359
      %v3372 = vmul.f32 %v3352, %v3359
      %v3373 = vmul.f32 %v3353, %v3359
      %v3374 = vmul.f32 %v3354, %v3359
      %v3375 = vmul.f32 %v3355, %v3359
      %v3376 = vadd.f32 %v3324, %v3360
      %v3377 = vadd.f32 %v3325, %v3361
      %v3378 = vadd.f32 %v3326, %v3362
      %v3379 = vadd.f32 %v3327, %v3363
      %v3380 = vadd.f32 %v3328, %v3364
      %v3381 = vadd.f32 %v3329, %v3365
      %v3382 = vadd.f32 %v3330, %v3366
      %v3383 = vadd.f32 %v3331, %v3367
      %v3384 = vadd.f32 %v3332, %v3368
      %v3385 = vadd.f32 %v3333, %v3369
      %v3386 = vadd.f32 %v3334, %v3370
      %v3387 = vadd.f32 %v3335, %v3371
      %v3388 = vadd.f32 %v3336, %v3372
      %v3389 = vadd.f32 %v3337, %v3373
      %v3390 = vadd.f32 %v3338, %v3374
      %v3391 = vadd.f32 %v3339, %v3375
      %v3392 = vld [vmem:[%s518 + $0x3] sm:$0xff]
      %v3393 = vld [vmem:[%s518 + $0xb] sm:$0xff]
      %v3394 = vld [vmem:[%s518 + $0x1b] sm:$0xff]
      %v3395 = vld [vmem:[%s518 + $0x23] sm:$0xff]
      %v3396 = vld [vmem:[%s518 + $0x33] sm:$0xff]
      %v3397 = vld [vmem:[%s518 + $0x3b] sm:$0xff]
      %v3398 = vld [vmem:[%s518 + $0x4b] sm:$0xff]
      %v3399 = vld [vmem:[%s518 + $0x53] sm:$0xff]
      %v3400 = vld [vmem:[%s518 + $0x63] sm:$0xff]
      %v3401 = vld [vmem:[%s518 + $0x6b] sm:$0xff]
      %v3402 = vld [vmem:[%s518 + $0x7b] sm:$0xff]
      %v3403 = vld [vmem:[%s518 + $0x83] sm:$0xff]
      %v3404 = vld [vmem:[%s518 + $0x93] sm:$0xff]
      %v3405 = vld [vmem:[%s518 + $0x9b] sm:$0xff]
      %v3406 = vld [vmem:[%s518 + $0xab] sm:$0xff]
      %v3407 = vld [vmem:[%s518 + $0xb3] sm:$0xff]
      %v3409 = vlaneseq
      %v3410 = vshrl.u32 %v3409, 7
      %v3411 = vsub.s32 0, %v3410
      %v3412 = vrot.slane %v591, %v3411
      %v3414 = vadd.f32 %v3376, %v3412
      %v3415 = vadd.f32 %v3377, %v3412
      %v3416 = vadd.f32 %v3378, %v3412
      %v3417 = vadd.f32 %v3379, %v3412
      %v3418 = vadd.f32 %v3380, %v3412
      %v3419 = vadd.f32 %v3381, %v3412
      %v3420 = vadd.f32 %v3382, %v3412
      %v3421 = vadd.f32 %v3383, %v3412
      %v3422 = vadd.f32 %v3384, %v3412
      %v3423 = vadd.f32 %v3385, %v3412
      %v3424 = vadd.f32 %v3386, %v3412
      %v3425 = vadd.f32 %v3387, %v3412
      %v3426 = vadd.f32 %v3388, %v3412
      %v3427 = vadd.f32 %v3389, %v3412
      %v3428 = vadd.f32 %v3390, %v3412
      %v3429 = vadd.f32 %v3391, %v3412
      %v3430 = vadd.f32 %v3414, %v3392
      %v3431 = vadd.f32 %v3415, %v3393
      %v3432 = vadd.f32 %v3416, %v3394
      %v3433 = vadd.f32 %v3417, %v3395
      %v3434 = vadd.f32 %v3418, %v3396
      %v3435 = vadd.f32 %v3419, %v3397
      %v3436 = vadd.f32 %v3420, %v3398
      %v3437 = vadd.f32 %v3421, %v3399
      %v3438 = vadd.f32 %v3422, %v3400
      %v3439 = vadd.f32 %v3423, %v3401
      %v3440 = vadd.f32 %v3424, %v3402
      %v3441 = vadd.f32 %v3425, %v3403
      %v3442 = vadd.f32 %v3426, %v3404
      %v3443 = vadd.f32 %v3427, %v3405
      %v3444 = vadd.f32 %v3428, %v3406
      %v3445 = vadd.f32 %v3429, %v3407
      %3446 = vst.msk [vmem:[%s581] sm:$0xff] %vm1053, %v3430
      %3447 = vst.msk [vmem:[%s581 + $0x8] sm:$0xff] %vm1053, %v3431
      %3448 = vst.msk [vmem:[%s581 + $0x10] sm:$0xff] %vm1053, %v3432
      %3449 = vst.msk [vmem:[%s581 + $0x18] sm:$0xff] %vm1053, %v3433
      %3450 = vst.msk [vmem:[%s581 + $0x20] sm:$0xff] %vm1053, %v3434
      %3451 = vst.msk [vmem:[%s581 + $0x28] sm:$0xff] %vm1053, %v3435
      %3452 = vst.msk [vmem:[%s581 + $0x30] sm:$0xff] %vm1053, %v3436
      %3453 = vst.msk [vmem:[%s581 + $0x38] sm:$0xff] %vm1053, %v3437
      %3454 = vst.msk [vmem:[%s581 + $0x40] sm:$0xff] %vm1053, %v3438
      %3455 = vst.msk [vmem:[%s581 + $0x48] sm:$0xff] %vm1053, %v3439
      %3456 = vst.msk [vmem:[%s581 + $0x50] sm:$0xff] %vm1053, %v3440
      %3457 = vst.msk [vmem:[%s581 + $0x58] sm:$0xff] %vm1053, %v3441
      %3458 = vst.msk [vmem:[%s581 + $0x60] sm:$0xff] %vm1053, %v3442
      %3459 = vst.msk [vmem:[%s581 + $0x68] sm:$0xff] %vm1053, %v3443
      %3460 = vst.msk [vmem:[%s581 + $0x70] sm:$0xff] %vm1053, %v3444
      %3461 = vst.msk [vmem:[%s581 + $0x78] sm:$0xff] %vm1053, %v3445
      %s3462 = smul.u32 8, %s25
      %p3463 = scmp.lt.s32.totalorder %s3462, 15
      %s3464 = scalar_select %p3463, %s3462, 15
      %p3465 = scmp.lt.s32.totalorder %s24, 0
      %s3466 = scalar_select %p3465, %s24, 0
      %s3467 = smul.addr %s3464, 2
      %s3468 = sadd.s32 %s3466, %s3467
      %s3469 = smul.addr %s3468, 8
      %s3470 = scalar_lea.vmem %s9, %s3469
      // Predicated region
      $region57: #{axial_spatial_dw.1} parent=55 // pred_check
        %p3471 = pneg %p308
      $region58: #{axial_spatial_dw.1} parent=55 // pred_check_branch
        %3473 = sbr.rel (%p3471) target = $region60
      $region59: #{axial_spatial_dw.1} parent=55 // pred_region
        %s3474 = smul.u32 8, %s25
      $region60: #{axial_spatial_dw.1} parent=55 // pred_fallthru
        _
    $region56: #{axial_spatial_dw.1} parent=5 // pred_fallthru
      _
    %p3475 = scmp.le.s32.totalorder 2, %s15
    // Predicated region
    $region61: #{axial_spatial_dw.1} parent=5 // pred_check
      %p3476 = pneg %p3475
    $region62: #{axial_spatial_dw.1} parent=5 // pred_check_branch
      %3478 = sbr.rel (%p3476) target = $region64
    $region63: #{axial_spatial_dw.1} parent=5 // pred_region
      %s3479 = ssub.s32 %s15, 2
      // Predicated region
      $region65: #{axial_spatial_dw.1} parent=63 // pred_check
        %p3480 = pneg %p314
      $region66: #{axial_spatial_dw.1} parent=63 // pred_check_branch
        %3482 = sbr.rel (%p3480) target = $region68
      $region67: #{axial_spatial_dw.1} parent=63 // pred_region
        %s3483 = smul.u32 8, %s27
        %p3484 = scmp.lt.s32.totalorder %s3483, 15
        %s3485 = scalar_select %p3484, %s3483, 15
        %p3486 = scmp.lt.s32.totalorder %s26, 0
        %s3487 = scalar_select %p3486, %s26, 0
        %s3488 = smul.addr %s3485, 2
        %s3489 = sadd.s32 %s3487, %s3488
        %s3490 = smul.addr %s3489, 8
        %s3491 = scalar_lea.vmem %s9, %s3490
      $region68: #{axial_spatial_dw.1} parent=63 // pred_fallthru
        _
    $region64: #{axial_spatial_dw.1} parent=5 // pred_fallthru
      _
  $region6: #{axial_spatial_dw.1} parent=0 // loop_footer
    %s19 = sadd.s32 1, %s15
  $region7: #{axial_spatial_dw.1} parent=0 // loop_footer_branch
    %14 = sbr.rel target = $region3
  $region8: #{axial_spatial_dw.1} parent=0 // loop_exit
    _

</llo_original>
